<compile_context>
chip_gen: v7x
topology: tpu7x:2x2x1
jax: 0.10.0
libtpu: 0.0.40
codegen_flags: <defaults>
</compile_context>

<pallas_src>
import functools

import jax
import jax.numpy as jnp
from jax import lax
from jax.experimental import pallas as pl
from jax.experimental.pallas import tpu as pltpu

ATOL = 1e-8   # torch.isclose defaults
RTOL = 1e-5


def _isclose(a, b):
    return jnp.abs(a - b) <= (ATOL + RTOL * jnp.abs(b))


def _constraint_mapping_kernel(A_mn_ref, C_ref, beta_ref, out_ref,
                               *, n_constraints, n_proj_iters):
    M, N, Bt = A_mn_ref.shape
    C = C_ref[...]                                          # (N, Bt)

    # M-indexed values live as unrolled (1, Bt) slabs (pure VPU, no sublane work)
    beta = [beta_ref[m:m + 1, :] for m in range(M)]

    # ---- hoisted per-constraint invariants for the Kaczmarz rows -------------
    C_rows = [C_ref[i:i + 1, :] for i in range(n_constraints)]
    inv_rows = []
    for i in range(n_constraints):
        sq = None
        for m in range(M):
            a = A_mn_ref[m, i:i + 1, :]                     # (1, Bt) VMEM row load
            sq = a * a if sq is None else sq + a * a
        # zero rows -> inv = 0, so their projection update is an exact no-op
        inv_rows.append(jnp.where(sq > 0.0,
                                  1.0 / jnp.where(sq > 0.0, sq, 1.0), 0.0))

    # ---- get_p_faster: Kaczmarz projections, fixed pass count ----------------
    # TODO(synk): reference uses a data-dependent `while (A@p > C).any()` loop
    # (and get_p's combinatorial corner enumeration); here a fixed number of
    # passes is run, an exact no-op when the start point p=0 is feasible.
    zero = jnp.zeros((1, Bt), jnp.float32)
    p = [zero for _ in range(M)]
    for _ in range(n_proj_iters):
        for i in range(n_constraints):
            a_i = [A_mn_ref[m, i:i + 1, :] for m in range(M)]
            dot = a_i[0] * p[0]
            for m in range(1, M):
                dot = dot + a_i[m] * p[m]
            s = jnp.minimum((C_rows[i] - dot) * inv_rows[i], 0.0)
            p = [p[m] + s * a_i[m] for m in range(M)]

    # ---- get_D: alpha = min_i |C_i - A_i.p| / ||A_i||_1 -----------------------
    # (analytic: max over s in {-1,+1}^M of |A_i.s| == sum_j |A_ij|, so the
    #  reference's 2^M corner enumeration collapses to a row L1 norm.)
    A_slab = [A_mn_ref[m] for m in range(M)]                # each (N, Bt)
    l1 = jnp.abs(A_slab[0])
    Ap = A_slab[0] * p[0]
    for m in range(1, M):
        l1 = l1 + jnp.abs(A_slab[m])
        Ap = Ap + A_slab[m] * p[m]
    slack = C - Ap                                          # (N, Bt)
    ratio = jnp.where(l1 > 0.0,
                      jnp.abs(slack) / jnp.where(l1 > 0.0, l1, 1.0), jnp.inf)
    alpha = jnp.min(ratio, axis=0, keepdims=True)           # (1, Bt)

    # ---- map_to_D: [0,1]^M -> box of half-width alpha around p ---------------
    action = [(2.0 * beta[m] - 1.0) * alpha + p[m] for m in range(M)]

    # ---- compute_collinear_point_on_boundary ----------------------------------
    # betas_n = action + t_n * (p - action); everything is expressed via t_n so
    # the (N, M, Bt) betas tensor never materializes.
    pma = [p[m] - action[m] for m in range(M)]              # (1, Bt) each
    denom_b = A_slab[0] * pma[0]
    num_acc = A_slab[0] * action[0]
    for m in range(1, M):
        denom_b = denom_b + A_slab[m] * pma[m]
        num_acc = num_acc + A_slab[m] * action[m]
    num_b = C - num_acc
    div_ok = denom_b != 0.0                                 # guard /0 rows
    t_rows = num_b / jnp.where(div_ok, denom_b, 1.0)        # (N, Bt)

    pma_sq = pma[0] * pma[0]
    for m in range(1, M):
        pma_sq = pma_sq + pma[m] * pma[m]
    dist = t_rows * t_rows * pma_sq                         # ||betas_n-action||^2
    abs_t_rows = jnp.abs(t_rows)

    close_all = None      # all_m isclose(betas_nm, action_m)
    pma_all_zero = None   # all_m (p_m == action_m)
    for m in range(M):
        thr = ATOL + RTOL * jnp.abs(action[m])              # (1, Bt)
        cm = (abs_t_rows * jnp.abs(pma[m])) <= thr          # (N, Bt)
        close_all = cm if close_all is None else (close_all & cm)
        zm = pma[m] == 0.0
        pma_all_zero = zm if pma_all_zero is None else (pma_all_zero & zm)
    # sign(betas_n - action) == sign(action - p) elementwise  <=>  t_n < 0
    # (or p == action in every coordinate)
    sign_ok = (t_rows < 0.0) | pma_all_zero                 # (N, Bt)
    valid = (close_all | sign_ok) & div_ok
    masked = jnp.where(valid, dist, jnp.inf)
    min_d = jnp.min(masked, axis=0, keepdims=True)          # (1, Bt)
    iota_n = lax.broadcasted_iota(jnp.int32, (N, Bt), 0)
    # TODO(synk): reference raises RuntimeError when no valid bounding beta is
    # found; here the minimum-distance row is used unconditionally.
    idx_n = jnp.min(jnp.where(masked <= min_d, iota_n, N), axis=0, keepdims=True)
    t_sel = jnp.sum(jnp.where(iota_n == idx_n, t_rows, 0.0),
                    axis=0, keepdims=True)                  # (1, Bt)
    bb = [action[m] + t_sel * pma[m] for m in range(M)]     # bounding beta

    # ---- compute_d -------------------------------------------------------------
    bbmp = [bb[m] - p[m] for m in range(M)]
    eq = [bbmp[m] == 0.0 for m in range(M)]
    t_plus, t_minus = [], []
    for m in range(M):
        safe = jnp.where(eq[m], 1.0, bbmp[m])
        tp = alpha / safe
        t_plus.append(jnp.where(eq[m], jnp.inf, tp))
        t_minus.append(jnp.where(eq[m], jnp.inf, -tp))
    abs_t = [jnp.abs(t_plus[m]) for m in range(M)]          # == |t_minus|
    min_abs = abs_t[0]
    for m in range(1, M):
        min_abs = jnp.minimum(min_abs, abs_t[m])
    cand = [_isclose(abs_t[m], min_abs) for m in range(M)]
    all_eq = eq[0]
    for m in range(1, M):
        all_eq = all_eq & eq[m]

    BIG = 2 * M
    idx_sel = jnp.full((1, Bt), BIG, jnp.int32)
    for m in range(M):                                       # t_plus block first
        idx_sel = jnp.minimum(
            idx_sel, jnp.where(cand[m] & ((t_plus[m] > 0.0) | all_eq), m, BIG))
    for m in range(M):                                       # then t_minus block
        idx_sel = jnp.minimum(
            idx_sel, jnp.where(cand[m] & ((t_minus[m] > 0.0) | all_eq), m + M, BIG))
    # TODO(synk): reference raises if no min-|t| candidate passes the sign test;
    # here we fall back to the first min-|t| candidate.
    idx_fb = jnp.full((1, Bt), BIG, jnp.int32)
    for m in range(M):
        idx_fb = jnp.minimum(idx_fb, jnp.where(cand[m], m, BIG))
    idx_t = jnp.where(idx_sel >= BIG, idx_fb, idx_sel)

    t = jnp.zeros((1, Bt), jnp.float32)
    for m in range(M):
        t = jnp.where(idx_t == m, t_plus[m], t)
        t = jnp.where(idx_t == (m + M), t_minus[m], t)
    t = jnp.where((t > 1.0) & _isclose(t, 1.0), 1.0, t)
    t = jnp.where((t < -1.0) & _isclose(t, -1.0), -1.0, t)
    d = [t * bb[m] + (1.0 - t) * p[m] for m in range(M)]

    # ---- scale_action -----------------------------------------------------------
    # lam[isclose(d, p)] = d[isclose(d, p)]  -- intentional reference parity.
    for m in range(M):
        dcp = _isclose(d[m], p[m])
        lam = jnp.where(dcp, d[m],
                        (action[m] - p[m]) / jnp.where(dcp, 1.0, d[m] - p[m]))
        out_ref[m:m + 1, :] = lam * (bb[m] - p[m]) + p[m]   # lane-dense row store


def constraint_mapping_forward(A_mn, C_t, beta_t, *, n_constraints,
                               n_proj_iters=2, block_b=128):
    """Batch-in-lanes inputs: A_mn (M,N,B), C_t (N,B), beta_t (M,B) -> (B, M)."""
    A_mn = A_mn.astype(jnp.float32)
    C_t = C_t.astype(jnp.float32)
    beta_t = beta_t.astype(jnp.float32)
    M, N, B = A_mn.shape
    Bt = block_b                          # multiple of 128 (lane-dense)
    Bpad = pl.cdiv(B, Bt) * Bt
    pad = Bpad - B
    if pad:
        # edge-replicate so padded lanes stay finite (lanes never interact)
        A_mn = jnp.pad(A_mn, ((0, 0), (0, 0), (0, pad)), mode="edge")
        C_t = jnp.pad(C_t, ((0, 0), (0, pad)), mode="edge")
        beta_t = jnp.pad(beta_t, ((0, 0), (0, pad)), mode="edge")

    kernel = functools.partial(_constraint_mapping_kernel,
                               n_constraints=n_constraints,
                               n_proj_iters=n_proj_iters)
    out_t = pl.pallas_call(
        kernel,
        out_shape=jax.ShapeDtypeStruct((M, Bpad), jnp.float32),
        grid_spec=pltpu.PrefetchScalarGridSpec(
            num_scalar_prefetch=0,
            grid=(Bpad // Bt,),
            in_specs=[
                pl.BlockSpec((M, N, Bt), lambda b: (0, 0, b)),
                pl.BlockSpec((N, Bt), lambda b: (0, b)),
                pl.BlockSpec((M, Bt), lambda b: (0, b)),
            ],
            out_specs=pl.BlockSpec((M, Bt), lambda b: (0, b)),
        ),
        compiler_params=pltpu.CompilerParams(
            dimension_semantics=("parallel",)),
    )(A_mn, C_t, beta_t)
    return jnp.transpose(out_t[:, :B], (1, 0))              # (B, M)


if __name__ == "__main__":
    key = jax.random.PRNGKey(0)
    B, OBS, M, NC = 200, 16, 4, 8         # batch, obs dim, action dim, learned constraints
    N = NC + 2 * M                        # + [-1,1]^M action-space box constraints

    k1, k2, k3 = jax.random.split(key, 3)
    obs = jax.random.normal(k1, (B, OBS), jnp.float32)
    beta_action = jax.random.uniform(k2, (B, M), jnp.float32)          # in [0,1]^M
    # leq_zero form: g@a + c <= 0  <=>  A@a <= C with C = -c ; c < 0 so a=0 is feasible
    c = -(jnp.abs(jax.random.normal(k3, (B, NC), jnp.float32)) + 0.5)

    # synthetic safety layer (glue), emitted DIRECTLY in batch-in-lanes layout:
    # g_mn[m, n, b] = sum_o obs[b, o] * W3[o, n, m]   -- no (B,N,M) transpose pass
    W = jax.random.normal(jax.random.PRNGKey(42), (OBS, NC * M),
                          jnp.float32) / jnp.sqrt(OBS)
    W3 = W.reshape(OBS, NC, M)
    g_mn = jnp.einsum("bo,onm->mnb", obs, W3)                          # (M, NC, B)

    # augment_action_space=True: append box constraints  I a <= 1, -I a <= 1
    eye = jnp.eye(M, dtype=jnp.float32)
    A_box_mn = jnp.concatenate([eye, -eye], axis=0).T                  # (M, 2M)
    A_mn = jnp.concatenate(
        [g_mn, jnp.broadcast_to(A_box_mn[:, :, None], (M, 2 * M, B))], axis=1)  # (M, N, B)
    C_t = jnp.concatenate([-c.T, jnp.ones((2 * M, B), jnp.float32)], axis=0)    # (N, B)
    beta_t = beta_action.T                                              # (M, B)

    safe_action = constraint_mapping_forward(A_mn, C_t, beta_t, n_constraints=NC)
    safe_action = jax.block_until_ready(safe_action)
    assert safe_action.shape == (B, M)
    assert bool(jnp.all(jnp.isfinite(safe_action)))
    print("KERNEL_OK")
</pallas_src>

<mosaic_0001>
module attributes {stable_mosaic.version = 11 : i64} {
  func.func @_constraint_mapping_kernel(%arg0: i32, %arg1: memref<4x16x128xf32, #tpu.memory_space<vmem>>, %arg2: memref<16x128xf32, #tpu.memory_space<vmem>>, %arg3: memref<4x128xf32, #tpu.memory_space<vmem>>, %arg4: memref<4x128xf32, #tpu.memory_space<vmem>>) attributes {dimension_semantics = [#tpu.dimension_semantics<parallel>], iteration_bounds = array<i64: 2>, scalar_prefetch = 0 : i64, scratch_operands = 0 : i64, tpu.core_type = #tpu.core_type<tc>, window_params = [{transform_indices = @transform_0, window_bounds = array<i64: 4, 16, 128>}, {transform_indices = @transform_1, window_bounds = array<i64: 16, 128>}, {transform_indices = @transform_2, window_bounds = array<i64: 4, 128>}, {transform_indices = @transform_3, window_bounds = array<i64: 4, 128>}]} {
    %c0 = arith.constant 0 : index
    %c0_0 = arith.constant 0 : index
    %0 = vector.load %arg2[%c0, %c0_0] : memref<16x128xf32, #tpu.memory_space<vmem>>, vector<16x128xf32>
    %c0_1 = arith.constant 0 : index
    %c0_2 = arith.constant 0 : index
    %1 = vector.load %arg3[%c0_1, %c0_2] : memref<4x128xf32, #tpu.memory_space<vmem>>, vector<1x128xf32>
    %c1 = arith.constant 1 : index
    %c0_3 = arith.constant 0 : index
    %2 = vector.load %arg3[%c1, %c0_3] : memref<4x128xf32, #tpu.memory_space<vmem>>, vector<1x128xf32>
    %c2 = arith.constant 2 : index
    %c0_4 = arith.constant 0 : index
    %3 = vector.load %arg3[%c2, %c0_4] : memref<4x128xf32, #tpu.memory_space<vmem>>, vector<1x128xf32>
    %c3 = arith.constant 3 : index
    %c0_5 = arith.constant 0 : index
    %4 = vector.load %arg3[%c3, %c0_5] : memref<4x128xf32, #tpu.memory_space<vmem>>, vector<1x128xf32>
    %c0_6 = arith.constant 0 : index
    %c0_7 = arith.constant 0 : index
    %5 = vector.load %arg2[%c0_6, %c0_7] : memref<16x128xf32, #tpu.memory_space<vmem>>, vector<1x128xf32>
    %c1_8 = arith.constant 1 : index
    %c0_9 = arith.constant 0 : index
    %6 = vector.load %arg2[%c1_8, %c0_9] : memref<16x128xf32, #tpu.memory_space<vmem>>, vector<1x128xf32>
    %c2_10 = arith.constant 2 : index
    %c0_11 = arith.constant 0 : index
    %7 = vector.load %arg2[%c2_10, %c0_11] : memref<16x128xf32, #tpu.memory_space<vmem>>, vector<1x128xf32>
    %c3_12 = arith.constant 3 : index
    %c0_13 = arith.constant 0 : index
    %8 = vector.load %arg2[%c3_12, %c0_13] : memref<16x128xf32, #tpu.memory_space<vmem>>, vector<1x128xf32>
    %c4 = arith.constant 4 : index
    %c0_14 = arith.constant 0 : index
    %9 = vector.load %arg2[%c4, %c0_14] : memref<16x128xf32, #tpu.memory_space<vmem>>, vector<1x128xf32>
    %c5 = arith.constant 5 : index
    %c0_15 = arith.constant 0 : index
    %10 = vector.load %arg2[%c5, %c0_15] : memref<16x128xf32, #tpu.memory_space<vmem>>, vector<1x128xf32>
    %c6 = arith.constant 6 : index
    %c0_16 = arith.constant 0 : index
    %11 = vector.load %arg2[%c6, %c0_16] : memref<16x128xf32, #tpu.memory_space<vmem>>, vector<1x128xf32>
    %c7 = arith.constant 7 : index
    %c0_17 = arith.constant 0 : index
    %12 = vector.load %arg2[%c7, %c0_17] : memref<16x128xf32, #tpu.memory_space<vmem>>, vector<1x128xf32>
    %c0_18 = arith.constant 0 : index
    %c0_19 = arith.constant 0 : index
    %c0_20 = arith.constant 0 : index
    %13 = vector.load %arg1[%c0_18, %c0_19, %c0_20] : memref<4x16x128xf32, #tpu.memory_space<vmem>>, vector<1x1x128xf32>
    %14 = vector.shape_cast %13 : vector<1x1x128xf32> to vector<1x128xf32>
    %15 = arith.mulf %14, %14 : vector<1x128xf32>
    %c1_21 = arith.constant 1 : index
    %c0_22 = arith.constant 0 : index
    %c0_23 = arith.constant 0 : index
    %16 = vector.load %arg1[%c1_21, %c0_22, %c0_23] : memref<4x16x128xf32, #tpu.memory_space<vmem>>, vector<1x1x128xf32>
    %17 = vector.shape_cast %16 : vector<1x1x128xf32> to vector<1x128xf32>
    %18 = arith.mulf %17, %17 : vector<1x128xf32>
    %19 = arith.addf %15, %18 : vector<1x128xf32>
    %c2_24 = arith.constant 2 : index
    %c0_25 = arith.constant 0 : index
    %c0_26 = arith.constant 0 : index
    %20 = vector.load %arg1[%c2_24, %c0_25, %c0_26] : memref<4x16x128xf32, #tpu.memory_space<vmem>>, vector<1x1x128xf32>
    %21 = vector.shape_cast %20 : vector<1x1x128xf32> to vector<1x128xf32>
    %22 = arith.mulf %21, %21 : vector<1x128xf32>
    %23 = arith.addf %19, %22 : vector<1x128xf32>
    %c3_27 = arith.constant 3 : index
    %c0_28 = arith.constant 0 : index
    %c0_29 = arith.constant 0 : index
    %24 = vector.load %arg1[%c3_27, %c0_28, %c0_29] : memref<4x16x128xf32, #tpu.memory_space<vmem>>, vector<1x1x128xf32>
    %25 = vector.shape_cast %24 : vector<1x1x128xf32> to vector<1x128xf32>
    %26 = arith.mulf %25, %25 : vector<1x128xf32>
    %27 = arith.addf %23, %26 : vector<1x128xf32>
    %cst = arith.constant 0.000000e+00 : f32
    %28 = vector.broadcast %cst : f32 to vector<1x128xf32>
    %29 = arith.cmpf ogt, %27, %28 : vector<1x128xf32>
    %cst_30 = arith.constant 0.000000e+00 : f32
    %30 = vector.broadcast %cst_30 : f32 to vector<1x128xf32>
    %31 = arith.cmpf ogt, %27, %30 : vector<1x128xf32>
    %cst_31 = arith.constant 1.000000e+00 : f32
    %32 = vector.broadcast %cst_31 : f32 to vector<1x128xf32>
    %33 = arith.select %31, %27, %32 : vector<1x128xi1>, vector<1x128xf32>
    %cst_32 = arith.constant 1.000000e+00 : f32
    %34 = vector.broadcast %cst_32 : f32 to vector<1x128xf32>
    %35 = arith.divf %34, %33 : vector<1x128xf32>
    %cst_33 = arith.constant 0.000000e+00 : f32
    %36 = vector.broadcast %cst_33 : f32 to vector<1x128xf32>
    %37 = arith.select %29, %35, %36 : vector<1x128xi1>, vector<1x128xf32>
    %c0_34 = arith.constant 0 : index
    %c1_35 = arith.constant 1 : index
    %c0_36 = arith.constant 0 : index
    %38 = vector.load %arg1[%c0_34, %c1_35, %c0_36] : memref<4x16x128xf32, #tpu.memory_space<vmem>>, vector<1x1x128xf32>
    %39 = vector.shape_cast %38 : vector<1x1x128xf32> to vector<1x128xf32>
    %40 = arith.mulf %39, %39 : vector<1x128xf32>
    %c1_37 = arith.constant 1 : index
    %c1_38 = arith.constant 1 : index
    %c0_39 = arith.constant 0 : index
    %41 = vector.load %arg1[%c1_37, %c1_38, %c0_39] : memref<4x16x128xf32, #tpu.memory_space<vmem>>, vector<1x1x128xf32>
    %42 = vector.shape_cast %41 : vector<1x1x128xf32> to vector<1x128xf32>
    %43 = arith.mulf %42, %42 : vector<1x128xf32>
    %44 = arith.addf %40, %43 : vector<1x128xf32>
    %c2_40 = arith.constant 2 : index
    %c1_41 = arith.constant 1 : index
    %c0_42 = arith.constant 0 : index
    %45 = vector.load %arg1[%c2_40, %c1_41, %c0_42] : memref<4x16x128xf32, #tpu.memory_space<vmem>>, vector<1x1x128xf32>
    %46 = vector.shape_cast %45 : vector<1x1x128xf32> to vector<1x128xf32>
    %47 = arith.mulf %46, %46 : vector<1x128xf32>
    %48 = arith.addf %44, %47 : vector<1x128xf32>
    %c3_43 = arith.constant 3 : index
    %c1_44 = arith.constant 1 : index
    %c0_45 = arith.constant 0 : index
    %49 = vector.load %arg1[%c3_43, %c1_44, %c0_45] : memref<4x16x128xf32, #tpu.memory_space<vmem>>, vector<1x1x128xf32>
    %50 = vector.shape_cast %49 : vector<1x1x128xf32> to vector<1x128xf32>
    %51 = arith.mulf %50, %50 : vector<1x128xf32>
    %52 = arith.addf %48, %51 : vector<1x128xf32>
    %cst_46 = arith.constant 0.000000e+00 : f32
    %53 = vector.broadcast %cst_46 : f32 to vector<1x128xf32>
    %54 = arith.cmpf ogt, %52, %53 : vector<1x128xf32>
    %cst_47 = arith.constant 0.000000e+00 : f32
    %55 = vector.broadcast %cst_47 : f32 to vector<1x128xf32>
    %56 = arith.cmpf ogt, %52, %55 : vector<1x128xf32>
    %cst_48 = arith.constant 1.000000e+00 : f32
    %57 = vector.broadcast %cst_48 : f32 to vector<1x128xf32>
    %58 = arith.select %56, %52, %57 : vector<1x128xi1>, vector<1x128xf32>
    %cst_49 = arith.constant 1.000000e+00 : f32
    %59 = vector.broadcast %cst_49 : f32 to vector<1x128xf32>
    %60 = arith.divf %59, %58 : vector<1x128xf32>
    %cst_50 = arith.constant 0.000000e+00 : f32
    %61 = vector.broadcast %cst_50 : f32 to vector<1x128xf32>
    %62 = arith.select %54, %60, %61 : vector<1x128xi1>, vector<1x128xf32>
    %c0_51 = arith.constant 0 : index
    %c2_52 = arith.constant 2 : index
    %c0_53 = arith.constant 0 : index
    %63 = vector.load %arg1[%c0_51, %c2_52, %c0_53] : memref<4x16x128xf32, #tpu.memory_space<vmem>>, vector<1x1x128xf32>
    %64 = vector.shape_cast %63 : vector<1x1x128xf32> to vector<1x128xf32>
    %65 = arith.mulf %64, %64 : vector<1x128xf32>
    %c1_54 = arith.constant 1 : index
    %c2_55 = arith.constant 2 : index
    %c0_56 = arith.constant 0 : index
    %66 = vector.load %arg1[%c1_54, %c2_55, %c0_56] : memref<4x16x128xf32, #tpu.memory_space<vmem>>, vector<1x1x128xf32>
    %67 = vector.shape_cast %66 : vector<1x1x128xf32> to vector<1x128xf32>
    %68 = arith.mulf %67, %67 : vector<1x128xf32>
    %69 = arith.addf %65, %68 : vector<1x128xf32>
    %c2_57 = arith.constant 2 : index
    %c2_58 = arith.constant 2 : index
    %c0_59 = arith.constant 0 : index
    %70 = vector.load %arg1[%c2_57, %c2_58, %c0_59] : memref<4x16x128xf32, #tpu.memory_space<vmem>>, vector<1x1x128xf32>
    %71 = vector.shape_cast %70 : vector<1x1x128xf32> to vector<1x128xf32>
    %72 = arith.mulf %71, %71 : vector<1x128xf32>
    %73 = arith.addf %69, %72 : vector<1x128xf32>
    %c3_60 = arith.constant 3 : index
    %c2_61 = arith.constant 2 : index
    %c0_62 = arith.constant 0 : index
    %74 = vector.load %arg1[%c3_60, %c2_61, %c0_62] : memref<4x16x128xf32, #tpu.memory_space<vmem>>, vector<1x1x128xf32>
    %75 = vector.shape_cast %74 : vector<1x1x128xf32> to vector<1x128xf32>
    %76 = arith.mulf %75, %75 : vector<1x128xf32>
    %77 = arith.addf %73, %76 : vector<1x128xf32>
    %cst_63 = arith.constant 0.000000e+00 : f32
    %78 = vector.broadcast %cst_63 : f32 to vector<1x128xf32>
    %79 = arith.cmpf ogt, %77, %78 : vector<1x128xf32>
    %cst_64 = arith.constant 0.000000e+00 : f32
    %80 = vector.broadcast %cst_64 : f32 to vector<1x128xf32>
    %81 = arith.cmpf ogt, %77, %80 : vector<1x128xf32>
    %cst_65 = arith.constant 1.000000e+00 : f32
    %82 = vector.broadcast %cst_65 : f32 to vector<1x128xf32>
    %83 = arith.select %81, %77, %82 : vector<1x128xi1>, vector<1x128xf32>
    %cst_66 = arith.constant 1.000000e+00 : f32
    %84 = vector.broadcast %cst_66 : f32 to vector<1x128xf32>
    %85 = arith.divf %84, %83 : vector<1x128xf32>
    %cst_67 = arith.constant 0.000000e+00 : f32
    %86 = vector.broadcast %cst_67 : f32 to vector<1x128xf32>
    %87 = arith.select %79, %85, %86 : vector<1x128xi1>, vector<1x128xf32>
    %c0_68 = arith.constant 0 : index
    %c3_69 = arith.constant 3 : index
    %c0_70 = arith.constant 0 : index
    %88 = vector.load %arg1[%c0_68, %c3_69, %c0_70] : memref<4x16x128xf32, #tpu.memory_space<vmem>>, vector<1x1x128xf32>
    %89 = vector.shape_cast %88 : vector<1x1x128xf32> to vector<1x128xf32>
    %90 = arith.mulf %89, %89 : vector<1x128xf32>
    %c1_71 = arith.constant 1 : index
    %c3_72 = arith.constant 3 : index
    %c0_73 = arith.constant 0 : index
    %91 = vector.load %arg1[%c1_71, %c3_72, %c0_73] : memref<4x16x128xf32, #tpu.memory_space<vmem>>, vector<1x1x128xf32>
    %92 = vector.shape_cast %91 : vector<1x1x128xf32> to vector<1x128xf32>
    %93 = arith.mulf %92, %92 : vector<1x128xf32>
    %94 = arith.addf %90, %93 : vector<1x128xf32>
    %c2_74 = arith.constant 2 : index
    %c3_75 = arith.constant 3 : index
    %c0_76 = arith.constant 0 : index
    %95 = vector.load %arg1[%c2_74, %c3_75, %c0_76] : memref<4x16x128xf32, #tpu.memory_space<vmem>>, vector<1x1x128xf32>
    %96 = vector.shape_cast %95 : vector<1x1x128xf32> to vector<1x128xf32>
    %97 = arith.mulf %96, %96 : vector<1x128xf32>
    %98 = arith.addf %94, %97 : vector<1x128xf32>
    %c3_77 = arith.constant 3 : index
    %c3_78 = arith.constant 3 : index
    %c0_79 = arith.constant 0 : index
    %99 = vector.load %arg1[%c3_77, %c3_78, %c0_79] : memref<4x16x128xf32, #tpu.memory_space<vmem>>, vector<1x1x128xf32>
    %100 = vector.shape_cast %99 : vector<1x1x128xf32> to vector<1x128xf32>
    %101 = arith.mulf %100, %100 : vector<1x128xf32>
    %102 = arith.addf %98, %101 : vector<1x128xf32>
    %cst_80 = arith.constant 0.000000e+00 : f32
    %103 = vector.broadcast %cst_80 : f32 to vector<1x128xf32>
    %104 = arith.cmpf ogt, %102, %103 : vector<1x128xf32>
    %cst_81 = arith.constant 0.000000e+00 : f32
    %105 = vector.broadcast %cst_81 : f32 to vector<1x128xf32>
    %106 = arith.cmpf ogt, %102, %105 : vector<1x128xf32>
    %cst_82 = arith.constant 1.000000e+00 : f32
    %107 = vector.broadcast %cst_82 : f32 to vector<1x128xf32>
    %108 = arith.select %106, %102, %107 : vector<1x128xi1>, vector<1x128xf32>
    %cst_83 = arith.constant 1.000000e+00 : f32
    %109 = vector.broadcast %cst_83 : f32 to vector<1x128xf32>
    %110 = arith.divf %109, %108 : vector<1x128xf32>
    %cst_84 = arith.constant 0.000000e+00 : f32
    %111 = vector.broadcast %cst_84 : f32 to vector<1x128xf32>
    %112 = arith.select %104, %110, %111 : vector<1x128xi1>, vector<1x128xf32>
    %c0_85 = arith.constant 0 : index
    %c4_86 = arith.constant 4 : index
    %c0_87 = arith.constant 0 : index
    %113 = vector.load %arg1[%c0_85, %c4_86, %c0_87] : memref<4x16x128xf32, #tpu.memory_space<vmem>>, vector<1x1x128xf32>
    %114 = vector.shape_cast %113 : vector<1x1x128xf32> to vector<1x128xf32>
    %115 = arith.mulf %114, %114 : vector<1x128xf32>
    %c1_88 = arith.constant 1 : index
    %c4_89 = arith.constant 4 : index
    %c0_90 = arith.constant 0 : index
    %116 = vector.load %arg1[%c1_88, %c4_89, %c0_90] : memref<4x16x128xf32, #tpu.memory_space<vmem>>, vector<1x1x128xf32>
    %117 = vector.shape_cast %116 : vector<1x1x128xf32> to vector<1x128xf32>
    %118 = arith.mulf %117, %117 : vector<1x128xf32>
    %119 = arith.addf %115, %118 : vector<1x128xf32>
    %c2_91 = arith.constant 2 : index
    %c4_92 = arith.constant 4 : index
    %c0_93 = arith.constant 0 : index
    %120 = vector.load %arg1[%c2_91, %c4_92, %c0_93] : memref<4x16x128xf32, #tpu.memory_space<vmem>>, vector<1x1x128xf32>
    %121 = vector.shape_cast %120 : vector<1x1x128xf32> to vector<1x128xf32>
    %122 = arith.mulf %121, %121 : vector<1x128xf32>
    %123 = arith.addf %119, %122 : vector<1x128xf32>
    %c3_94 = arith.constant 3 : index
    %c4_95 = arith.constant 4 : index
    %c0_96 = arith.constant 0 : index
    %124 = vector.load %arg1[%c3_94, %c4_95, %c0_96] : memref<4x16x128xf32, #tpu.memory_space<vmem>>, vector<1x1x128xf32>
    %125 = vector.shape_cast %124 : vector<1x1x128xf32> to vector<1x128xf32>
    %126 = arith.mulf %125, %125 : vector<1x128xf32>
    %127 = arith.addf %123, %126 : vector<1x128xf32>
    %cst_97 = arith.constant 0.000000e+00 : f32
    %128 = vector.broadcast %cst_97 : f32 to vector<1x128xf32>
    %129 = arith.cmpf ogt, %127, %128 : vector<1x128xf32>
    %cst_98 = arith.constant 0.000000e+00 : f32
    %130 = vector.broadcast %cst_98 : f32 to vector<1x128xf32>
    %131 = arith.cmpf ogt, %127, %130 : vector<1x128xf32>
    %cst_99 = arith.constant 1.000000e+00 : f32
    %132 = vector.broadcast %cst_99 : f32 to vector<1x128xf32>
    %133 = arith.select %131, %127, %132 : vector<1x128xi1>, vector<1x128xf32>
    %cst_100 = arith.constant 1.000000e+00 : f32
    %134 = vector.broadcast %cst_100 : f32 to vector<1x128xf32>
    %135 = arith.divf %134, %133 : vector<1x128xf32>
    %cst_101 = arith.constant 0.000000e+00 : f32
    %136 = vector.broadcast %cst_101 : f32 to vector<1x128xf32>
    %137 = arith.select %129, %135, %136 : vector<1x128xi1>, vector<1x128xf32>
    %c0_102 = arith.constant 0 : index
    %c5_103 = arith.constant 5 : index
    %c0_104 = arith.constant 0 : index
    %138 = vector.load %arg1[%c0_102, %c5_103, %c0_104] : memref<4x16x128xf32, #tpu.memory_space<vmem>>, vector<1x1x128xf32>
    %139 = vector.shape_cast %138 : vector<1x1x128xf32> to vector<1x128xf32>
    %140 = arith.mulf %139, %139 : vector<1x128xf32>
    %c1_105 = arith.constant 1 : index
    %c5_106 = arith.constant 5 : index
    %c0_107 = arith.constant 0 : index
    %141 = vector.load %arg1[%c1_105, %c5_106, %c0_107] : memref<4x16x128xf32, #tpu.memory_space<vmem>>, vector<1x1x128xf32>
    %142 = vector.shape_cast %141 : vector<1x1x128xf32> to vector<1x128xf32>
    %143 = arith.mulf %142, %142 : vector<1x128xf32>
    %144 = arith.addf %140, %143 : vector<1x128xf32>
    %c2_108 = arith.constant 2 : index
    %c5_109 = arith.constant 5 : index
    %c0_110 = arith.constant 0 : index
    %145 = vector.load %arg1[%c2_108, %c5_109, %c0_110] : memref<4x16x128xf32, #tpu.memory_space<vmem>>, vector<1x1x128xf32>
    %146 = vector.shape_cast %145 : vector<1x1x128xf32> to vector<1x128xf32>
    %147 = arith.mulf %146, %146 : vector<1x128xf32>
    %148 = arith.addf %144, %147 : vector<1x128xf32>
    %c3_111 = arith.constant 3 : index
    %c5_112 = arith.constant 5 : index
    %c0_113 = arith.constant 0 : index
    %149 = vector.load %arg1[%c3_111, %c5_112, %c0_113] : memref<4x16x128xf32, #tpu.memory_space<vmem>>, vector<1x1x128xf32>
    %150 = vector.shape_cast %149 : vector<1x1x128xf32> to vector<1x128xf32>
    %151 = arith.mulf %150, %150 : vector<1x128xf32>
    %152 = arith.addf %148, %151 : vector<1x128xf32>
    %cst_114 = arith.constant 0.000000e+00 : f32
    %153 = vector.broadcast %cst_114 : f32 to vector<1x128xf32>
    %154 = arith.cmpf ogt, %152, %153 : vector<1x128xf32>
    %cst_115 = arith.constant 0.000000e+00 : f32
    %155 = vector.broadcast %cst_115 : f32 to vector<1x128xf32>
    %156 = arith.cmpf ogt, %152, %155 : vector<1x128xf32>
    %cst_116 = arith.constant 1.000000e+00 : f32
    %157 = vector.broadcast %cst_116 : f32 to vector<1x128xf32>
    %158 = arith.select %156, %152, %157 : vector<1x128xi1>, vector<1x128xf32>
    %cst_117 = arith.constant 1.000000e+00 : f32
    %159 = vector.broadcast %cst_117 : f32 to vector<1x128xf32>
    %160 = arith.divf %159, %158 : vector<1x128xf32>
    %cst_118 = arith.constant 0.000000e+00 : f32
    %161 = vector.broadcast %cst_118 : f32 to vector<1x128xf32>
    %162 = arith.select %154, %160, %161 : vector<1x128xi1>, vector<1x128xf32>
    %c0_119 = arith.constant 0 : index
    %c6_120 = arith.constant 6 : index
    %c0_121 = arith.constant 0 : index
    %163 = vector.load %arg1[%c0_119, %c6_120, %c0_121] : memref<4x16x128xf32, #tpu.memory_space<vmem>>, vector<1x1x128xf32>
    %164 = vector.shape_cast %163 : vector<1x1x128xf32> to vector<1x128xf32>
    %165 = arith.mulf %164, %164 : vector<1x128xf32>
    %c1_122 = arith.constant 1 : index
    %c6_123 = arith.constant 6 : index
    %c0_124 = arith.constant 0 : index
    %166 = vector.load %arg1[%c1_122, %c6_123, %c0_124] : memref<4x16x128xf32, #tpu.memory_space<vmem>>, vector<1x1x128xf32>
    %167 = vector.shape_cast %166 : vector<1x1x128xf32> to vector<1x128xf32>
    %168 = arith.mulf %167, %167 : vector<1x128xf32>
    %169 = arith.addf %165, %168 : vector<1x128xf32>
    %c2_125 = arith.constant 2 : index
    %c6_126 = arith.constant 6 : index
    %c0_127 = arith.constant 0 : index
    %170 = vector.load %arg1[%c2_125, %c6_126, %c0_127] : memref<4x16x128xf32, #tpu.memory_space<vmem>>, vector<1x1x128xf32>
    %171 = vector.shape_cast %170 : vector<1x1x128xf32> to vector<1x128xf32>
    %172 = arith.mulf %171, %171 : vector<1x128xf32>
    %173 = arith.addf %169, %172 : vector<1x128xf32>
    %c3_128 = arith.constant 3 : index
    %c6_129 = arith.constant 6 : index
    %c0_130 = arith.constant 0 : index
    %174 = vector.load %arg1[%c3_128, %c6_129, %c0_130] : memref<4x16x128xf32, #tpu.memory_space<vmem>>, vector<1x1x128xf32>
    %175 = vector.shape_cast %174 : vector<1x1x128xf32> to vector<1x128xf32>
    %176 = arith.mulf %175, %175 : vector<1x128xf32>
    %177 = arith.addf %173, %176 : vector<1x128xf32>
    %cst_131 = arith.constant 0.000000e+00 : f32
    %178 = vector.broadcast %cst_131 : f32 to vector<1x128xf32>
    %179 = arith.cmpf ogt, %177, %178 : vector<1x128xf32>
    %cst_132 = arith.constant 0.000000e+00 : f32
    %180 = vector.broadcast %cst_132 : f32 to vector<1x128xf32>
    %181 = arith.cmpf ogt, %177, %180 : vector<1x128xf32>
    %cst_133 = arith.constant 1.000000e+00 : f32
    %182 = vector.broadcast %cst_133 : f32 to vector<1x128xf32>
    %183 = arith.select %181, %177, %182 : vector<1x128xi1>, vector<1x128xf32>
    %cst_134 = arith.constant 1.000000e+00 : f32
    %184 = vector.broadcast %cst_134 : f32 to vector<1x128xf32>
    %185 = arith.divf %184, %183 : vector<1x128xf32>
    %cst_135 = arith.constant 0.000000e+00 : f32
    %186 = vector.broadcast %cst_135 : f32 to vector<1x128xf32>
    %187 = arith.select %179, %185, %186 : vector<1x128xi1>, vector<1x128xf32>
    %c0_136 = arith.constant 0 : index
    %c7_137 = arith.constant 7 : index
    %c0_138 = arith.constant 0 : index
    %188 = vector.load %arg1[%c0_136, %c7_137, %c0_138] : memref<4x16x128xf32, #tpu.memory_space<vmem>>, vector<1x1x128xf32>
    %189 = vector.shape_cast %188 : vector<1x1x128xf32> to vector<1x128xf32>
    %190 = arith.mulf %189, %189 : vector<1x128xf32>
    %c1_139 = arith.constant 1 : index
    %c7_140 = arith.constant 7 : index
    %c0_141 = arith.constant 0 : index
    %191 = vector.load %arg1[%c1_139, %c7_140, %c0_141] : memref<4x16x128xf32, #tpu.memory_space<vmem>>, vector<1x1x128xf32>
    %192 = vector.shape_cast %191 : vector<1x1x128xf32> to vector<1x128xf32>
    %193 = arith.mulf %192, %192 : vector<1x128xf32>
    %194 = arith.addf %190, %193 : vector<1x128xf32>
    %c2_142 = arith.constant 2 : index
    %c7_143 = arith.constant 7 : index
    %c0_144 = arith.constant 0 : index
    %195 = vector.load %arg1[%c2_142, %c7_143, %c0_144] : memref<4x16x128xf32, #tpu.memory_space<vmem>>, vector<1x1x128xf32>
    %196 = vector.shape_cast %195 : vector<1x1x128xf32> to vector<1x128xf32>
    %197 = arith.mulf %196, %196 : vector<1x128xf32>
    %198 = arith.addf %194, %197 : vector<1x128xf32>
    %c3_145 = arith.constant 3 : index
    %c7_146 = arith.constant 7 : index
    %c0_147 = arith.constant 0 : index
    %199 = vector.load %arg1[%c3_145, %c7_146, %c0_147] : memref<4x16x128xf32, #tpu.memory_space<vmem>>, vector<1x1x128xf32>
    %200 = vector.shape_cast %199 : vector<1x1x128xf32> to vector<1x128xf32>
    %201 = arith.mulf %200, %200 : vector<1x128xf32>
    %202 = arith.addf %198, %201 : vector<1x128xf32>
    %cst_148 = arith.constant 0.000000e+00 : f32
    %203 = vector.broadcast %cst_148 : f32 to vector<1x128xf32>
    %204 = arith.cmpf ogt, %202, %203 : vector<1x128xf32>
    %cst_149 = arith.constant 0.000000e+00 : f32
    %205 = vector.broadcast %cst_149 : f32 to vector<1x128xf32>
    %206 = arith.cmpf ogt, %202, %205 : vector<1x128xf32>
    %cst_150 = arith.constant 1.000000e+00 : f32
    %207 = vector.broadcast %cst_150 : f32 to vector<1x128xf32>
    %208 = arith.select %206, %202, %207 : vector<1x128xi1>, vector<1x128xf32>
    %cst_151 = arith.constant 1.000000e+00 : f32
    %209 = vector.broadcast %cst_151 : f32 to vector<1x128xf32>
    %210 = arith.divf %209, %208 : vector<1x128xf32>
    %cst_152 = arith.constant 0.000000e+00 : f32
    %211 = vector.broadcast %cst_152 : f32 to vector<1x128xf32>
    %212 = arith.select %204, %210, %211 : vector<1x128xi1>, vector<1x128xf32>
    %cst_153 = arith.constant 0.000000e+00 : f32
    %213 = vector.broadcast %cst_153 : f32 to vector<1x128xf32>
    %c0_154 = arith.constant 0 : index
    %c0_155 = arith.constant 0 : index
    %c0_156 = arith.constant 0 : index
    %214 = vector.load %arg1[%c0_154, %c0_155, %c0_156] : memref<4x16x128xf32, #tpu.memory_space<vmem>>, vector<1x1x128xf32>
    %215 = vector.shape_cast %214 : vector<1x1x128xf32> to vector<1x128xf32>
    %c1_157 = arith.constant 1 : index
    %c0_158 = arith.constant 0 : index
    %c0_159 = arith.constant 0 : index
    %216 = vector.load %arg1[%c1_157, %c0_158, %c0_159] : memref<4x16x128xf32, #tpu.memory_space<vmem>>, vector<1x1x128xf32>
    %217 = vector.shape_cast %216 : vector<1x1x128xf32> to vector<1x128xf32>
    %c2_160 = arith.constant 2 : index
    %c0_161 = arith.constant 0 : index
    %c0_162 = arith.constant 0 : index
    %218 = vector.load %arg1[%c2_160, %c0_161, %c0_162] : memref<4x16x128xf32, #tpu.memory_space<vmem>>, vector<1x1x128xf32>
    %219 = vector.shape_cast %218 : vector<1x1x128xf32> to vector<1x128xf32>
    %c3_163 = arith.constant 3 : index
    %c0_164 = arith.constant 0 : index
    %c0_165 = arith.constant 0 : index
    %220 = vector.load %arg1[%c3_163, %c0_164, %c0_165] : memref<4x16x128xf32, #tpu.memory_space<vmem>>, vector<1x1x128xf32>
    %221 = vector.shape_cast %220 : vector<1x1x128xf32> to vector<1x128xf32>
    %222 = arith.mulf %215, %213 : vector<1x128xf32>
    %223 = arith.mulf %217, %213 : vector<1x128xf32>
    %224 = arith.addf %222, %223 : vector<1x128xf32>
    %225 = arith.mulf %219, %213 : vector<1x128xf32>
    %226 = arith.addf %224, %225 : vector<1x128xf32>
    %227 = arith.mulf %221, %213 : vector<1x128xf32>
    %228 = arith.addf %226, %227 : vector<1x128xf32>
    %229 = arith.subf %5, %228 : vector<1x128xf32>
    %230 = arith.mulf %229, %37 : vector<1x128xf32>
    %cst_166 = arith.constant 0.000000e+00 : f32
    %231 = vector.broadcast %cst_166 : f32 to vector<1x128xf32>
    %232 = arith.minimumf %230, %231 : vector<1x128xf32>
    %233 = arith.mulf %232, %215 : vector<1x128xf32>
    %234 = arith.addf %213, %233 : vector<1x128xf32>
    %235 = arith.mulf %232, %217 : vector<1x128xf32>
    %236 = arith.addf %213, %235 : vector<1x128xf32>
    %237 = arith.mulf %232, %219 : vector<1x128xf32>
    %238 = arith.addf %213, %237 : vector<1x128xf32>
    %239 = arith.mulf %232, %221 : vector<1x128xf32>
    %240 = arith.addf %213, %239 : vector<1x128xf32>
    %c0_167 = arith.constant 0 : index
    %c1_168 = arith.constant 1 : index
    %c0_169 = arith.constant 0 : index
    %241 = vector.load %arg1[%c0_167, %c1_168, %c0_169] : memref<4x16x128xf32, #tpu.memory_space<vmem>>, vector<1x1x128xf32>
    %242 = vector.shape_cast %241 : vector<1x1x128xf32> to vector<1x128xf32>
    %c1_170 = arith.constant 1 : index
    %c1_171 = arith.constant 1 : index
    %c0_172 = arith.constant 0 : index
    %243 = vector.load %arg1[%c1_170, %c1_171, %c0_172] : memref<4x16x128xf32, #tpu.memory_space<vmem>>, vector<1x1x128xf32>
    %244 = vector.shape_cast %243 : vector<1x1x128xf32> to vector<1x128xf32>
    %c2_173 = arith.constant 2 : index
    %c1_174 = arith.constant 1 : index
    %c0_175 = arith.constant 0 : index
    %245 = vector.load %arg1[%c2_173, %c1_174, %c0_175] : memref<4x16x128xf32, #tpu.memory_space<vmem>>, vector<1x1x128xf32>
    %246 = vector.shape_cast %245 : vector<1x1x128xf32> to vector<1x128xf32>
    %c3_176 = arith.constant 3 : index
    %c1_177 = arith.constant 1 : index
    %c0_178 = arith.constant 0 : index
    %247 = vector.load %arg1[%c3_176, %c1_177, %c0_178] : memref<4x16x128xf32, #tpu.memory_space<vmem>>, vector<1x1x128xf32>
    %248 = vector.shape_cast %247 : vector<1x1x128xf32> to vector<1x128xf32>
    %249 = arith.mulf %242, %234 : vector<1x128xf32>
    %250 = arith.mulf %244, %236 : vector<1x128xf32>
    %251 = arith.addf %249, %250 : vector<1x128xf32>
    %252 = arith.mulf %246, %238 : vector<1x128xf32>
    %253 = arith.addf %251, %252 : vector<1x128xf32>
    %254 = arith.mulf %248, %240 : vector<1x128xf32>
    %255 = arith.addf %253, %254 : vector<1x128xf32>
    %256 = arith.subf %6, %255 : vector<1x128xf32>
    %257 = arith.mulf %256, %62 : vector<1x128xf32>
    %cst_179 = arith.constant 0.000000e+00 : f32
    %258 = vector.broadcast %cst_179 : f32 to vector<1x128xf32>
    %259 = arith.minimumf %257, %258 : vector<1x128xf32>
    %260 = arith.mulf %259, %242 : vector<1x128xf32>
    %261 = arith.addf %234, %260 : vector<1x128xf32>
    %262 = arith.mulf %259, %244 : vector<1x128xf32>
    %263 = arith.addf %236, %262 : vector<1x128xf32>
    %264 = arith.mulf %259, %246 : vector<1x128xf32>
    %265 = arith.addf %238, %264 : vector<1x128xf32>
    %266 = arith.mulf %259, %248 : vector<1x128xf32>
    %267 = arith.addf %240, %266 : vector<1x128xf32>
    %c0_180 = arith.constant 0 : index
    %c2_181 = arith.constant 2 : index
    %c0_182 = arith.constant 0 : index
    %268 = vector.load %arg1[%c0_180, %c2_181, %c0_182] : memref<4x16x128xf32, #tpu.memory_space<vmem>>, vector<1x1x128xf32>
    %269 = vector.shape_cast %268 : vector<1x1x128xf32> to vector<1x128xf32>
    %c1_183 = arith.constant 1 : index
    %c2_184 = arith.constant 2 : index
    %c0_185 = arith.constant 0 : index
    %270 = vector.load %arg1[%c1_183, %c2_184, %c0_185] : memref<4x16x128xf32, #tpu.memory_space<vmem>>, vector<1x1x128xf32>
    %271 = vector.shape_cast %270 : vector<1x1x128xf32> to vector<1x128xf32>
    %c2_186 = arith.constant 2 : index
    %c2_187 = arith.constant 2 : index
    %c0_188 = arith.constant 0 : index
    %272 = vector.load %arg1[%c2_186, %c2_187, %c0_188] : memref<4x16x128xf32, #tpu.memory_space<vmem>>, vector<1x1x128xf32>
    %273 = vector.shape_cast %272 : vector<1x1x128xf32> to vector<1x128xf32>
    %c3_189 = arith.constant 3 : index
    %c2_190 = arith.constant 2 : index
    %c0_191 = arith.constant 0 : index
    %274 = vector.load %arg1[%c3_189, %c2_190, %c0_191] : memref<4x16x128xf32, #tpu.memory_space<vmem>>, vector<1x1x128xf32>
    %275 = vector.shape_cast %274 : vector<1x1x128xf32> to vector<1x128xf32>
    %276 = arith.mulf %269, %261 : vector<1x128xf32>
    %277 = arith.mulf %271, %263 : vector<1x128xf32>
    %278 = arith.addf %276, %277 : vector<1x128xf32>
    %279 = arith.mulf %273, %265 : vector<1x128xf32>
    %280 = arith.addf %278, %279 : vector<1x128xf32>
    %281 = arith.mulf %275, %267 : vector<1x128xf32>
    %282 = arith.addf %280, %281 : vector<1x128xf32>
    %283 = arith.subf %7, %282 : vector<1x128xf32>
    %284 = arith.mulf %283, %87 : vector<1x128xf32>
    %cst_192 = arith.constant 0.000000e+00 : f32
    %285 = vector.broadcast %cst_192 : f32 to vector<1x128xf32>
    %286 = arith.minimumf %284, %285 : vector<1x128xf32>
    %287 = arith.mulf %286, %269 : vector<1x128xf32>
    %288 = arith.addf %261, %287 : vector<1x128xf32>
    %289 = arith.mulf %286, %271 : vector<1x128xf32>
    %290 = arith.addf %263, %289 : vector<1x128xf32>
    %291 = arith.mulf %286, %273 : vector<1x128xf32>
    %292 = arith.addf %265, %291 : vector<1x128xf32>
    %293 = arith.mulf %286, %275 : vector<1x128xf32>
    %294 = arith.addf %267, %293 : vector<1x128xf32>
    %c0_193 = arith.constant 0 : index
    %c3_194 = arith.constant 3 : index
    %c0_195 = arith.constant 0 : index
    %295 = vector.load %arg1[%c0_193, %c3_194, %c0_195] : memref<4x16x128xf32, #tpu.memory_space<vmem>>, vector<1x1x128xf32>
    %296 = vector.shape_cast %295 : vector<1x1x128xf32> to vector<1x128xf32>
    %c1_196 = arith.constant 1 : index
    %c3_197 = arith.constant 3 : index
    %c0_198 = arith.constant 0 : index
    %297 = vector.load %arg1[%c1_196, %c3_197, %c0_198] : memref<4x16x128xf32, #tpu.memory_space<vmem>>, vector<1x1x128xf32>
    %298 = vector.shape_cast %297 : vector<1x1x128xf32> to vector<1x128xf32>
    %c2_199 = arith.constant 2 : index
    %c3_200 = arith.constant 3 : index
    %c0_201 = arith.constant 0 : index
    %299 = vector.load %arg1[%c2_199, %c3_200, %c0_201] : memref<4x16x128xf32, #tpu.memory_space<vmem>>, vector<1x1x128xf32>
    %300 = vector.shape_cast %299 : vector<1x1x128xf32> to vector<1x128xf32>
    %c3_202 = arith.constant 3 : index
    %c3_203 = arith.constant 3 : index
    %c0_204 = arith.constant 0 : index
    %301 = vector.load %arg1[%c3_202, %c3_203, %c0_204] : memref<4x16x128xf32, #tpu.memory_space<vmem>>, vector<1x1x128xf32>
    %302 = vector.shape_cast %301 : vector<1x1x128xf32> to vector<1x128xf32>
    %303 = arith.mulf %296, %288 : vector<1x128xf32>
    %304 = arith.mulf %298, %290 : vector<1x128xf32>
    %305 = arith.addf %303, %304 : vector<1x128xf32>
    %306 = arith.mulf %300, %292 : vector<1x128xf32>
    %307 = arith.addf %305, %306 : vector<1x128xf32>
    %308 = arith.mulf %302, %294 : vector<1x128xf32>
    %309 = arith.addf %307, %308 : vector<1x128xf32>
    %310 = arith.subf %8, %309 : vector<1x128xf32>
    %311 = arith.mulf %310, %112 : vector<1x128xf32>
    %cst_205 = arith.constant 0.000000e+00 : f32
    %312 = vector.broadcast %cst_205 : f32 to vector<1x128xf32>
    %313 = arith.minimumf %311, %312 : vector<1x128xf32>
    %314 = arith.mulf %313, %296 : vector<1x128xf32>
    %315 = arith.addf %288, %314 : vector<1x128xf32>
    %316 = arith.mulf %313, %298 : vector<1x128xf32>
    %317 = arith.addf %290, %316 : vector<1x128xf32>
    %318 = arith.mulf %313, %300 : vector<1x128xf32>
    %319 = arith.addf %292, %318 : vector<1x128xf32>
    %320 = arith.mulf %313, %302 : vector<1x128xf32>
    %321 = arith.addf %294, %320 : vector<1x128xf32>
    %c0_206 = arith.constant 0 : index
    %c4_207 = arith.constant 4 : index
    %c0_208 = arith.constant 0 : index
    %322 = vector.load %arg1[%c0_206, %c4_207, %c0_208] : memref<4x16x128xf32, #tpu.memory_space<vmem>>, vector<1x1x128xf32>
    %323 = vector.shape_cast %322 : vector<1x1x128xf32> to vector<1x128xf32>
    %c1_209 = arith.constant 1 : index
    %c4_210 = arith.constant 4 : index
    %c0_211 = arith.constant 0 : index
    %324 = vector.load %arg1[%c1_209, %c4_210, %c0_211] : memref<4x16x128xf32, #tpu.memory_space<vmem>>, vector<1x1x128xf32>
    %325 = vector.shape_cast %324 : vector<1x1x128xf32> to vector<1x128xf32>
    %c2_212 = arith.constant 2 : index
    %c4_213 = arith.constant 4 : index
    %c0_214 = arith.constant 0 : index
    %326 = vector.load %arg1[%c2_212, %c4_213, %c0_214] : memref<4x16x128xf32, #tpu.memory_space<vmem>>, vector<1x1x128xf32>
    %327 = vector.shape_cast %326 : vector<1x1x128xf32> to vector<1x128xf32>
    %c3_215 = arith.constant 3 : index
    %c4_216 = arith.constant 4 : index
    %c0_217 = arith.constant 0 : index
    %328 = vector.load %arg1[%c3_215, %c4_216, %c0_217] : memref<4x16x128xf32, #tpu.memory_space<vmem>>, vector<1x1x128xf32>
    %329 = vector.shape_cast %328 : vector<1x1x128xf32> to vector<1x128xf32>
    %330 = arith.mulf %323, %315 : vector<1x128xf32>
    %331 = arith.mulf %325, %317 : vector<1x128xf32>
    %332 = arith.addf %330, %331 : vector<1x128xf32>
    %333 = arith.mulf %327, %319 : vector<1x128xf32>
    %334 = arith.addf %332, %333 : vector<1x128xf32>
    %335 = arith.mulf %329, %321 : vector<1x128xf32>
    %336 = arith.addf %334, %335 : vector<1x128xf32>
    %337 = arith.subf %9, %336 : vector<1x128xf32>
    %338 = arith.mulf %337, %137 : vector<1x128xf32>
    %cst_218 = arith.constant 0.000000e+00 : f32
    %339 = vector.broadcast %cst_218 : f32 to vector<1x128xf32>
    %340 = arith.minimumf %338, %339 : vector<1x128xf32>
    %341 = arith.mulf %340, %323 : vector<1x128xf32>
    %342 = arith.addf %315, %341 : vector<1x128xf32>
    %343 = arith.mulf %340, %325 : vector<1x128xf32>
    %344 = arith.addf %317, %343 : vector<1x128xf32>
    %345 = arith.mulf %340, %327 : vector<1x128xf32>
    %346 = arith.addf %319, %345 : vector<1x128xf32>
    %347 = arith.mulf %340, %329 : vector<1x128xf32>
    %348 = arith.addf %321, %347 : vector<1x128xf32>
    %c0_219 = arith.constant 0 : index
    %c5_220 = arith.constant 5 : index
    %c0_221 = arith.constant 0 : index
    %349 = vector.load %arg1[%c0_219, %c5_220, %c0_221] : memref<4x16x128xf32, #tpu.memory_space<vmem>>, vector<1x1x128xf32>
    %350 = vector.shape_cast %349 : vector<1x1x128xf32> to vector<1x128xf32>
    %c1_222 = arith.constant 1 : index
    %c5_223 = arith.constant 5 : index
    %c0_224 = arith.constant 0 : index
    %351 = vector.load %arg1[%c1_222, %c5_223, %c0_224] : memref<4x16x128xf32, #tpu.memory_space<vmem>>, vector<1x1x128xf32>
    %352 = vector.shape_cast %351 : vector<1x1x128xf32> to vector<1x128xf32>
    %c2_225 = arith.constant 2 : index
    %c5_226 = arith.constant 5 : index
    %c0_227 = arith.constant 0 : index
    %353 = vector.load %arg1[%c2_225, %c5_226, %c0_227] : memref<4x16x128xf32, #tpu.memory_space<vmem>>, vector<1x1x128xf32>
    %354 = vector.shape_cast %353 : vector<1x1x128xf32> to vector<1x128xf32>
    %c3_228 = arith.constant 3 : index
    %c5_229 = arith.constant 5 : index
    %c0_230 = arith.constant 0 : index
    %355 = vector.load %arg1[%c3_228, %c5_229, %c0_230] : memref<4x16x128xf32, #tpu.memory_space<vmem>>, vector<1x1x128xf32>
    %356 = vector.shape_cast %355 : vector<1x1x128xf32> to vector<1x128xf32>
    %357 = arith.mulf %350, %342 : vector<1x128xf32>
    %358 = arith.mulf %352, %344 : vector<1x128xf32>
    %359 = arith.addf %357, %358 : vector<1x128xf32>
    %360 = arith.mulf %354, %346 : vector<1x128xf32>
    %361 = arith.addf %359, %360 : vector<1x128xf32>
    %362 = arith.mulf %356, %348 : vector<1x128xf32>
    %363 = arith.addf %361, %362 : vector<1x128xf32>
    %364 = arith.subf %10, %363 : vector<1x128xf32>
    %365 = arith.mulf %364, %162 : vector<1x128xf32>
    %cst_231 = arith.constant 0.000000e+00 : f32
    %366 = vector.broadcast %cst_231 : f32 to vector<1x128xf32>
    %367 = arith.minimumf %365, %366 : vector<1x128xf32>
    %368 = arith.mulf %367, %350 : vector<1x128xf32>
    %369 = arith.addf %342, %368 : vector<1x128xf32>
    %370 = arith.mulf %367, %352 : vector<1x128xf32>
    %371 = arith.addf %344, %370 : vector<1x128xf32>
    %372 = arith.mulf %367, %354 : vector<1x128xf32>
    %373 = arith.addf %346, %372 : vector<1x128xf32>
    %374 = arith.mulf %367, %356 : vector<1x128xf32>
    %375 = arith.addf %348, %374 : vector<1x128xf32>
    %c0_232 = arith.constant 0 : index
    %c6_233 = arith.constant 6 : index
    %c0_234 = arith.constant 0 : index
    %376 = vector.load %arg1[%c0_232, %c6_233, %c0_234] : memref<4x16x128xf32, #tpu.memory_space<vmem>>, vector<1x1x128xf32>
    %377 = vector.shape_cast %376 : vector<1x1x128xf32> to vector<1x128xf32>
    %c1_235 = arith.constant 1 : index
    %c6_236 = arith.constant 6 : index
    %c0_237 = arith.constant 0 : index
    %378 = vector.load %arg1[%c1_235, %c6_236, %c0_237] : memref<4x16x128xf32, #tpu.memory_space<vmem>>, vector<1x1x128xf32>
    %379 = vector.shape_cast %378 : vector<1x1x128xf32> to vector<1x128xf32>
    %c2_238 = arith.constant 2 : index
    %c6_239 = arith.constant 6 : index
    %c0_240 = arith.constant 0 : index
    %380 = vector.load %arg1[%c2_238, %c6_239, %c0_240] : memref<4x16x128xf32, #tpu.memory_space<vmem>>, vector<1x1x128xf32>
    %381 = vector.shape_cast %380 : vector<1x1x128xf32> to vector<1x128xf32>
    %c3_241 = arith.constant 3 : index
    %c6_242 = arith.constant 6 : index
    %c0_243 = arith.constant 0 : index
    %382 = vector.load %arg1[%c3_241, %c6_242, %c0_243] : memref<4x16x128xf32, #tpu.memory_space<vmem>>, vector<1x1x128xf32>
    %383 = vector.shape_cast %382 : vector<1x1x128xf32> to vector<1x128xf32>
    %384 = arith.mulf %377, %369 : vector<1x128xf32>
    %385 = arith.mulf %379, %371 : vector<1x128xf32>
    %386 = arith.addf %384, %385 : vector<1x128xf32>
    %387 = arith.mulf %381, %373 : vector<1x128xf32>
    %388 = arith.addf %386, %387 : vector<1x128xf32>
    %389 = arith.mulf %383, %375 : vector<1x128xf32>
    %390 = arith.addf %388, %389 : vector<1x128xf32>
    %391 = arith.subf %11, %390 : vector<1x128xf32>
    %392 = arith.mulf %391, %187 : vector<1x128xf32>
    %cst_244 = arith.constant 0.000000e+00 : f32
    %393 = vector.broadcast %cst_244 : f32 to vector<1x128xf32>
    %394 = arith.minimumf %392, %393 : vector<1x128xf32>
    %395 = arith.mulf %394, %377 : vector<1x128xf32>
    %396 = arith.addf %369, %395 : vector<1x128xf32>
    %397 = arith.mulf %394, %379 : vector<1x128xf32>
    %398 = arith.addf %371, %397 : vector<1x128xf32>
    %399 = arith.mulf %394, %381 : vector<1x128xf32>
    %400 = arith.addf %373, %399 : vector<1x128xf32>
    %401 = arith.mulf %394, %383 : vector<1x128xf32>
    %402 = arith.addf %375, %401 : vector<1x128xf32>
    %c0_245 = arith.constant 0 : index
    %c7_246 = arith.constant 7 : index
    %c0_247 = arith.constant 0 : index
    %403 = vector.load %arg1[%c0_245, %c7_246, %c0_247] : memref<4x16x128xf32, #tpu.memory_space<vmem>>, vector<1x1x128xf32>
    %404 = vector.shape_cast %403 : vector<1x1x128xf32> to vector<1x128xf32>
    %c1_248 = arith.constant 1 : index
    %c7_249 = arith.constant 7 : index
    %c0_250 = arith.constant 0 : index
    %405 = vector.load %arg1[%c1_248, %c7_249, %c0_250] : memref<4x16x128xf32, #tpu.memory_space<vmem>>, vector<1x1x128xf32>
    %406 = vector.shape_cast %405 : vector<1x1x128xf32> to vector<1x128xf32>
    %c2_251 = arith.constant 2 : index
    %c7_252 = arith.constant 7 : index
    %c0_253 = arith.constant 0 : index
    %407 = vector.load %arg1[%c2_251, %c7_252, %c0_253] : memref<4x16x128xf32, #tpu.memory_space<vmem>>, vector<1x1x128xf32>
    %408 = vector.shape_cast %407 : vector<1x1x128xf32> to vector<1x128xf32>
    %c3_254 = arith.constant 3 : index
    %c7_255 = arith.constant 7 : index
    %c0_256 = arith.constant 0 : index
    %409 = vector.load %arg1[%c3_254, %c7_255, %c0_256] : memref<4x16x128xf32, #tpu.memory_space<vmem>>, vector<1x1x128xf32>
    %410 = vector.shape_cast %409 : vector<1x1x128xf32> to vector<1x128xf32>
    %411 = arith.mulf %404, %396 : vector<1x128xf32>
    %412 = arith.mulf %406, %398 : vector<1x128xf32>
    %413 = arith.addf %411, %412 : vector<1x128xf32>
    %414 = arith.mulf %408, %400 : vector<1x128xf32>
    %415 = arith.addf %413, %414 : vector<1x128xf32>
    %416 = arith.mulf %410, %402 : vector<1x128xf32>
    %417 = arith.addf %415, %416 : vector<1x128xf32>
    %418 = arith.subf %12, %417 : vector<1x128xf32>
    %419 = arith.mulf %418, %212 : vector<1x128xf32>
    %cst_257 = arith.constant 0.000000e+00 : f32
    %420 = vector.broadcast %cst_257 : f32 to vector<1x128xf32>
    %421 = arith.minimumf %419, %420 : vector<1x128xf32>
    %422 = arith.mulf %421, %404 : vector<1x128xf32>
    %423 = arith.addf %396, %422 : vector<1x128xf32>
    %424 = arith.mulf %421, %406 : vector<1x128xf32>
    %425 = arith.addf %398, %424 : vector<1x128xf32>
    %426 = arith.mulf %421, %408 : vector<1x128xf32>
    %427 = arith.addf %400, %426 : vector<1x128xf32>
    %428 = arith.mulf %421, %410 : vector<1x128xf32>
    %429 = arith.addf %402, %428 : vector<1x128xf32>
    %c0_258 = arith.constant 0 : index
    %c0_259 = arith.constant 0 : index
    %c0_260 = arith.constant 0 : index
    %430 = vector.load %arg1[%c0_258, %c0_259, %c0_260] : memref<4x16x128xf32, #tpu.memory_space<vmem>>, vector<1x1x128xf32>
    %431 = vector.shape_cast %430 : vector<1x1x128xf32> to vector<1x128xf32>
    %c1_261 = arith.constant 1 : index
    %c0_262 = arith.constant 0 : index
    %c0_263 = arith.constant 0 : index
    %432 = vector.load %arg1[%c1_261, %c0_262, %c0_263] : memref<4x16x128xf32, #tpu.memory_space<vmem>>, vector<1x1x128xf32>
    %433 = vector.shape_cast %432 : vector<1x1x128xf32> to vector<1x128xf32>
    %c2_264 = arith.constant 2 : index
    %c0_265 = arith.constant 0 : index
    %c0_266 = arith.constant 0 : index
    %434 = vector.load %arg1[%c2_264, %c0_265, %c0_266] : memref<4x16x128xf32, #tpu.memory_space<vmem>>, vector<1x1x128xf32>
    %435 = vector.shape_cast %434 : vector<1x1x128xf32> to vector<1x128xf32>
    %c3_267 = arith.constant 3 : index
    %c0_268 = arith.constant 0 : index
    %c0_269 = arith.constant 0 : index
    %436 = vector.load %arg1[%c3_267, %c0_268, %c0_269] : memref<4x16x128xf32, #tpu.memory_space<vmem>>, vector<1x1x128xf32>
    %437 = vector.shape_cast %436 : vector<1x1x128xf32> to vector<1x128xf32>
    %438 = arith.mulf %431, %423 : vector<1x128xf32>
    %439 = arith.mulf %433, %425 : vector<1x128xf32>
    %440 = arith.addf %438, %439 : vector<1x128xf32>
    %441 = arith.mulf %435, %427 : vector<1x128xf32>
    %442 = arith.addf %440, %441 : vector<1x128xf32>
    %443 = arith.mulf %437, %429 : vector<1x128xf32>
    %444 = arith.addf %442, %443 : vector<1x128xf32>
    %445 = arith.subf %5, %444 : vector<1x128xf32>
    %446 = arith.mulf %445, %37 : vector<1x128xf32>
    %cst_270 = arith.constant 0.000000e+00 : f32
    %447 = vector.broadcast %cst_270 : f32 to vector<1x128xf32>
    %448 = arith.minimumf %446, %447 : vector<1x128xf32>
    %449 = arith.mulf %448, %431 : vector<1x128xf32>
    %450 = arith.addf %423, %449 : vector<1x128xf32>
    %451 = arith.mulf %448, %433 : vector<1x128xf32>
    %452 = arith.addf %425, %451 : vector<1x128xf32>
    %453 = arith.mulf %448, %435 : vector<1x128xf32>
    %454 = arith.addf %427, %453 : vector<1x128xf32>
    %455 = arith.mulf %448, %437 : vector<1x128xf32>
    %456 = arith.addf %429, %455 : vector<1x128xf32>
    %c0_271 = arith.constant 0 : index
    %c1_272 = arith.constant 1 : index
    %c0_273 = arith.constant 0 : index
    %457 = vector.load %arg1[%c0_271, %c1_272, %c0_273] : memref<4x16x128xf32, #tpu.memory_space<vmem>>, vector<1x1x128xf32>
    %458 = vector.shape_cast %457 : vector<1x1x128xf32> to vector<1x128xf32>
    %c1_274 = arith.constant 1 : index
    %c1_275 = arith.constant 1 : index
    %c0_276 = arith.constant 0 : index
    %459 = vector.load %arg1[%c1_274, %c1_275, %c0_276] : memref<4x16x128xf32, #tpu.memory_space<vmem>>, vector<1x1x128xf32>
    %460 = vector.shape_cast %459 : vector<1x1x128xf32> to vector<1x128xf32>
    %c2_277 = arith.constant 2 : index
    %c1_278 = arith.constant 1 : index
    %c0_279 = arith.constant 0 : index
    %461 = vector.load %arg1[%c2_277, %c1_278, %c0_279] : memref<4x16x128xf32, #tpu.memory_space<vmem>>, vector<1x1x128xf32>
    %462 = vector.shape_cast %461 : vector<1x1x128xf32> to vector<1x128xf32>
    %c3_280 = arith.constant 3 : index
    %c1_281 = arith.constant 1 : index
    %c0_282 = arith.constant 0 : index
    %463 = vector.load %arg1[%c3_280, %c1_281, %c0_282] : memref<4x16x128xf32, #tpu.memory_space<vmem>>, vector<1x1x128xf32>
    %464 = vector.shape_cast %463 : vector<1x1x128xf32> to vector<1x128xf32>
    %465 = arith.mulf %458, %450 : vector<1x128xf32>
    %466 = arith.mulf %460, %452 : vector<1x128xf32>
    %467 = arith.addf %465, %466 : vector<1x128xf32>
    %468 = arith.mulf %462, %454 : vector<1x128xf32>
    %469 = arith.addf %467, %468 : vector<1x128xf32>
    %470 = arith.mulf %464, %456 : vector<1x128xf32>
    %471 = arith.addf %469, %470 : vector<1x128xf32>
    %472 = arith.subf %6, %471 : vector<1x128xf32>
    %473 = arith.mulf %472, %62 : vector<1x128xf32>
    %cst_283 = arith.constant 0.000000e+00 : f32
    %474 = vector.broadcast %cst_283 : f32 to vector<1x128xf32>
    %475 = arith.minimumf %473, %474 : vector<1x128xf32>
    %476 = arith.mulf %475, %458 : vector<1x128xf32>
    %477 = arith.addf %450, %476 : vector<1x128xf32>
    %478 = arith.mulf %475, %460 : vector<1x128xf32>
    %479 = arith.addf %452, %478 : vector<1x128xf32>
    %480 = arith.mulf %475, %462 : vector<1x128xf32>
    %481 = arith.addf %454, %480 : vector<1x128xf32>
    %482 = arith.mulf %475, %464 : vector<1x128xf32>
    %483 = arith.addf %456, %482 : vector<1x128xf32>
    %c0_284 = arith.constant 0 : index
    %c2_285 = arith.constant 2 : index
    %c0_286 = arith.constant 0 : index
    %484 = vector.load %arg1[%c0_284, %c2_285, %c0_286] : memref<4x16x128xf32, #tpu.memory_space<vmem>>, vector<1x1x128xf32>
    %485 = vector.shape_cast %484 : vector<1x1x128xf32> to vector<1x128xf32>
    %c1_287 = arith.constant 1 : index
    %c2_288 = arith.constant 2 : index
    %c0_289 = arith.constant 0 : index
    %486 = vector.load %arg1[%c1_287, %c2_288, %c0_289] : memref<4x16x128xf32, #tpu.memory_space<vmem>>, vector<1x1x128xf32>
    %487 = vector.shape_cast %486 : vector<1x1x128xf32> to vector<1x128xf32>
    %c2_290 = arith.constant 2 : index
    %c2_291 = arith.constant 2 : index
    %c0_292 = arith.constant 0 : index
    %488 = vector.load %arg1[%c2_290, %c2_291, %c0_292] : memref<4x16x128xf32, #tpu.memory_space<vmem>>, vector<1x1x128xf32>
    %489 = vector.shape_cast %488 : vector<1x1x128xf32> to vector<1x128xf32>
    %c3_293 = arith.constant 3 : index
    %c2_294 = arith.constant 2 : index
    %c0_295 = arith.constant 0 : index
    %490 = vector.load %arg1[%c3_293, %c2_294, %c0_295] : memref<4x16x128xf32, #tpu.memory_space<vmem>>, vector<1x1x128xf32>
    %491 = vector.shape_cast %490 : vector<1x1x128xf32> to vector<1x128xf32>
    %492 = arith.mulf %485, %477 : vector<1x128xf32>
    %493 = arith.mulf %487, %479 : vector<1x128xf32>
    %494 = arith.addf %492, %493 : vector<1x128xf32>
    %495 = arith.mulf %489, %481 : vector<1x128xf32>
    %496 = arith.addf %494, %495 : vector<1x128xf32>
    %497 = arith.mulf %491, %483 : vector<1x128xf32>
    %498 = arith.addf %496, %497 : vector<1x128xf32>
    %499 = arith.subf %7, %498 : vector<1x128xf32>
    %500 = arith.mulf %499, %87 : vector<1x128xf32>
    %cst_296 = arith.constant 0.000000e+00 : f32
    %501 = vector.broadcast %cst_296 : f32 to vector<1x128xf32>
    %502 = arith.minimumf %500, %501 : vector<1x128xf32>
    %503 = arith.mulf %502, %485 : vector<1x128xf32>
    %504 = arith.addf %477, %503 : vector<1x128xf32>
    %505 = arith.mulf %502, %487 : vector<1x128xf32>
    %506 = arith.addf %479, %505 : vector<1x128xf32>
    %507 = arith.mulf %502, %489 : vector<1x128xf32>
    %508 = arith.addf %481, %507 : vector<1x128xf32>
    %509 = arith.mulf %502, %491 : vector<1x128xf32>
    %510 = arith.addf %483, %509 : vector<1x128xf32>
    %c0_297 = arith.constant 0 : index
    %c3_298 = arith.constant 3 : index
    %c0_299 = arith.constant 0 : index
    %511 = vector.load %arg1[%c0_297, %c3_298, %c0_299] : memref<4x16x128xf32, #tpu.memory_space<vmem>>, vector<1x1x128xf32>
    %512 = vector.shape_cast %511 : vector<1x1x128xf32> to vector<1x128xf32>
    %c1_300 = arith.constant 1 : index
    %c3_301 = arith.constant 3 : index
    %c0_302 = arith.constant 0 : index
    %513 = vector.load %arg1[%c1_300, %c3_301, %c0_302] : memref<4x16x128xf32, #tpu.memory_space<vmem>>, vector<1x1x128xf32>
    %514 = vector.shape_cast %513 : vector<1x1x128xf32> to vector<1x128xf32>
    %c2_303 = arith.constant 2 : index
    %c3_304 = arith.constant 3 : index
    %c0_305 = arith.constant 0 : index
    %515 = vector.load %arg1[%c2_303, %c3_304, %c0_305] : memref<4x16x128xf32, #tpu.memory_space<vmem>>, vector<1x1x128xf32>
    %516 = vector.shape_cast %515 : vector<1x1x128xf32> to vector<1x128xf32>
    %c3_306 = arith.constant 3 : index
    %c3_307 = arith.constant 3 : index
    %c0_308 = arith.constant 0 : index
    %517 = vector.load %arg1[%c3_306, %c3_307, %c0_308] : memref<4x16x128xf32, #tpu.memory_space<vmem>>, vector<1x1x128xf32>
    %518 = vector.shape_cast %517 : vector<1x1x128xf32> to vector<1x128xf32>
    %519 = arith.mulf %512, %504 : vector<1x128xf32>
    %520 = arith.mulf %514, %506 : vector<1x128xf32>
    %521 = arith.addf %519, %520 : vector<1x128xf32>
    %522 = arith.mulf %516, %508 : vector<1x128xf32>
    %523 = arith.addf %521, %522 : vector<1x128xf32>
    %524 = arith.mulf %518, %510 : vector<1x128xf32>
    %525 = arith.addf %523, %524 : vector<1x128xf32>
    %526 = arith.subf %8, %525 : vector<1x128xf32>
    %527 = arith.mulf %526, %112 : vector<1x128xf32>
    %cst_309 = arith.constant 0.000000e+00 : f32
    %528 = vector.broadcast %cst_309 : f32 to vector<1x128xf32>
    %529 = arith.minimumf %527, %528 : vector<1x128xf32>
    %530 = arith.mulf %529, %512 : vector<1x128xf32>
    %531 = arith.addf %504, %530 : vector<1x128xf32>
    %532 = arith.mulf %529, %514 : vector<1x128xf32>
    %533 = arith.addf %506, %532 : vector<1x128xf32>
    %534 = arith.mulf %529, %516 : vector<1x128xf32>
    %535 = arith.addf %508, %534 : vector<1x128xf32>
    %536 = arith.mulf %529, %518 : vector<1x128xf32>
    %537 = arith.addf %510, %536 : vector<1x128xf32>
    %c0_310 = arith.constant 0 : index
    %c4_311 = arith.constant 4 : index
    %c0_312 = arith.constant 0 : index
    %538 = vector.load %arg1[%c0_310, %c4_311, %c0_312] : memref<4x16x128xf32, #tpu.memory_space<vmem>>, vector<1x1x128xf32>
    %539 = vector.shape_cast %538 : vector<1x1x128xf32> to vector<1x128xf32>
    %c1_313 = arith.constant 1 : index
    %c4_314 = arith.constant 4 : index
    %c0_315 = arith.constant 0 : index
    %540 = vector.load %arg1[%c1_313, %c4_314, %c0_315] : memref<4x16x128xf32, #tpu.memory_space<vmem>>, vector<1x1x128xf32>
    %541 = vector.shape_cast %540 : vector<1x1x128xf32> to vector<1x128xf32>
    %c2_316 = arith.constant 2 : index
    %c4_317 = arith.constant 4 : index
    %c0_318 = arith.constant 0 : index
    %542 = vector.load %arg1[%c2_316, %c4_317, %c0_318] : memref<4x16x128xf32, #tpu.memory_space<vmem>>, vector<1x1x128xf32>
    %543 = vector.shape_cast %542 : vector<1x1x128xf32> to vector<1x128xf32>
    %c3_319 = arith.constant 3 : index
    %c4_320 = arith.constant 4 : index
    %c0_321 = arith.constant 0 : index
    %544 = vector.load %arg1[%c3_319, %c4_320, %c0_321] : memref<4x16x128xf32, #tpu.memory_space<vmem>>, vector<1x1x128xf32>
    %545 = vector.shape_cast %544 : vector<1x1x128xf32> to vector<1x128xf32>
    %546 = arith.mulf %539, %531 : vector<1x128xf32>
    %547 = arith.mulf %541, %533 : vector<1x128xf32>
    %548 = arith.addf %546, %547 : vector<1x128xf32>
    %549 = arith.mulf %543, %535 : vector<1x128xf32>
    %550 = arith.addf %548, %549 : vector<1x128xf32>
    %551 = arith.mulf %545, %537 : vector<1x128xf32>
    %552 = arith.addf %550, %551 : vector<1x128xf32>
    %553 = arith.subf %9, %552 : vector<1x128xf32>
    %554 = arith.mulf %553, %137 : vector<1x128xf32>
    %cst_322 = arith.constant 0.000000e+00 : f32
    %555 = vector.broadcast %cst_322 : f32 to vector<1x128xf32>
    %556 = arith.minimumf %554, %555 : vector<1x128xf32>
    %557 = arith.mulf %556, %539 : vector<1x128xf32>
    %558 = arith.addf %531, %557 : vector<1x128xf32>
    %559 = arith.mulf %556, %541 : vector<1x128xf32>
    %560 = arith.addf %533, %559 : vector<1x128xf32>
    %561 = arith.mulf %556, %543 : vector<1x128xf32>
    %562 = arith.addf %535, %561 : vector<1x128xf32>
    %563 = arith.mulf %556, %545 : vector<1x128xf32>
    %564 = arith.addf %537, %563 : vector<1x128xf32>
    %c0_323 = arith.constant 0 : index
    %c5_324 = arith.constant 5 : index
    %c0_325 = arith.constant 0 : index
    %565 = vector.load %arg1[%c0_323, %c5_324, %c0_325] : memref<4x16x128xf32, #tpu.memory_space<vmem>>, vector<1x1x128xf32>
    %566 = vector.shape_cast %565 : vector<1x1x128xf32> to vector<1x128xf32>
    %c1_326 = arith.constant 1 : index
    %c5_327 = arith.constant 5 : index
    %c0_328 = arith.constant 0 : index
    %567 = vector.load %arg1[%c1_326, %c5_327, %c0_328] : memref<4x16x128xf32, #tpu.memory_space<vmem>>, vector<1x1x128xf32>
    %568 = vector.shape_cast %567 : vector<1x1x128xf32> to vector<1x128xf32>
    %c2_329 = arith.constant 2 : index
    %c5_330 = arith.constant 5 : index
    %c0_331 = arith.constant 0 : index
    %569 = vector.load %arg1[%c2_329, %c5_330, %c0_331] : memref<4x16x128xf32, #tpu.memory_space<vmem>>, vector<1x1x128xf32>
    %570 = vector.shape_cast %569 : vector<1x1x128xf32> to vector<1x128xf32>
    %c3_332 = arith.constant 3 : index
    %c5_333 = arith.constant 5 : index
    %c0_334 = arith.constant 0 : index
    %571 = vector.load %arg1[%c3_332, %c5_333, %c0_334] : memref<4x16x128xf32, #tpu.memory_space<vmem>>, vector<1x1x128xf32>
    %572 = vector.shape_cast %571 : vector<1x1x128xf32> to vector<1x128xf32>
    %573 = arith.mulf %566, %558 : vector<1x128xf32>
    %574 = arith.mulf %568, %560 : vector<1x128xf32>
    %575 = arith.addf %573, %574 : vector<1x128xf32>
    %576 = arith.mulf %570, %562 : vector<1x128xf32>
    %577 = arith.addf %575, %576 : vector<1x128xf32>
    %578 = arith.mulf %572, %564 : vector<1x128xf32>
    %579 = arith.addf %577, %578 : vector<1x128xf32>
    %580 = arith.subf %10, %579 : vector<1x128xf32>
    %581 = arith.mulf %580, %162 : vector<1x128xf32>
    %cst_335 = arith.constant 0.000000e+00 : f32
    %582 = vector.broadcast %cst_335 : f32 to vector<1x128xf32>
    %583 = arith.minimumf %581, %582 : vector<1x128xf32>
    %584 = arith.mulf %583, %566 : vector<1x128xf32>
    %585 = arith.addf %558, %584 : vector<1x128xf32>
    %586 = arith.mulf %583, %568 : vector<1x128xf32>
    %587 = arith.addf %560, %586 : vector<1x128xf32>
    %588 = arith.mulf %583, %570 : vector<1x128xf32>
    %589 = arith.addf %562, %588 : vector<1x128xf32>
    %590 = arith.mulf %583, %572 : vector<1x128xf32>
    %591 = arith.addf %564, %590 : vector<1x128xf32>
    %c0_336 = arith.constant 0 : index
    %c6_337 = arith.constant 6 : index
    %c0_338 = arith.constant 0 : index
    %592 = vector.load %arg1[%c0_336, %c6_337, %c0_338] : memref<4x16x128xf32, #tpu.memory_space<vmem>>, vector<1x1x128xf32>
    %593 = vector.shape_cast %592 : vector<1x1x128xf32> to vector<1x128xf32>
    %c1_339 = arith.constant 1 : index
    %c6_340 = arith.constant 6 : index
    %c0_341 = arith.constant 0 : index
    %594 = vector.load %arg1[%c1_339, %c6_340, %c0_341] : memref<4x16x128xf32, #tpu.memory_space<vmem>>, vector<1x1x128xf32>
    %595 = vector.shape_cast %594 : vector<1x1x128xf32> to vector<1x128xf32>
    %c2_342 = arith.constant 2 : index
    %c6_343 = arith.constant 6 : index
    %c0_344 = arith.constant 0 : index
    %596 = vector.load %arg1[%c2_342, %c6_343, %c0_344] : memref<4x16x128xf32, #tpu.memory_space<vmem>>, vector<1x1x128xf32>
    %597 = vector.shape_cast %596 : vector<1x1x128xf32> to vector<1x128xf32>
    %c3_345 = arith.constant 3 : index
    %c6_346 = arith.constant 6 : index
    %c0_347 = arith.constant 0 : index
    %598 = vector.load %arg1[%c3_345, %c6_346, %c0_347] : memref<4x16x128xf32, #tpu.memory_space<vmem>>, vector<1x1x128xf32>
    %599 = vector.shape_cast %598 : vector<1x1x128xf32> to vector<1x128xf32>
    %600 = arith.mulf %593, %585 : vector<1x128xf32>
    %601 = arith.mulf %595, %587 : vector<1x128xf32>
    %602 = arith.addf %600, %601 : vector<1x128xf32>
    %603 = arith.mulf %597, %589 : vector<1x128xf32>
    %604 = arith.addf %602, %603 : vector<1x128xf32>
    %605 = arith.mulf %599, %591 : vector<1x128xf32>
    %606 = arith.addf %604, %605 : vector<1x128xf32>
    %607 = arith.subf %11, %606 : vector<1x128xf32>
    %608 = arith.mulf %607, %187 : vector<1x128xf32>
    %cst_348 = arith.constant 0.000000e+00 : f32
    %609 = vector.broadcast %cst_348 : f32 to vector<1x128xf32>
    %610 = arith.minimumf %608, %609 : vector<1x128xf32>
    %611 = arith.mulf %610, %593 : vector<1x128xf32>
    %612 = arith.addf %585, %611 : vector<1x128xf32>
    %613 = arith.mulf %610, %595 : vector<1x128xf32>
    %614 = arith.addf %587, %613 : vector<1x128xf32>
    %615 = arith.mulf %610, %597 : vector<1x128xf32>
    %616 = arith.addf %589, %615 : vector<1x128xf32>
    %617 = arith.mulf %610, %599 : vector<1x128xf32>
    %618 = arith.addf %591, %617 : vector<1x128xf32>
    %c0_349 = arith.constant 0 : index
    %c7_350 = arith.constant 7 : index
    %c0_351 = arith.constant 0 : index
    %619 = vector.load %arg1[%c0_349, %c7_350, %c0_351] : memref<4x16x128xf32, #tpu.memory_space<vmem>>, vector<1x1x128xf32>
    %620 = vector.shape_cast %619 : vector<1x1x128xf32> to vector<1x128xf32>
    %c1_352 = arith.constant 1 : index
    %c7_353 = arith.constant 7 : index
    %c0_354 = arith.constant 0 : index
    %621 = vector.load %arg1[%c1_352, %c7_353, %c0_354] : memref<4x16x128xf32, #tpu.memory_space<vmem>>, vector<1x1x128xf32>
    %622 = vector.shape_cast %621 : vector<1x1x128xf32> to vector<1x128xf32>
    %c2_355 = arith.constant 2 : index
    %c7_356 = arith.constant 7 : index
    %c0_357 = arith.constant 0 : index
    %623 = vector.load %arg1[%c2_355, %c7_356, %c0_357] : memref<4x16x128xf32, #tpu.memory_space<vmem>>, vector<1x1x128xf32>
    %624 = vector.shape_cast %623 : vector<1x1x128xf32> to vector<1x128xf32>
    %c3_358 = arith.constant 3 : index
    %c7_359 = arith.constant 7 : index
    %c0_360 = arith.constant 0 : index
    %625 = vector.load %arg1[%c3_358, %c7_359, %c0_360] : memref<4x16x128xf32, #tpu.memory_space<vmem>>, vector<1x1x128xf32>
    %626 = vector.shape_cast %625 : vector<1x1x128xf32> to vector<1x128xf32>
    %627 = arith.mulf %620, %612 : vector<1x128xf32>
    %628 = arith.mulf %622, %614 : vector<1x128xf32>
    %629 = arith.addf %627, %628 : vector<1x128xf32>
    %630 = arith.mulf %624, %616 : vector<1x128xf32>
    %631 = arith.addf %629, %630 : vector<1x128xf32>
    %632 = arith.mulf %626, %618 : vector<1x128xf32>
    %633 = arith.addf %631, %632 : vector<1x128xf32>
    %634 = arith.subf %12, %633 : vector<1x128xf32>
    %635 = arith.mulf %634, %212 : vector<1x128xf32>
    %cst_361 = arith.constant 0.000000e+00 : f32
    %636 = vector.broadcast %cst_361 : f32 to vector<1x128xf32>
    %637 = arith.minimumf %635, %636 : vector<1x128xf32>
    %638 = arith.mulf %637, %620 : vector<1x128xf32>
    %639 = arith.addf %612, %638 : vector<1x128xf32>
    %640 = arith.mulf %637, %622 : vector<1x128xf32>
    %641 = arith.addf %614, %640 : vector<1x128xf32>
    %642 = arith.mulf %637, %624 : vector<1x128xf32>
    %643 = arith.addf %616, %642 : vector<1x128xf32>
    %644 = arith.mulf %637, %626 : vector<1x128xf32>
    %645 = arith.addf %618, %644 : vector<1x128xf32>
    %c0_362 = arith.constant 0 : index
    %c0_363 = arith.constant 0 : index
    %c0_364 = arith.constant 0 : index
    %646 = vector.load %arg1[%c0_362, %c0_363, %c0_364] : memref<4x16x128xf32, #tpu.memory_space<vmem>>, vector<1x16x128xf32>
    %647 = vector.shape_cast %646 : vector<1x16x128xf32> to vector<16x128xf32>
    %c1_365 = arith.constant 1 : index
    %c0_366 = arith.constant 0 : index
    %c0_367 = arith.constant 0 : index
    %648 = vector.load %arg1[%c1_365, %c0_366, %c0_367] : memref<4x16x128xf32, #tpu.memory_space<vmem>>, vector<1x16x128xf32>
    %649 = vector.shape_cast %648 : vector<1x16x128xf32> to vector<16x128xf32>
    %c2_368 = arith.constant 2 : index
    %c0_369 = arith.constant 0 : index
    %c0_370 = arith.constant 0 : index
    %650 = vector.load %arg1[%c2_368, %c0_369, %c0_370] : memref<4x16x128xf32, #tpu.memory_space<vmem>>, vector<1x16x128xf32>
    %651 = vector.shape_cast %650 : vector<1x16x128xf32> to vector<16x128xf32>
    %c3_371 = arith.constant 3 : index
    %c0_372 = arith.constant 0 : index
    %c0_373 = arith.constant 0 : index
    %652 = vector.load %arg1[%c3_371, %c0_372, %c0_373] : memref<4x16x128xf32, #tpu.memory_space<vmem>>, vector<1x16x128xf32>
    %653 = vector.shape_cast %652 : vector<1x16x128xf32> to vector<16x128xf32>
    %654 = math.absf %647 : vector<16x128xf32>
    %655 = vector.broadcast %639 : vector<1x128xf32> to vector<16x128xf32>
    %656 = arith.mulf %647, %655 : vector<16x128xf32>
    %657 = math.absf %649 : vector<16x128xf32>
    %658 = arith.addf %654, %657 : vector<16x128xf32>
    %659 = vector.broadcast %641 : vector<1x128xf32> to vector<16x128xf32>
    %660 = arith.mulf %649, %659 : vector<16x128xf32>
    %661 = arith.addf %656, %660 : vector<16x128xf32>
    %662 = math.absf %651 : vector<16x128xf32>
    %663 = arith.addf %658, %662 : vector<16x128xf32>
    %664 = vector.broadcast %643 : vector<1x128xf32> to vector<16x128xf32>
    %665 = arith.mulf %651, %664 : vector<16x128xf32>
    %666 = arith.addf %661, %665 : vector<16x128xf32>
    %667 = math.absf %653 : vector<16x128xf32>
    %668 = arith.addf %663, %667 : vector<16x128xf32>
    %669 = vector.broadcast %645 : vector<1x128xf32> to vector<16x128xf32>
    %670 = arith.mulf %653, %669 : vector<16x128xf32>
    %671 = arith.addf %666, %670 : vector<16x128xf32>
    %672 = arith.subf %0, %671 : vector<16x128xf32>
    %cst_374 = arith.constant 0.000000e+00 : f32
    %673 = vector.broadcast %cst_374 : f32 to vector<16x128xf32>
    %674 = arith.cmpf ogt, %668, %673 : vector<16x128xf32>
    %675 = math.absf %672 : vector<16x128xf32>
    %cst_375 = arith.constant 0.000000e+00 : f32
    %676 = vector.broadcast %cst_375 : f32 to vector<16x128xf32>
    %677 = arith.cmpf ogt, %668, %676 : vector<16x128xf32>
    %cst_376 = arith.constant 1.000000e+00 : f32
    %678 = vector.broadcast %cst_376 : f32 to vector<16x128xf32>
    %679 = arith.select %677, %668, %678 : vector<16x128xi1>, vector<16x128xf32>
    %680 = arith.divf %675, %679 : vector<16x128xf32>
    %cst_377 = arith.constant 0x7F800000 : f32
    %681 = vector.broadcast %cst_377 : f32 to vector<16x128xf32>
    %682 = arith.select %674, %680, %681 : vector<16x128xi1>, vector<16x128xf32>
    %cst_378 = arith.constant dense<0x7F800000> : vector<128xf32>
    %683 = vector.multi_reduction <minimumf>, %682, %cst_378 [0] : vector<16x128xf32> to vector<128xf32>
    %684 = vector.shape_cast %683 : vector<128xf32> to vector<1x128xf32>
    %cst_379 = arith.constant 2.000000e+00 : f32
    %685 = vector.broadcast %cst_379 : f32 to vector<1x128xf32>
    %686 = arith.mulf %685, %1 : vector<1x128xf32>
    %cst_380 = arith.constant 1.000000e+00 : f32
    %687 = vector.broadcast %cst_380 : f32 to vector<1x128xf32>
    %688 = arith.subf %686, %687 : vector<1x128xf32>
    %689 = arith.mulf %688, %684 : vector<1x128xf32>
    %690 = arith.addf %689, %639 : vector<1x128xf32>
    %cst_381 = arith.constant 2.000000e+00 : f32
    %691 = vector.broadcast %cst_381 : f32 to vector<1x128xf32>
    %692 = arith.mulf %691, %2 : vector<1x128xf32>
    %cst_382 = arith.constant 1.000000e+00 : f32
    %693 = vector.broadcast %cst_382 : f32 to vector<1x128xf32>
    %694 = arith.subf %692, %693 : vector<1x128xf32>
    %695 = arith.mulf %694, %684 : vector<1x128xf32>
    %696 = arith.addf %695, %641 : vector<1x128xf32>
    %cst_383 = arith.constant 2.000000e+00 : f32
    %697 = vector.broadcast %cst_383 : f32 to vector<1x128xf32>
    %698 = arith.mulf %697, %3 : vector<1x128xf32>
    %cst_384 = arith.constant 1.000000e+00 : f32
    %699 = vector.broadcast %cst_384 : f32 to vector<1x128xf32>
    %700 = arith.subf %698, %699 : vector<1x128xf32>
    %701 = arith.mulf %700, %684 : vector<1x128xf32>
    %702 = arith.addf %701, %643 : vector<1x128xf32>
    %cst_385 = arith.constant 2.000000e+00 : f32
    %703 = vector.broadcast %cst_385 : f32 to vector<1x128xf32>
    %704 = arith.mulf %703, %4 : vector<1x128xf32>
    %cst_386 = arith.constant 1.000000e+00 : f32
    %705 = vector.broadcast %cst_386 : f32 to vector<1x128xf32>
    %706 = arith.subf %704, %705 : vector<1x128xf32>
    %707 = arith.mulf %706, %684 : vector<1x128xf32>
    %708 = arith.addf %707, %645 : vector<1x128xf32>
    %709 = arith.subf %639, %690 : vector<1x128xf32>
    %710 = arith.subf %641, %696 : vector<1x128xf32>
    %711 = arith.subf %643, %702 : vector<1x128xf32>
    %712 = arith.subf %645, %708 : vector<1x128xf32>
    %713 = vector.broadcast %709 : vector<1x128xf32> to vector<16x128xf32>
    %714 = arith.mulf %647, %713 : vector<16x128xf32>
    %715 = vector.broadcast %690 : vector<1x128xf32> to vector<16x128xf32>
    %716 = arith.mulf %647, %715 : vector<16x128xf32>
    %717 = vector.broadcast %710 : vector<1x128xf32> to vector<16x128xf32>
    %718 = arith.mulf %649, %717 : vector<16x128xf32>
    %719 = arith.addf %714, %718 : vector<16x128xf32>
    %720 = vector.broadcast %696 : vector<1x128xf32> to vector<16x128xf32>
    %721 = arith.mulf %649, %720 : vector<16x128xf32>
    %722 = arith.addf %716, %721 : vector<16x128xf32>
    %723 = vector.broadcast %711 : vector<1x128xf32> to vector<16x128xf32>
    %724 = arith.mulf %651, %723 : vector<16x128xf32>
    %725 = arith.addf %719, %724 : vector<16x128xf32>
    %726 = vector.broadcast %702 : vector<1x128xf32> to vector<16x128xf32>
    %727 = arith.mulf %651, %726 : vector<16x128xf32>
    %728 = arith.addf %722, %727 : vector<16x128xf32>
    %729 = vector.broadcast %712 : vector<1x128xf32> to vector<16x128xf32>
    %730 = arith.mulf %653, %729 : vector<16x128xf32>
    %731 = arith.addf %725, %730 : vector<16x128xf32>
    %732 = vector.broadcast %708 : vector<1x128xf32> to vector<16x128xf32>
    %733 = arith.mulf %653, %732 : vector<16x128xf32>
    %734 = arith.addf %728, %733 : vector<16x128xf32>
    %735 = arith.subf %0, %734 : vector<16x128xf32>
    %cst_387 = arith.constant 0.000000e+00 : f32
    %736 = vector.broadcast %cst_387 : f32 to vector<16x128xf32>
    %737 = arith.cmpf one, %731, %736 : vector<16x128xf32>
    %cst_388 = arith.constant 1.000000e+00 : f32
    %738 = vector.broadcast %cst_388 : f32 to vector<16x128xf32>
    %739 = arith.select %737, %731, %738 : vector<16x128xi1>, vector<16x128xf32>
    %740 = arith.divf %735, %739 : vector<16x128xf32>
    %741 = arith.mulf %709, %709 : vector<1x128xf32>
    %742 = arith.mulf %710, %710 : vector<1x128xf32>
    %743 = arith.addf %741, %742 : vector<1x128xf32>
    %744 = arith.mulf %711, %711 : vector<1x128xf32>
    %745 = arith.addf %743, %744 : vector<1x128xf32>
    %746 = arith.mulf %712, %712 : vector<1x128xf32>
    %747 = arith.addf %745, %746 : vector<1x128xf32>
    %748 = arith.mulf %740, %740 : vector<16x128xf32>
    %749 = vector.broadcast %747 : vector<1x128xf32> to vector<16x128xf32>
    %750 = arith.mulf %748, %749 : vector<16x128xf32>
    %751 = math.absf %740 : vector<16x128xf32>
    %752 = math.absf %690 : vector<1x128xf32>
    %cst_389 = arith.constant 9.99999974E-6 : f32
    %753 = vector.broadcast %cst_389 : f32 to vector<1x128xf32>
    %754 = arith.mulf %753, %752 : vector<1x128xf32>
    %cst_390 = arith.constant 9.99999993E-9 : f32
    %755 = vector.broadcast %cst_390 : f32 to vector<1x128xf32>
    %756 = arith.addf %755, %754 : vector<1x128xf32>
    %757 = math.absf %709 : vector<1x128xf32>
    %758 = vector.broadcast %757 : vector<1x128xf32> to vector<16x128xf32>
    %759 = arith.mulf %751, %758 : vector<16x128xf32>
    %760 = vector.broadcast %756 : vector<1x128xf32> to vector<16x128xf32>
    %761 = arith.cmpf ole, %759, %760 : vector<16x128xf32>
    %cst_391 = arith.constant 0.000000e+00 : f32
    %762 = vector.broadcast %cst_391 : f32 to vector<1x128xf32>
    %763 = arith.cmpf oeq, %709, %762 : vector<1x128xf32>
    %764 = math.absf %696 : vector<1x128xf32>
    %cst_392 = arith.constant 9.99999974E-6 : f32
    %765 = vector.broadcast %cst_392 : f32 to vector<1x128xf32>
    %766 = arith.mulf %765, %764 : vector<1x128xf32>
    %cst_393 = arith.constant 9.99999993E-9 : f32
    %767 = vector.broadcast %cst_393 : f32 to vector<1x128xf32>
    %768 = arith.addf %767, %766 : vector<1x128xf32>
    %769 = math.absf %710 : vector<1x128xf32>
    %770 = vector.broadcast %769 : vector<1x128xf32> to vector<16x128xf32>
    %771 = arith.mulf %751, %770 : vector<16x128xf32>
    %772 = vector.broadcast %768 : vector<1x128xf32> to vector<16x128xf32>
    %773 = arith.cmpf ole, %771, %772 : vector<16x128xf32>
    %774 = arith.andi %761, %773 : vector<16x128xi1>
    %cst_394 = arith.constant 0.000000e+00 : f32
    %775 = vector.broadcast %cst_394 : f32 to vector<1x128xf32>
    %776 = arith.cmpf oeq, %710, %775 : vector<1x128xf32>
    %777 = arith.andi %763, %776 : vector<1x128xi1>
    %778 = math.absf %702 : vector<1x128xf32>
    %cst_395 = arith.constant 9.99999974E-6 : f32
    %779 = vector.broadcast %cst_395 : f32 to vector<1x128xf32>
    %780 = arith.mulf %779, %778 : vector<1x128xf32>
    %cst_396 = arith.constant 9.99999993E-9 : f32
    %781 = vector.broadcast %cst_396 : f32 to vector<1x128xf32>
    %782 = arith.addf %781, %780 : vector<1x128xf32>
    %783 = math.absf %711 : vector<1x128xf32>
    %784 = vector.broadcast %783 : vector<1x128xf32> to vector<16x128xf32>
    %785 = arith.mulf %751, %784 : vector<16x128xf32>
    %786 = vector.broadcast %782 : vector<1x128xf32> to vector<16x128xf32>
    %787 = arith.cmpf ole, %785, %786 : vector<16x128xf32>
    %788 = arith.andi %774, %787 : vector<16x128xi1>
    %cst_397 = arith.constant 0.000000e+00 : f32
    %789 = vector.broadcast %cst_397 : f32 to vector<1x128xf32>
    %790 = arith.cmpf oeq, %711, %789 : vector<1x128xf32>
    %791 = arith.andi %777, %790 : vector<1x128xi1>
    %792 = math.absf %708 : vector<1x128xf32>
    %cst_398 = arith.constant 9.99999974E-6 : f32
    %793 = vector.broadcast %cst_398 : f32 to vector<1x128xf32>
    %794 = arith.mulf %793, %792 : vector<1x128xf32>
    %cst_399 = arith.constant 9.99999993E-9 : f32
    %795 = vector.broadcast %cst_399 : f32 to vector<1x128xf32>
    %796 = arith.addf %795, %794 : vector<1x128xf32>
    %797 = math.absf %712 : vector<1x128xf32>
    %798 = vector.broadcast %797 : vector<1x128xf32> to vector<16x128xf32>
    %799 = arith.mulf %751, %798 : vector<16x128xf32>
    %800 = vector.broadcast %796 : vector<1x128xf32> to vector<16x128xf32>
    %801 = arith.cmpf ole, %799, %800 : vector<16x128xf32>
    %802 = arith.andi %788, %801 : vector<16x128xi1>
    %cst_400 = arith.constant 0.000000e+00 : f32
    %803 = vector.broadcast %cst_400 : f32 to vector<1x128xf32>
    %804 = arith.cmpf oeq, %712, %803 : vector<1x128xf32>
    %805 = arith.andi %791, %804 : vector<1x128xi1>
    %cst_401 = arith.constant 0.000000e+00 : f32
    %806 = vector.broadcast %cst_401 : f32 to vector<16x128xf32>
    %807 = arith.cmpf olt, %740, %806 : vector<16x128xf32>
    %808 = vector.broadcast %805 : vector<1x128xi1> to vector<16x128xi1>
    %809 = arith.ori %807, %808 : vector<16x128xi1>
    %810 = arith.ori %802, %809 : vector<16x128xi1>
    %811 = arith.andi %810, %737 : vector<16x128xi1>
    %cst_402 = arith.constant 0x7F800000 : f32
    %812 = vector.broadcast %cst_402 : f32 to vector<16x128xf32>
    %813 = arith.select %811, %750, %812 : vector<16x128xi1>, vector<16x128xf32>
    %cst_403 = arith.constant dense<0x7F800000> : vector<128xf32>
    %814 = vector.multi_reduction <minimumf>, %813, %cst_403 [0] : vector<16x128xf32> to vector<128xf32>
    %815 = vector.shape_cast %814 : vector<128xf32> to vector<1x128xf32>
    %816 = tpu.iota {dimensions = array<i32: 0>} : vector<16x128xi32>
    %817 = vector.broadcast %815 : vector<1x128xf32> to vector<16x128xf32>
    %818 = arith.cmpf ole, %813, %817 : vector<16x128xf32>
    %c16_i32 = arith.constant 16 : i32
    %819 = vector.broadcast %c16_i32 : i32 to vector<16x128xi32>
    %820 = arith.select %818, %816, %819 : vector<16x128xi1>, vector<16x128xi32>
    %cst_404 = arith.constant dense<2147483647> : vector<128xi32>
    %821 = vector.multi_reduction <minsi>, %820, %cst_404 [0] : vector<16x128xi32> to vector<128xi32>
    %822 = vector.shape_cast %821 : vector<128xi32> to vector<1x128xi32>
    %823 = vector.broadcast %822 : vector<1x128xi32> to vector<16x128xi32>
    %824 = arith.cmpi eq, %816, %823 : vector<16x128xi32>
    %cst_405 = arith.constant 0.000000e+00 : f32
    %825 = vector.broadcast %cst_405 : f32 to vector<16x128xf32>
    %826 = arith.select %824, %740, %825 : vector<16x128xi1>, vector<16x128xf32>
    %cst_406 = arith.constant dense<0.000000e+00> : vector<128xf32>
    %827 = vector.multi_reduction <add>, %826, %cst_406 [0] : vector<16x128xf32> to vector<128xf32>
    %828 = vector.shape_cast %827 : vector<128xf32> to vector<1x128xf32>
    %829 = arith.mulf %828, %709 : vector<1x128xf32>
    %830 = arith.addf %690, %829 : vector<1x128xf32>
    %831 = arith.mulf %828, %710 : vector<1x128xf32>
    %832 = arith.addf %696, %831 : vector<1x128xf32>
    %833 = arith.mulf %828, %711 : vector<1x128xf32>
    %834 = arith.addf %702, %833 : vector<1x128xf32>
    %835 = arith.mulf %828, %712 : vector<1x128xf32>
    %836 = arith.addf %708, %835 : vector<1x128xf32>
    %837 = arith.subf %830, %639 : vector<1x128xf32>
    %838 = arith.subf %832, %641 : vector<1x128xf32>
    %839 = arith.subf %834, %643 : vector<1x128xf32>
    %840 = arith.subf %836, %645 : vector<1x128xf32>
    %cst_407 = arith.constant 0.000000e+00 : f32
    %841 = vector.broadcast %cst_407 : f32 to vector<1x128xf32>
    %842 = arith.cmpf oeq, %837, %841 : vector<1x128xf32>
    %cst_408 = arith.constant 0.000000e+00 : f32
    %843 = vector.broadcast %cst_408 : f32 to vector<1x128xf32>
    %844 = arith.cmpf oeq, %838, %843 : vector<1x128xf32>
    %cst_409 = arith.constant 0.000000e+00 : f32
    %845 = vector.broadcast %cst_409 : f32 to vector<1x128xf32>
    %846 = arith.cmpf oeq, %839, %845 : vector<1x128xf32>
    %cst_410 = arith.constant 0.000000e+00 : f32
    %847 = vector.broadcast %cst_410 : f32 to vector<1x128xf32>
    %848 = arith.cmpf oeq, %840, %847 : vector<1x128xf32>
    %cst_411 = arith.constant 1.000000e+00 : f32
    %849 = vector.broadcast %cst_411 : f32 to vector<1x128xf32>
    %850 = arith.select %842, %849, %837 : vector<1x128xi1>, vector<1x128xf32>
    %851 = arith.divf %684, %850 : vector<1x128xf32>
    %cst_412 = arith.constant 0x7F800000 : f32
    %852 = vector.broadcast %cst_412 : f32 to vector<1x128xf32>
    %853 = arith.select %842, %852, %851 : vector<1x128xi1>, vector<1x128xf32>
    %cst_413 = arith.constant 0.000000e+00 : f32
    %854 = vector.broadcast %cst_413 : f32 to vector<1x128xf32>
    %855 = arith.subf %854, %851 : vector<1x128xf32>
    %cst_414 = arith.constant 0x7F800000 : f32
    %856 = vector.broadcast %cst_414 : f32 to vector<1x128xf32>
    %857 = arith.select %842, %856, %855 : vector<1x128xi1>, vector<1x128xf32>
    %cst_415 = arith.constant 1.000000e+00 : f32
    %858 = vector.broadcast %cst_415 : f32 to vector<1x128xf32>
    %859 = arith.select %844, %858, %838 : vector<1x128xi1>, vector<1x128xf32>
    %860 = arith.divf %684, %859 : vector<1x128xf32>
    %cst_416 = arith.constant 0x7F800000 : f32
    %861 = vector.broadcast %cst_416 : f32 to vector<1x128xf32>
    %862 = arith.select %844, %861, %860 : vector<1x128xi1>, vector<1x128xf32>
    %cst_417 = arith.constant 0.000000e+00 : f32
    %863 = vector.broadcast %cst_417 : f32 to vector<1x128xf32>
    %864 = arith.subf %863, %860 : vector<1x128xf32>
    %cst_418 = arith.constant 0x7F800000 : f32
    %865 = vector.broadcast %cst_418 : f32 to vector<1x128xf32>
    %866 = arith.select %844, %865, %864 : vector<1x128xi1>, vector<1x128xf32>
    %cst_419 = arith.constant 1.000000e+00 : f32
    %867 = vector.broadcast %cst_419 : f32 to vector<1x128xf32>
    %868 = arith.select %846, %867, %839 : vector<1x128xi1>, vector<1x128xf32>
    %869 = arith.divf %684, %868 : vector<1x128xf32>
    %cst_420 = arith.constant 0x7F800000 : f32
    %870 = vector.broadcast %cst_420 : f32 to vector<1x128xf32>
    %871 = arith.select %846, %870, %869 : vector<1x128xi1>, vector<1x128xf32>
    %cst_421 = arith.constant 0.000000e+00 : f32
    %872 = vector.broadcast %cst_421 : f32 to vector<1x128xf32>
    %873 = arith.subf %872, %869 : vector<1x128xf32>
    %cst_422 = arith.constant 0x7F800000 : f32
    %874 = vector.broadcast %cst_422 : f32 to vector<1x128xf32>
    %875 = arith.select %846, %874, %873 : vector<1x128xi1>, vector<1x128xf32>
    %cst_423 = arith.constant 1.000000e+00 : f32
    %876 = vector.broadcast %cst_423 : f32 to vector<1x128xf32>
    %877 = arith.select %848, %876, %840 : vector<1x128xi1>, vector<1x128xf32>
    %878 = arith.divf %684, %877 : vector<1x128xf32>
    %cst_424 = arith.constant 0x7F800000 : f32
    %879 = vector.broadcast %cst_424 : f32 to vector<1x128xf32>
    %880 = arith.select %848, %879, %878 : vector<1x128xi1>, vector<1x128xf32>
    %cst_425 = arith.constant 0.000000e+00 : f32
    %881 = vector.broadcast %cst_425 : f32 to vector<1x128xf32>
    %882 = arith.subf %881, %878 : vector<1x128xf32>
    %cst_426 = arith.constant 0x7F800000 : f32
    %883 = vector.broadcast %cst_426 : f32 to vector<1x128xf32>
    %884 = arith.select %848, %883, %882 : vector<1x128xi1>, vector<1x128xf32>
    %885 = math.absf %853 : vector<1x128xf32>
    %886 = math.absf %862 : vector<1x128xf32>
    %887 = math.absf %871 : vector<1x128xf32>
    %888 = math.absf %880 : vector<1x128xf32>
    %889 = arith.minimumf %885, %886 : vector<1x128xf32>
    %890 = arith.minimumf %889, %887 : vector<1x128xf32>
    %891 = arith.minimumf %890, %888 : vector<1x128xf32>
    %892 = arith.subf %885, %891 : vector<1x128xf32>
    %893 = math.absf %892 : vector<1x128xf32>
    %894 = math.absf %891 : vector<1x128xf32>
    %cst_427 = arith.constant 9.99999974E-6 : f32
    %895 = vector.broadcast %cst_427 : f32 to vector<1x128xf32>
    %896 = arith.mulf %895, %894 : vector<1x128xf32>
    %cst_428 = arith.constant 9.99999993E-9 : f32
    %897 = vector.broadcast %cst_428 : f32 to vector<1x128xf32>
    %898 = arith.addf %897, %896 : vector<1x128xf32>
    %899 = arith.cmpf ole, %893, %898 : vector<1x128xf32>
    %900 = arith.subf %886, %891 : vector<1x128xf32>
    %901 = math.absf %900 : vector<1x128xf32>
    %902 = math.absf %891 : vector<1x128xf32>
    %cst_429 = arith.constant 9.99999974E-6 : f32
    %903 = vector.broadcast %cst_429 : f32 to vector<1x128xf32>
    %904 = arith.mulf %903, %902 : vector<1x128xf32>
    %cst_430 = arith.constant 9.99999993E-9 : f32
    %905 = vector.broadcast %cst_430 : f32 to vector<1x128xf32>
    %906 = arith.addf %905, %904 : vector<1x128xf32>
    %907 = arith.cmpf ole, %901, %906 : vector<1x128xf32>
    %908 = arith.subf %887, %891 : vector<1x128xf32>
    %909 = math.absf %908 : vector<1x128xf32>
    %910 = math.absf %891 : vector<1x128xf32>
    %cst_431 = arith.constant 9.99999974E-6 : f32
    %911 = vector.broadcast %cst_431 : f32 to vector<1x128xf32>
    %912 = arith.mulf %911, %910 : vector<1x128xf32>
    %cst_432 = arith.constant 9.99999993E-9 : f32
    %913 = vector.broadcast %cst_432 : f32 to vector<1x128xf32>
    %914 = arith.addf %913, %912 : vector<1x128xf32>
    %915 = arith.cmpf ole, %909, %914 : vector<1x128xf32>
    %916 = arith.subf %888, %891 : vector<1x128xf32>
    %917 = math.absf %916 : vector<1x128xf32>
    %918 = math.absf %891 : vector<1x128xf32>
    %cst_433 = arith.constant 9.99999974E-6 : f32
    %919 = vector.broadcast %cst_433 : f32 to vector<1x128xf32>
    %920 = arith.mulf %919, %918 : vector<1x128xf32>
    %cst_434 = arith.constant 9.99999993E-9 : f32
    %921 = vector.broadcast %cst_434 : f32 to vector<1x128xf32>
    %922 = arith.addf %921, %920 : vector<1x128xf32>
    %923 = arith.cmpf ole, %917, %922 : vector<1x128xf32>
    %924 = arith.andi %842, %844 : vector<1x128xi1>
    %925 = arith.andi %924, %846 : vector<1x128xi1>
    %926 = arith.andi %925, %848 : vector<1x128xi1>
    %c8_i32 = arith.constant 8 : i32
    %927 = vector.broadcast %c8_i32 : i32 to vector<1x128xi32>
    %cst_435 = arith.constant 0.000000e+00 : f32
    %928 = vector.broadcast %cst_435 : f32 to vector<1x128xf32>
    %929 = arith.cmpf ogt, %853, %928 : vector<1x128xf32>
    %930 = arith.ori %929, %926 : vector<1x128xi1>
    %931 = arith.andi %899, %930 : vector<1x128xi1>
    %c0_i32 = arith.constant 0 : i32
    %c8_i32_436 = arith.constant 8 : i32
    %932 = vector.broadcast %c0_i32 : i32 to vector<1x128xi32>
    %933 = vector.broadcast %c8_i32_436 : i32 to vector<1x128xi32>
    %934 = arith.select %931, %932, %933 : vector<1x128xi1>, vector<1x128xi32>
    %935 = arith.minsi %927, %934 : vector<1x128xi32>
    %cst_437 = arith.constant 0.000000e+00 : f32
    %936 = vector.broadcast %cst_437 : f32 to vector<1x128xf32>
    %937 = arith.cmpf ogt, %862, %936 : vector<1x128xf32>
    %938 = arith.ori %937, %926 : vector<1x128xi1>
    %939 = arith.andi %907, %938 : vector<1x128xi1>
    %c1_i32 = arith.constant 1 : i32
    %c8_i32_438 = arith.constant 8 : i32
    %940 = vector.broadcast %c1_i32 : i32 to vector<1x128xi32>
    %941 = vector.broadcast %c8_i32_438 : i32 to vector<1x128xi32>
    %942 = arith.select %939, %940, %941 : vector<1x128xi1>, vector<1x128xi32>
    %943 = arith.minsi %935, %942 : vector<1x128xi32>
    %cst_439 = arith.constant 0.000000e+00 : f32
    %944 = vector.broadcast %cst_439 : f32 to vector<1x128xf32>
    %945 = arith.cmpf ogt, %871, %944 : vector<1x128xf32>
    %946 = arith.ori %945, %926 : vector<1x128xi1>
    %947 = arith.andi %915, %946 : vector<1x128xi1>
    %c2_i32 = arith.constant 2 : i32
    %c8_i32_440 = arith.constant 8 : i32
    %948 = vector.broadcast %c2_i32 : i32 to vector<1x128xi32>
    %949 = vector.broadcast %c8_i32_440 : i32 to vector<1x128xi32>
    %950 = arith.select %947, %948, %949 : vector<1x128xi1>, vector<1x128xi32>
    %951 = arith.minsi %943, %950 : vector<1x128xi32>
    %cst_441 = arith.constant 0.000000e+00 : f32
    %952 = vector.broadcast %cst_441 : f32 to vector<1x128xf32>
    %953 = arith.cmpf ogt, %880, %952 : vector<1x128xf32>
    %954 = arith.ori %953, %926 : vector<1x128xi1>
    %955 = arith.andi %923, %954 : vector<1x128xi1>
    %c3_i32 = arith.constant 3 : i32
    %c8_i32_442 = arith.constant 8 : i32
    %956 = vector.broadcast %c3_i32 : i32 to vector<1x128xi32>
    %957 = vector.broadcast %c8_i32_442 : i32 to vector<1x128xi32>
    %958 = arith.select %955, %956, %957 : vector<1x128xi1>, vector<1x128xi32>
    %959 = arith.minsi %951, %958 : vector<1x128xi32>
    %cst_443 = arith.constant 0.000000e+00 : f32
    %960 = vector.broadcast %cst_443 : f32 to vector<1x128xf32>
    %961 = arith.cmpf ogt, %857, %960 : vector<1x128xf32>
    %962 = arith.ori %961, %926 : vector<1x128xi1>
    %963 = arith.andi %899, %962 : vector<1x128xi1>
    %c4_i32 = arith.constant 4 : i32
    %c8_i32_444 = arith.constant 8 : i32
    %964 = vector.broadcast %c4_i32 : i32 to vector<1x128xi32>
    %965 = vector.broadcast %c8_i32_444 : i32 to vector<1x128xi32>
    %966 = arith.select %963, %964, %965 : vector<1x128xi1>, vector<1x128xi32>
    %967 = arith.minsi %959, %966 : vector<1x128xi32>
    %cst_445 = arith.constant 0.000000e+00 : f32
    %968 = vector.broadcast %cst_445 : f32 to vector<1x128xf32>
    %969 = arith.cmpf ogt, %866, %968 : vector<1x128xf32>
    %970 = arith.ori %969, %926 : vector<1x128xi1>
    %971 = arith.andi %907, %970 : vector<1x128xi1>
    %c5_i32 = arith.constant 5 : i32
    %c8_i32_446 = arith.constant 8 : i32
    %972 = vector.broadcast %c5_i32 : i32 to vector<1x128xi32>
    %973 = vector.broadcast %c8_i32_446 : i32 to vector<1x128xi32>
    %974 = arith.select %971, %972, %973 : vector<1x128xi1>, vector<1x128xi32>
    %975 = arith.minsi %967, %974 : vector<1x128xi32>
    %cst_447 = arith.constant 0.000000e+00 : f32
    %976 = vector.broadcast %cst_447 : f32 to vector<1x128xf32>
    %977 = arith.cmpf ogt, %875, %976 : vector<1x128xf32>
    %978 = arith.ori %977, %926 : vector<1x128xi1>
    %979 = arith.andi %915, %978 : vector<1x128xi1>
    %c6_i32 = arith.constant 6 : i32
    %c8_i32_448 = arith.constant 8 : i32
    %980 = vector.broadcast %c6_i32 : i32 to vector<1x128xi32>
    %981 = vector.broadcast %c8_i32_448 : i32 to vector<1x128xi32>
    %982 = arith.select %979, %980, %981 : vector<1x128xi1>, vector<1x128xi32>
    %983 = arith.minsi %975, %982 : vector<1x128xi32>
    %cst_449 = arith.constant 0.000000e+00 : f32
    %984 = vector.broadcast %cst_449 : f32 to vector<1x128xf32>
    %985 = arith.cmpf ogt, %884, %984 : vector<1x128xf32>
    %986 = arith.ori %985, %926 : vector<1x128xi1>
    %987 = arith.andi %923, %986 : vector<1x128xi1>
    %c7_i32 = arith.constant 7 : i32
    %c8_i32_450 = arith.constant 8 : i32
    %988 = vector.broadcast %c7_i32 : i32 to vector<1x128xi32>
    %989 = vector.broadcast %c8_i32_450 : i32 to vector<1x128xi32>
    %990 = arith.select %987, %988, %989 : vector<1x128xi1>, vector<1x128xi32>
    %991 = arith.minsi %983, %990 : vector<1x128xi32>
    %c8_i32_451 = arith.constant 8 : i32
    %992 = vector.broadcast %c8_i32_451 : i32 to vector<1x128xi32>
    %c0_i32_452 = arith.constant 0 : i32
    %c8_i32_453 = arith.constant 8 : i32
    %993 = vector.broadcast %c0_i32_452 : i32 to vector<1x128xi32>
    %994 = vector.broadcast %c8_i32_453 : i32 to vector<1x128xi32>
    %995 = arith.select %899, %993, %994 : vector<1x128xi1>, vector<1x128xi32>
    %996 = arith.minsi %992, %995 : vector<1x128xi32>
    %c1_i32_454 = arith.constant 1 : i32
    %c8_i32_455 = arith.constant 8 : i32
    %997 = vector.broadcast %c1_i32_454 : i32 to vector<1x128xi32>
    %998 = vector.broadcast %c8_i32_455 : i32 to vector<1x128xi32>
    %999 = arith.select %907, %997, %998 : vector<1x128xi1>, vector<1x128xi32>
    %1000 = arith.minsi %996, %999 : vector<1x128xi32>
    %c2_i32_456 = arith.constant 2 : i32
    %c8_i32_457 = arith.constant 8 : i32
    %1001 = vector.broadcast %c2_i32_456 : i32 to vector<1x128xi32>
    %1002 = vector.broadcast %c8_i32_457 : i32 to vector<1x128xi32>
    %1003 = arith.select %915, %1001, %1002 : vector<1x128xi1>, vector<1x128xi32>
    %1004 = arith.minsi %1000, %1003 : vector<1x128xi32>
    %c3_i32_458 = arith.constant 3 : i32
    %c8_i32_459 = arith.constant 8 : i32
    %1005 = vector.broadcast %c3_i32_458 : i32 to vector<1x128xi32>
    %1006 = vector.broadcast %c8_i32_459 : i32 to vector<1x128xi32>
    %1007 = arith.select %923, %1005, %1006 : vector<1x128xi1>, vector<1x128xi32>
    %1008 = arith.minsi %1004, %1007 : vector<1x128xi32>
    %c8_i32_460 = arith.constant 8 : i32
    %1009 = vector.broadcast %c8_i32_460 : i32 to vector<1x128xi32>
    %1010 = arith.cmpi sge, %991, %1009 : vector<1x128xi32>
    %1011 = arith.select %1010, %1008, %991 : vector<1x128xi1>, vector<1x128xi32>
    %cst_461 = arith.constant 0.000000e+00 : f32
    %1012 = vector.broadcast %cst_461 : f32 to vector<1x128xf32>
    %c0_i32_462 = arith.constant 0 : i32
    %1013 = vector.broadcast %c0_i32_462 : i32 to vector<1x128xi32>
    %1014 = arith.cmpi eq, %1011, %1013 : vector<1x128xi32>
    %1015 = arith.select %1014, %853, %1012 : vector<1x128xi1>, vector<1x128xf32>
    %c4_i32_463 = arith.constant 4 : i32
    %1016 = vector.broadcast %c4_i32_463 : i32 to vector<1x128xi32>
    %1017 = arith.cmpi eq, %1011, %1016 : vector<1x128xi32>
    %1018 = arith.select %1017, %857, %1015 : vector<1x128xi1>, vector<1x128xf32>
    %c1_i32_464 = arith.constant 1 : i32
    %1019 = vector.broadcast %c1_i32_464 : i32 to vector<1x128xi32>
    %1020 = arith.cmpi eq, %1011, %1019 : vector<1x128xi32>
    %1021 = arith.select %1020, %862, %1018 : vector<1x128xi1>, vector<1x128xf32>
    %c5_i32_465 = arith.constant 5 : i32
    %1022 = vector.broadcast %c5_i32_465 : i32 to vector<1x128xi32>
    %1023 = arith.cmpi eq, %1011, %1022 : vector<1x128xi32>
    %1024 = arith.select %1023, %866, %1021 : vector<1x128xi1>, vector<1x128xf32>
    %c2_i32_466 = arith.constant 2 : i32
    %1025 = vector.broadcast %c2_i32_466 : i32 to vector<1x128xi32>
    %1026 = arith.cmpi eq, %1011, %1025 : vector<1x128xi32>
    %1027 = arith.select %1026, %871, %1024 : vector<1x128xi1>, vector<1x128xf32>
    %c6_i32_467 = arith.constant 6 : i32
    %1028 = vector.broadcast %c6_i32_467 : i32 to vector<1x128xi32>
    %1029 = arith.cmpi eq, %1011, %1028 : vector<1x128xi32>
    %1030 = arith.select %1029, %875, %1027 : vector<1x128xi1>, vector<1x128xf32>
    %c3_i32_468 = arith.constant 3 : i32
    %1031 = vector.broadcast %c3_i32_468 : i32 to vector<1x128xi32>
    %1032 = arith.cmpi eq, %1011, %1031 : vector<1x128xi32>
    %1033 = arith.select %1032, %880, %1030 : vector<1x128xi1>, vector<1x128xf32>
    %c7_i32_469 = arith.constant 7 : i32
    %1034 = vector.broadcast %c7_i32_469 : i32 to vector<1x128xi32>
    %1035 = arith.cmpi eq, %1011, %1034 : vector<1x128xi32>
    %1036 = arith.select %1035, %884, %1033 : vector<1x128xi1>, vector<1x128xf32>
    %cst_470 = arith.constant 1.000000e+00 : f32
    %1037 = vector.broadcast %cst_470 : f32 to vector<1x128xf32>
    %1038 = arith.cmpf ogt, %1036, %1037 : vector<1x128xf32>
    %cst_471 = arith.constant 1.000000e+00 : f32
    %1039 = vector.broadcast %cst_471 : f32 to vector<1x128xf32>
    %1040 = arith.subf %1036, %1039 : vector<1x128xf32>
    %1041 = math.absf %1040 : vector<1x128xf32>
    %cst_472 = arith.constant 1.000000e+00 : f32
    %1042 = math.absf %cst_472 : f32
    %cst_473 = arith.constant 9.99999974E-6 : f32
    %1043 = arith.mulf %cst_473, %1042 : f32
    %cst_474 = arith.constant 9.99999993E-9 : f32
    %1044 = arith.addf %cst_474, %1043 : f32
    %1045 = vector.broadcast %1044 : f32 to vector<1x128xf32>
    %1046 = arith.cmpf ole, %1041, %1045 : vector<1x128xf32>
    %1047 = arith.andi %1038, %1046 : vector<1x128xi1>
    %cst_475 = arith.constant 1.000000e+00 : f32
    %1048 = vector.broadcast %cst_475 : f32 to vector<1x128xf32>
    %1049 = arith.select %1047, %1048, %1036 : vector<1x128xi1>, vector<1x128xf32>
    %cst_476 = arith.constant -1.000000e+00 : f32
    %1050 = vector.broadcast %cst_476 : f32 to vector<1x128xf32>
    %1051 = arith.cmpf olt, %1049, %1050 : vector<1x128xf32>
    %cst_477 = arith.constant -1.000000e+00 : f32
    %1052 = vector.broadcast %cst_477 : f32 to vector<1x128xf32>
    %1053 = arith.subf %1049, %1052 : vector<1x128xf32>
    %1054 = math.absf %1053 : vector<1x128xf32>
    %cst_478 = arith.constant -1.000000e+00 : f32
    %1055 = math.absf %cst_478 : f32
    %cst_479 = arith.constant 9.99999974E-6 : f32
    %1056 = arith.mulf %cst_479, %1055 : f32
    %cst_480 = arith.constant 9.99999993E-9 : f32
    %1057 = arith.addf %cst_480, %1056 : f32
    %1058 = vector.broadcast %1057 : f32 to vector<1x128xf32>
    %1059 = arith.cmpf ole, %1054, %1058 : vector<1x128xf32>
    %1060 = arith.andi %1051, %1059 : vector<1x128xi1>
    %cst_481 = arith.constant -1.000000e+00 : f32
    %1061 = vector.broadcast %cst_481 : f32 to vector<1x128xf32>
    %1062 = arith.select %1060, %1061, %1049 : vector<1x128xi1>, vector<1x128xf32>
    %1063 = arith.mulf %1062, %830 : vector<1x128xf32>
    %cst_482 = arith.constant 1.000000e+00 : f32
    %1064 = vector.broadcast %cst_482 : f32 to vector<1x128xf32>
    %1065 = arith.subf %1064, %1062 : vector<1x128xf32>
    %1066 = arith.mulf %1065, %639 : vector<1x128xf32>
    %1067 = arith.addf %1063, %1066 : vector<1x128xf32>
    %1068 = arith.mulf %1062, %832 : vector<1x128xf32>
    %cst_483 = arith.constant 1.000000e+00 : f32
    %1069 = vector.broadcast %cst_483 : f32 to vector<1x128xf32>
    %1070 = arith.subf %1069, %1062 : vector<1x128xf32>
    %1071 = arith.mulf %1070, %641 : vector<1x128xf32>
    %1072 = arith.addf %1068, %1071 : vector<1x128xf32>
    %1073 = arith.mulf %1062, %834 : vector<1x128xf32>
    %cst_484 = arith.constant 1.000000e+00 : f32
    %1074 = vector.broadcast %cst_484 : f32 to vector<1x128xf32>
    %1075 = arith.subf %1074, %1062 : vector<1x128xf32>
    %1076 = arith.mulf %1075, %643 : vector<1x128xf32>
    %1077 = arith.addf %1073, %1076 : vector<1x128xf32>
    %1078 = arith.mulf %1062, %836 : vector<1x128xf32>
    %cst_485 = arith.constant 1.000000e+00 : f32
    %1079 = vector.broadcast %cst_485 : f32 to vector<1x128xf32>
    %1080 = arith.subf %1079, %1062 : vector<1x128xf32>
    %1081 = arith.mulf %1080, %645 : vector<1x128xf32>
    %1082 = arith.addf %1078, %1081 : vector<1x128xf32>
    %1083 = arith.subf %1067, %639 : vector<1x128xf32>
    %1084 = math.absf %1083 : vector<1x128xf32>
    %1085 = math.absf %639 : vector<1x128xf32>
    %cst_486 = arith.constant 9.99999974E-6 : f32
    %1086 = vector.broadcast %cst_486 : f32 to vector<1x128xf32>
    %1087 = arith.mulf %1086, %1085 : vector<1x128xf32>
    %cst_487 = arith.constant 9.99999993E-9 : f32
    %1088 = vector.broadcast %cst_487 : f32 to vector<1x128xf32>
    %1089 = arith.addf %1088, %1087 : vector<1x128xf32>
    %1090 = arith.cmpf ole, %1084, %1089 : vector<1x128xf32>
    %1091 = arith.subf %690, %639 : vector<1x128xf32>
    %1092 = arith.subf %1067, %639 : vector<1x128xf32>
    %cst_488 = arith.constant 1.000000e+00 : f32
    %1093 = vector.broadcast %cst_488 : f32 to vector<1x128xf32>
    %1094 = arith.select %1090, %1093, %1092 : vector<1x128xi1>, vector<1x128xf32>
    %1095 = arith.divf %1091, %1094 : vector<1x128xf32>
    %1096 = arith.select %1090, %1067, %1095 : vector<1x128xi1>, vector<1x128xf32>
    %1097 = arith.subf %830, %639 : vector<1x128xf32>
    %1098 = arith.mulf %1096, %1097 : vector<1x128xf32>
    %1099 = arith.addf %1098, %639 : vector<1x128xf32>
    %c0_489 = arith.constant 0 : index
    %c0_490 = arith.constant 0 : index
    %1100 = vector.load %arg4[%c0_489, %c0_490] : memref<4x128xf32, #tpu.memory_space<vmem>>, vector<1x128xf32>
    tpu.vector_store %arg4[%c0_489, %c0_490], %1099 {strides = array<i32>} : memref<4x128xf32, #tpu.memory_space<vmem>>, vector<1x128xf32>,
    %1101 = arith.subf %1072, %641 : vector<1x128xf32>
    %1102 = math.absf %1101 : vector<1x128xf32>
    %1103 = math.absf %641 : vector<1x128xf32>
    %cst_491 = arith.constant 9.99999974E-6 : f32
    %1104 = vector.broadcast %cst_491 : f32 to vector<1x128xf32>
    %1105 = arith.mulf %1104, %1103 : vector<1x128xf32>
    %cst_492 = arith.constant 9.99999993E-9 : f32
    %1106 = vector.broadcast %cst_492 : f32 to vector<1x128xf32>
    %1107 = arith.addf %1106, %1105 : vector<1x128xf32>
    %1108 = arith.cmpf ole, %1102, %1107 : vector<1x128xf32>
    %1109 = arith.subf %696, %641 : vector<1x128xf32>
    %1110 = arith.subf %1072, %641 : vector<1x128xf32>
    %cst_493 = arith.constant 1.000000e+00 : f32
    %1111 = vector.broadcast %cst_493 : f32 to vector<1x128xf32>
    %1112 = arith.select %1108, %1111, %1110 : vector<1x128xi1>, vector<1x128xf32>
    %1113 = arith.divf %1109, %1112 : vector<1x128xf32>
    %1114 = arith.select %1108, %1072, %1113 : vector<1x128xi1>, vector<1x128xf32>
    %1115 = arith.subf %832, %641 : vector<1x128xf32>
    %1116 = arith.mulf %1114, %1115 : vector<1x128xf32>
    %1117 = arith.addf %1116, %641 : vector<1x128xf32>
    %c1_494 = arith.constant 1 : index
    %c0_495 = arith.constant 0 : index
    %1118 = vector.load %arg4[%c1_494, %c0_495] : memref<4x128xf32, #tpu.memory_space<vmem>>, vector<1x128xf32>
    tpu.vector_store %arg4[%c1_494, %c0_495], %1117 {strides = array<i32>} : memref<4x128xf32, #tpu.memory_space<vmem>>, vector<1x128xf32>,
    %1119 = arith.subf %1077, %643 : vector<1x128xf32>
    %1120 = math.absf %1119 : vector<1x128xf32>
    %1121 = math.absf %643 : vector<1x128xf32>
    %cst_496 = arith.constant 9.99999974E-6 : f32
    %1122 = vector.broadcast %cst_496 : f32 to vector<1x128xf32>
    %1123 = arith.mulf %1122, %1121 : vector<1x128xf32>
    %cst_497 = arith.constant 9.99999993E-9 : f32
    %1124 = vector.broadcast %cst_497 : f32 to vector<1x128xf32>
    %1125 = arith.addf %1124, %1123 : vector<1x128xf32>
    %1126 = arith.cmpf ole, %1120, %1125 : vector<1x128xf32>
    %1127 = arith.subf %702, %643 : vector<1x128xf32>
    %1128 = arith.subf %1077, %643 : vector<1x128xf32>
    %cst_498 = arith.constant 1.000000e+00 : f32
    %1129 = vector.broadcast %cst_498 : f32 to vector<1x128xf32>
    %1130 = arith.select %1126, %1129, %1128 : vector<1x128xi1>, vector<1x128xf32>
    %1131 = arith.divf %1127, %1130 : vector<1x128xf32>
    %1132 = arith.select %1126, %1077, %1131 : vector<1x128xi1>, vector<1x128xf32>
    %1133 = arith.subf %834, %643 : vector<1x128xf32>
    %1134 = arith.mulf %1132, %1133 : vector<1x128xf32>
    %1135 = arith.addf %1134, %643 : vector<1x128xf32>
    %c2_499 = arith.constant 2 : index
    %c0_500 = arith.constant 0 : index
    %1136 = vector.load %arg4[%c2_499, %c0_500] : memref<4x128xf32, #tpu.memory_space<vmem>>, vector<1x128xf32>
    tpu.vector_store %arg4[%c2_499, %c0_500], %1135 {strides = array<i32>} : memref<4x128xf32, #tpu.memory_space<vmem>>, vector<1x128xf32>,
    %1137 = arith.subf %1082, %645 : vector<1x128xf32>
    %1138 = math.absf %1137 : vector<1x128xf32>
    %1139 = math.absf %645 : vector<1x128xf32>
    %cst_501 = arith.constant 9.99999974E-6 : f32
    %1140 = vector.broadcast %cst_501 : f32 to vector<1x128xf32>
    %1141 = arith.mulf %1140, %1139 : vector<1x128xf32>
    %cst_502 = arith.constant 9.99999993E-9 : f32
    %1142 = vector.broadcast %cst_502 : f32 to vector<1x128xf32>
    %1143 = arith.addf %1142, %1141 : vector<1x128xf32>
    %1144 = arith.cmpf ole, %1138, %1143 : vector<1x128xf32>
    %1145 = arith.subf %708, %645 : vector<1x128xf32>
    %1146 = arith.subf %1082, %645 : vector<1x128xf32>
    %cst_503 = arith.constant 1.000000e+00 : f32
    %1147 = vector.broadcast %cst_503 : f32 to vector<1x128xf32>
    %1148 = arith.select %1144, %1147, %1146 : vector<1x128xi1>, vector<1x128xf32>
    %1149 = arith.divf %1145, %1148 : vector<1x128xf32>
    %1150 = arith.select %1144, %1082, %1149 : vector<1x128xi1>, vector<1x128xf32>
    %1151 = arith.subf %836, %645 : vector<1x128xf32>
    %1152 = arith.mulf %1150, %1151 : vector<1x128xf32>
    %1153 = arith.addf %1152, %645 : vector<1x128xf32>
    %c3_504 = arith.constant 3 : index
    %c0_505 = arith.constant 0 : index
    %1154 = vector.load %arg4[%c3_504, %c0_505] : memref<4x128xf32, #tpu.memory_space<vmem>>, vector<1x128xf32>
    tpu.vector_store %arg4[%c3_504, %c0_505], %1153 {strides = array<i32>} : memref<4x128xf32, #tpu.memory_space<vmem>>, vector<1x128xf32>,
    return
  }
  func.func @transform_0(%arg0: i32) -> (i32, i32, i32) {
    %c0_i32 = arith.constant 0 : i32
    %c0_i32_0 = arith.constant 0 : i32
    %c0_i32_1 = arith.constant 0 : i32
    return %c0_i32, %c0_i32_0, %arg0 : i32, i32, i32
  }
  func.func @transform_1(%arg0: i32) -> (i32, i32) {
    %c0_i32 = arith.constant 0 : i32
    %c0_i32_0 = arith.constant 0 : i32
    return %c0_i32, %arg0 : i32, i32
  }
  func.func @transform_2(%arg0: i32) -> (i32, i32) {
    %c0_i32 = arith.constant 0 : i32
    %c0_i32_0 = arith.constant 0 : i32
    return %c0_i32, %arg0 : i32, i32
  }
  func.func @transform_3(%arg0: i32) -> (i32, i32) {
    %c0_i32 = arith.constant 0 : i32
    %c0_i32_0 = arith.constant 0 : i32
    return %c0_i32, %arg0 : i32, i32
  }
}

</mosaic_0001>

<llo_original>
// kernel: tpu_custom_call.1
$region0: #{tpu_custom_call.1}
  #allocation0 [shape = 'u32[]', space=smem, size = 0x4, offset = 0x4, fixed_abs, tag = 'smem constant byte address 0x4 - core index']
  #allocation1 [shape = 'u32[144,128]{1,0:T(1,128)}', space=vmem, size = 0x12000, scoped, tag = 'internal scratch']
  %s0 = inlined_call_operand.hbm [shape: f32[4,16,256], index: 0, kind: input, shape index: {}]
  %s1 = inlined_call_operand.hbm [shape: f32[16,256], index: 1, kind: input, shape index: {}]
  %s2 = inlined_call_operand.hbm [shape: f32[4,256], index: 2, kind: input, shape index: {}]
  %s3 = inlined_call_operand.hbm [shape: f32[4,256], index: 3, kind: output, shape index: {}]
  %s4 = sld [smem:[#allocation0]]
  $region57: #{tpu_custom_call.1} parent=0
    _
  %s6 = ssub.s32 1, %s4
  %s7 = scalar_select 0, %s6, %s4
  $region1: #{tpu_custom_call.1} parent=0
    #allocation2 [shape = 'u8[65536]{0}', space=vmem, size = 0x10000, scoped, tag = 'input window, operand 0']
    #allocation3 [shape = 's32[2]{0}', space=sflag, size = 0x8, scoped, tag = 'scoped memory for tpu_custom_call.1']
    #allocation4 [shape = 's32[2]{0}', space=sflag, size = 0x8, scoped, tag = 'scoped memory for tpu_custom_call.1']
    #allocation5 [shape = 'u8[16384]{0}', space=vmem, size = 0x4000, scoped, tag = 'input window, operand 1']
    #allocation6 [shape = 's32[2]{0}', space=sflag, size = 0x8, scoped, tag = 'scoped memory for tpu_custom_call.1']
    #allocation7 [shape = 'u8[4096]{0}', space=vmem, size = 0x1000, scoped, tag = 'input window, operand 2']
    #allocation8 [shape = 'u8[4096]{0}', space=vmem, size = 0x1000, scoped, tag = 'output window, operand 0']
    %8 = vsyncpa [#allocation3], 0
    %s9 = scalar_lea.sflag [#allocation3], 1
    %10 = vsyncpa %s9, 0
    %11 = vsyncpa [#allocation6], 0
    %s12 = scalar_lea.sflag [#allocation6], 1
    %13 = vsyncpa %s12, 0
    %14 = vsyncpa [#allocation4], 0
    %s15 = scalar_lea.sflag [#allocation4], 1
    %16 = vsyncpa %s15, 0
    loop: start=0, step=1, limit=4
    $region2: #{tpu_custom_call.1} parent=1 // loop_pre_header
      _
    $region3: #{tpu_custom_call.1} parent=1 // loop_header
      %s18 = sphi 0, %s22
      %p19 = scmp.ge.s32.totalorder %s18, 4
      %s28 = sphi 0, %s30
      %s31 = sphi 0, %s28
      %s32 = sphi 0, %s31
      %s48 = sphi 0, %s32
      %s54 = sphi 0, %s56
      %s57 = sphi 0, %s54
      %s58 = sphi 0, %s57
      %s74 = sphi 0, %s58
      %s80 = sphi 0, %s82
      %s83 = sphi 0, %s80
      %s84 = sphi 0, %s83
      %s100 = sphi 0, %s84
      %s106 = sphi 0, %s108
      %s109 = sphi 0, %s106
      %s110 = sphi 0, %s109
      %s126 = sphi 0, %s110
    $region4: #{tpu_custom_call.1} parent=1 // loop_header_branch
      %21 = sbr.rel (%p19) target = $region8
    $region5: #{tpu_custom_call.1} parent=1 // loop_body
      %s23 = ssub.s32 %s18, 1
      %s24 = ssub.s32 %s18, 2
      %s25 = sadd.s32 %s18, 1
      %s26 = ssub.s32 %s18, %s25
      %p27 = scmp.eq.s32.totalorder %s26, 0
      %s29 = sadd.s32 %s28, 1
      %s30 = scalar_select %p27, %s28, %s29
      %p33 = pneg %p27
      %p34 = scmp.eq.s32.totalorder %s18, 1
      %p35 = por %p33, %p34
      %p36 = scmp.ne.s32.totalorder %s28, %s31
      %p37 = scmp.eq.s32.totalorder %s18, 0
      %p38 = por %p36, %p37
      %p39 = scmp.ne.s32.totalorder %s28, %s31
      %p40 = scmp.eq.s32.totalorder %s23, 1
      %p41 = por %p39, %p40
      %p42 = scmp.ne.s32.totalorder %s31, %s32
      %p43 = scmp.eq.s32.totalorder %s23, 0
      %p44 = por %p42, %p43
      %p45 = scmp.ne.s32.totalorder %s31, %s32
      %p46 = scmp.eq.s32.totalorder %s24, 1
      %p47 = por %p45, %p46
      %p49 = scmp.ne.s32.totalorder %s32, %s48
      %p50 = scmp.eq.s32.totalorder %s24, 0
      %p51 = por %p49, %p50
      %s52 = ssub.s32 %s18, %s25
      %p53 = scmp.eq.s32.totalorder %s52, 0
      %s55 = sadd.s32 %s54, 1
      %s56 = scalar_select %p53, %s54, %s55
      %p59 = pneg %p53
      %p60 = scmp.eq.s32.totalorder %s18, 1
      %p61 = por %p59, %p60
      %p62 = scmp.ne.s32.totalorder %s54, %s57
      %p63 = scmp.eq.s32.totalorder %s18, 0
      %p64 = por %p62, %p63
      %p65 = scmp.ne.s32.totalorder %s54, %s57
      %p66 = scmp.eq.s32.totalorder %s23, 1
      %p67 = por %p65, %p66
      %p68 = scmp.ne.s32.totalorder %s57, %s58
      %p69 = scmp.eq.s32.totalorder %s23, 0
      %p70 = por %p68, %p69
      %p71 = scmp.ne.s32.totalorder %s57, %s58
      %p72 = scmp.eq.s32.totalorder %s24, 1
      %p73 = por %p71, %p72
      %p75 = scmp.ne.s32.totalorder %s58, %s74
      %p76 = scmp.eq.s32.totalorder %s24, 0
      %p77 = por %p75, %p76
      %s78 = ssub.s32 %s18, %s25
      %p79 = scmp.eq.s32.totalorder %s78, 0
      %s81 = sadd.s32 %s80, 1
      %s82 = scalar_select %p79, %s80, %s81
      %p85 = pneg %p79
      %p86 = scmp.eq.s32.totalorder %s18, 1
      %p87 = por %p85, %p86
      %p88 = scmp.ne.s32.totalorder %s80, %s83
      %p89 = scmp.eq.s32.totalorder %s18, 0
      %p90 = por %p88, %p89
      %p91 = scmp.ne.s32.totalorder %s80, %s83
      %p92 = scmp.eq.s32.totalorder %s23, 1
      %p93 = por %p91, %p92
      %p94 = scmp.ne.s32.totalorder %s83, %s84
      %p95 = scmp.eq.s32.totalorder %s23, 0
      %p96 = por %p94, %p95
      %p97 = scmp.ne.s32.totalorder %s83, %s84
      %p98 = scmp.eq.s32.totalorder %s24, 1
      %p99 = por %p97, %p98
      %p101 = scmp.ne.s32.totalorder %s84, %s100
      %p102 = scmp.eq.s32.totalorder %s24, 0
      %p103 = por %p101, %p102
      %s104 = ssub.s32 %s18, %s25
      %p105 = scmp.eq.s32.totalorder %s104, 0
      %s107 = sadd.s32 %s106, 1
      %s108 = scalar_select %p105, %s106, %s107
      %p111 = pneg %p105
      %p112 = scmp.eq.s32.totalorder %s18, 1
      %p113 = por %p111, %p112
      %p114 = scmp.ne.s32.totalorder %s106, %s109
      %p115 = scmp.eq.s32.totalorder %s18, 0
      %p116 = por %p114, %p115
      %p117 = scmp.ne.s32.totalorder %s106, %s109
      %p118 = scmp.eq.s32.totalorder %s23, 1
      %p119 = por %p117, %p118
      %p120 = scmp.ne.s32.totalorder %s109, %s110
      %p121 = scmp.eq.s32.totalorder %s23, 0
      %p122 = por %p120, %p121
      %p123 = scmp.ne.s32.totalorder %s109, %s110
      %p124 = scmp.eq.s32.totalorder %s24, 1
      %p125 = por %p123, %p124
      %p127 = scmp.ne.s32.totalorder %s110, %s126
      %p128 = scmp.eq.s32.totalorder %s24, 0
      %p129 = por %p127, %p128
      %p130 = scmp.le.s32.totalorder 1, %s18
      %p131 = scmp.lt.s32.totalorder %s18, 3
      %p132 = pnand %p130, %p131
      %p133 = pneg %p132
      // Predicated region
      $region9: #{tpu_custom_call.1} parent=5 // pred_check
        _
      $region10: #{tpu_custom_call.1} parent=5 // pred_check_branch
        %135 = sbr.rel (%p132) target = $region12
      $region11: #{tpu_custom_call.1} parent=5 // pred_region
        %s136 = ssub.s32 %s18, 1
      $region12: #{tpu_custom_call.1} parent=5 // pred_fallthru
        _
      %p137 = scmp.lt.s32.totalorder %s18, 2
      // Predicated region
      $region13: #{tpu_custom_call.1} parent=5 // pred_check
        %p138 = pneg %p137
      $region14: #{tpu_custom_call.1} parent=5 // pred_check_branch
        %140 = sbr.rel (%p138) target = $region16
      $region15: #{tpu_custom_call.1} parent=5 // pred_region
        // Predicated region
        $region17: #{tpu_custom_call.1} parent=15 // pred_check
          %p141 = pneg %p38
        $region18: #{tpu_custom_call.1} parent=15 // pred_check_branch
          %143 = sbr.rel (%p141) target = $region20
        $region19: #{tpu_custom_call.1} parent=15 // pred_region
          %s144 = sand.u32 %s28, 1
          %s145 = scalar_lea.sflag [#allocation3], %s144
          %s146 = sand.u32 %s28, 1
          %s147 = smul.addr %s146, 64
          %s148 = scalar_lea.vmem [#allocation2], %s147
          %s150 = ssub.s32 1024, 1024
          %151 = vsyncadd %s145, %s150
          %s152 = smul.addr %s18, 128
          %s153 = scalar_lea.hbm %s0, %s152
          %s154 = sshll.u32 %s148, 4
          %s155 = int_to_ptr.vmem [resolvable:$true] %s154
          %160 = dma.hbm_to_vmem [thread:$0]  %s153, 1024, %s155, %s145, 256, 128, 8
        $region20: #{tpu_custom_call.1} parent=15 // pred_fallthru
          _
        // Predicated region
        $region21: #{tpu_custom_call.1} parent=15 // pred_check
          %p161 = pneg %p64
        $region22: #{tpu_custom_call.1} parent=15 // pred_check_branch
          %163 = sbr.rel (%p161) target = $region24
        $region23: #{tpu_custom_call.1} parent=15 // pred_region
          %s164 = sand.u32 %s18, 1
          %s165 = scalar_lea.sflag [#allocation6], %s164
          %s166 = sand.u32 %s54, 1
          %s167 = smul.addr %s166, 16
          %s168 = scalar_lea.vmem [#allocation5], %s167
          %s170 = ssub.s32 256, 256
          %171 = vsyncadd %s165, %s170
          %s172 = smul.addr %s18, 128
          %s173 = scalar_lea.hbm %s1, %s172
          %s174 = sshll.u32 %s168, 4
          %s175 = int_to_ptr.vmem [resolvable:$true] %s174
          %180 = dma.hbm_to_vmem [thread:$0]  %s173, 256, %s175, %s165, 256, 128, 8
        $region24: #{tpu_custom_call.1} parent=15 // pred_fallthru
          _
        // Predicated region
        $region25: #{tpu_custom_call.1} parent=15 // pred_check
          %p181 = pneg %p90
        $region26: #{tpu_custom_call.1} parent=15 // pred_check_branch
          %183 = sbr.rel (%p181) target = $region28
        $region27: #{tpu_custom_call.1} parent=15 // pred_region
          %s184 = sand.u32 %s18, 1
          %s185 = scalar_lea.sflag [#allocation6], %s184
          %s186 = sand.u32 %s80, 1
          %s187 = smul.addr %s186, 4
          %s188 = scalar_lea.vmem [#allocation7], %s187
          %s190 = ssub.s32 64, 64
          %191 = vsyncadd %s185, %s190
          %s192 = smul.addr %s18, 64
          %s193 = scalar_lea.hbm %s2, %s192
          %s195 = sshll.u32 %s188, 4
          %s196 = int_to_ptr.vmem [resolvable:$true] %s195
          %198 = dma.hbm_to_vmem [thread:$0]  %s193, 64, %s196, %s185
        $region28: #{tpu_custom_call.1} parent=15 // pred_fallthru
          _
      $region16: #{tpu_custom_call.1} parent=5 // pred_fallthru
        _
      %p199 = scmp.le.s32.totalorder 1, %s18
      %p200 = scmp.lt.s32.totalorder %s18, 3
      %p201 = pnand %p199, %p200
      %p202 = pneg %p201
      // Predicated region
      $region29: #{tpu_custom_call.1} parent=5 // pred_check
        _
      $region30: #{tpu_custom_call.1} parent=5 // pred_check_branch
        %204 = sbr.rel (%p201) target = $region32
      $region31: #{tpu_custom_call.1} parent=5 // pred_region
        %s205 = ssub.s32 %s18, 1
        %s206 = sand.u32 %s31, 1
        %s207 = scalar_lea.sflag [#allocation3], %s206
        %s208 = sand.u32 %s31, 1
        %s209 = smul.addr %s208, 64
        %s210 = scalar_lea.vmem [#allocation2], %s209
        // Predicated region
        $region33: #{tpu_custom_call.1} parent=31 // pred_check
          %p211 = pneg %p44
        $region34: #{tpu_custom_call.1} parent=31 // pred_check_branch
          %213 = sbr.rel (%p211) target = $region36
        $region35: #{tpu_custom_call.1} parent=31 // pred_region
          %214 = dma.done %s207, 1024
        $region36: #{tpu_custom_call.1} parent=31 // pred_fallthru
          _
        %s215 = sand.u32 %s23, 1
        %s216 = scalar_lea.sflag [#allocation6], %s215
        %s217 = sand.u32 %s57, 1
        %s218 = smul.addr %s217, 16
        %s219 = scalar_lea.vmem [#allocation5], %s218
        // Predicated region
        $region37: #{tpu_custom_call.1} parent=31 // pred_check
          %p220 = pneg %p70
        $region38: #{tpu_custom_call.1} parent=31 // pred_check_branch
          %222 = sbr.rel (%p220) target = $region40
        $region39: #{tpu_custom_call.1} parent=31 // pred_region
          %223 = dma.done %s216, 256
        $region40: #{tpu_custom_call.1} parent=31 // pred_fallthru
          _
        %s224 = sand.u32 %s23, 1
        %s225 = scalar_lea.sflag [#allocation6], %s224
        %s226 = sand.u32 %s83, 1
        %s227 = smul.addr %s226, 4
        %s228 = scalar_lea.vmem [#allocation7], %s227
        // Predicated region
        $region41: #{tpu_custom_call.1} parent=31 // pred_check
          %p229 = pneg %p96
        $region42: #{tpu_custom_call.1} parent=31 // pred_check_branch
          %231 = sbr.rel (%p229) target = $region44
        $region43: #{tpu_custom_call.1} parent=31 // pred_region
          %232 = dma.done %s225, 64
        $region44: #{tpu_custom_call.1} parent=31 // pred_fallthru
          _
        %s233 = sand.u32 %s31, 1
        %s234 = scalar_lea.sflag [#allocation3], %s233
        %s235 = sand.u32 %s31, 1
        %s236 = smul.addr %s235, 64
        %s237 = scalar_lea.vmem [#allocation2], %s236
        %p238 = pneg %p44
        %p239 = pneg %p41
        %s240 = sand.u32 %s23, 1
        %s241 = scalar_lea.sflag [#allocation6], %s240
        %s242 = sand.u32 %s57, 1
        %s243 = smul.addr %s242, 16
        %s244 = scalar_lea.vmem [#allocation5], %s243
        %p245 = pneg %p70
        %p246 = pneg %p67
        %s247 = sand.u32 %s23, 1
        %s248 = scalar_lea.sflag [#allocation6], %s247
        %s249 = sand.u32 %s83, 1
        %s250 = smul.addr %s249, 4
        %s251 = scalar_lea.vmem [#allocation7], %s250
        %p252 = pneg %p96
        %p253 = pneg %p93
        %p254 = pneg %p122
        %p255 = pneg %p119
        %s256 = sand.u32 %s109, 1
        %s257 = scalar_lea.sflag [#allocation4], %s256
        %s258 = sand.u32 %s109, 1
        %s259 = smul.addr %s258, 4
        %s260 = scalar_lea.vmem [#allocation8], %s259
        %v261 = vld [vmem:[%s219] sm:$0xff]
        %v262 = vld [vmem:[%s219 + $0x8] sm:$0xff]
        %v263 = vld [vmem:[%s228] sm:$0x1]
        %v264 = vld [vmem:[%s228 + $0x1] sm:$0x1]
        %v265 = vld [vmem:[%s228 + $0x2] sm:$0x1]
        %v266 = vld [vmem:[%s228 + $0x3] sm:$0x1]
        %v267 = vld [vmem:[%s219] sm:$0x1]
        %v268 = vld [vmem:[%s219 + $0x1] sm:$0x1]
        %v269 = vld [vmem:[%s219 + $0x2] sm:$0x1]
        %v270 = vld [vmem:[%s219 + $0x3] sm:$0x1]
        %v271 = vld [vmem:[%s219 + $0x4] sm:$0x1]
        %v272 = vld [vmem:[%s219 + $0x5] sm:$0x1]
        %v273 = vld [vmem:[%s219 + $0x6] sm:$0x1]
        %v274 = vld [vmem:[%s219 + $0x7] sm:$0x1]
        %v275 = vld [vmem:[%s210] sm:$0x1]
        %v276 = vmul.f32 %v275, %v275
        %s277 = scalar_lea.vmem %s210, 16 [#allocation2]
        %v278 = vld [vmem:[%s277] sm:$0x1]
        %v279 = vmul.f32 %v278, %v278
        %v280 = vadd.f32 %v276, %v279
        %s281 = scalar_lea.vmem %s210, 32 [#allocation2]
        %v282 = vld [vmem:[%s281] sm:$0x1]
        %v283 = vmul.f32 %v282, %v282
        %v284 = vadd.f32 %v280, %v283
        %s285 = scalar_lea.vmem %s210, 48 [#allocation2]
        %v286 = vld [vmem:[%s285] sm:$0x1]
        %v287 = vmul.f32 %v286, %v286
        %v288 = vadd.f32 %v284, %v287
        %vm289 = vcmp.gt.f32.partialorder %v288, 0.0
        %v290 = vsel %vm289, %v288, 1.0
        %v291 = vrcp.pop %v290
        %v292 = vmul.f32 1.0, %v291
        %v293 = vsel %vm289, %v292, 0.0
        %v294 = vld [vmem:[%s210 + $0x1] sm:$0x1]
        %v295 = vmul.f32 %v294, %v294
        %v296 = vld [vmem:[%s277 + $0x1] sm:$0x1]
        %v297 = vmul.f32 %v296, %v296
        %v298 = vadd.f32 %v295, %v297
        %v299 = vld [vmem:[%s281 + $0x1] sm:$0x1]
        %v300 = vmul.f32 %v299, %v299
        %v301 = vadd.f32 %v298, %v300
        %v302 = vld [vmem:[%s285 + $0x1] sm:$0x1]
        %v303 = vmul.f32 %v302, %v302
        %v304 = vadd.f32 %v301, %v303
        %vm305 = vcmp.gt.f32.partialorder %v304, 0.0
        %v306 = vsel %vm305, %v304, 1.0
        %v307 = vrcp.pop %v306
        %v308 = vmul.f32 1.0, %v307
        %v309 = vsel %vm305, %v308, 0.0
        %v310 = vld [vmem:[%s210 + $0x2] sm:$0x1]
        %v311 = vmul.f32 %v310, %v310
        %v312 = vld [vmem:[%s277 + $0x2] sm:$0x1]
        %v313 = vmul.f32 %v312, %v312
        %v314 = vadd.f32 %v311, %v313
        %v315 = vld [vmem:[%s281 + $0x2] sm:$0x1]
        %v316 = vmul.f32 %v315, %v315
        %v317 = vadd.f32 %v314, %v316
        %v318 = vld [vmem:[%s285 + $0x2] sm:$0x1]
        %v319 = vmul.f32 %v318, %v318
        %v320 = vadd.f32 %v317, %v319
        %vm321 = vcmp.gt.f32.partialorder %v320, 0.0
        %v322 = vsel %vm321, %v320, 1.0
        %v323 = vrcp.pop %v322
        %v324 = vmul.f32 1.0, %v323
        %v325 = vsel %vm321, %v324, 0.0
        %v326 = vld [vmem:[%s210 + $0x3] sm:$0x1]
        %v327 = vmul.f32 %v326, %v326
        %v328 = vld [vmem:[%s277 + $0x3] sm:$0x1]
        %v329 = vmul.f32 %v328, %v328
        %v330 = vadd.f32 %v327, %v329
        %v331 = vld [vmem:[%s281 + $0x3] sm:$0x1]
        %v332 = vmul.f32 %v331, %v331
        %v333 = vadd.f32 %v330, %v332
        %v334 = vld [vmem:[%s285 + $0x3] sm:$0x1]
        %v335 = vmul.f32 %v334, %v334
        %v336 = vadd.f32 %v333, %v335
        %vm337 = vcmp.gt.f32.partialorder %v336, 0.0
        %v338 = vsel %vm337, %v336, 1.0
        %v339 = vrcp.pop %v338
        %v340 = vmul.f32 1.0, %v339
        %v341 = vsel %vm337, %v340, 0.0
        %v342 = vld [vmem:[%s210 + $0x4] sm:$0x1]
        %v343 = vmul.f32 %v342, %v342
        %v344 = vld [vmem:[%s277 + $0x4] sm:$0x1]
        %v345 = vmul.f32 %v344, %v344
        %v346 = vadd.f32 %v343, %v345
        %v347 = vld [vmem:[%s281 + $0x4] sm:$0x1]
        %v348 = vmul.f32 %v347, %v347
        %v349 = vadd.f32 %v346, %v348
        %v350 = vld [vmem:[%s285 + $0x4] sm:$0x1]
        %v351 = vmul.f32 %v350, %v350
        %v352 = vadd.f32 %v349, %v351
        %vm353 = vcmp.gt.f32.partialorder %v352, 0.0
        %v354 = vsel %vm353, %v352, 1.0
        %v355 = vrcp.pop %v354
        %v356 = vmul.f32 1.0, %v355
        %v357 = vsel %vm353, %v356, 0.0
        %v358 = vld [vmem:[%s210 + $0x5] sm:$0x1]
        %v359 = vmul.f32 %v358, %v358
        %v360 = vld [vmem:[%s277 + $0x5] sm:$0x1]
        %v361 = vmul.f32 %v360, %v360
        %v362 = vadd.f32 %v359, %v361
        %v363 = vld [vmem:[%s281 + $0x5] sm:$0x1]
        %v364 = vmul.f32 %v363, %v363
        %v365 = vadd.f32 %v362, %v364
        %v366 = vld [vmem:[%s285 + $0x5] sm:$0x1]
        %v367 = vmul.f32 %v366, %v366
        %v368 = vadd.f32 %v365, %v367
        %vm369 = vcmp.gt.f32.partialorder %v368, 0.0
        %v370 = vsel %vm369, %v368, 1.0
        %v371 = vrcp.pop %v370
        %v372 = vmul.f32 1.0, %v371
        %v373 = vsel %vm369, %v372, 0.0
        %v374 = vld [vmem:[%s210 + $0x6] sm:$0x1]
        %v375 = vmul.f32 %v374, %v374
        %v376 = vld [vmem:[%s277 + $0x6] sm:$0x1]
        %v377 = vmul.f32 %v376, %v376
        %v378 = vadd.f32 %v375, %v377
        %v379 = vld [vmem:[%s281 + $0x6] sm:$0x1]
        %v380 = vmul.f32 %v379, %v379
        %v381 = vadd.f32 %v378, %v380
        %v382 = vld [vmem:[%s285 + $0x6] sm:$0x1]
        %v383 = vmul.f32 %v382, %v382
        %v384 = vadd.f32 %v381, %v383
        %vm385 = vcmp.gt.f32.partialorder %v384, 0.0
        %v386 = vsel %vm385, %v384, 1.0
        %v387 = vrcp.pop %v386
        %v388 = vmul.f32 1.0, %v387
        %v389 = vsel %vm385, %v388, 0.0
        %v390 = vld [vmem:[%s210 + $0x7] sm:$0x1]
        %v391 = vmul.f32 %v390, %v390
        %v392 = vld [vmem:[%s277 + $0x7] sm:$0x1]
        %v393 = vmul.f32 %v392, %v392
        %v394 = vadd.f32 %v391, %v393
        %v395 = vld [vmem:[%s281 + $0x7] sm:$0x1]
        %v396 = vmul.f32 %v395, %v395
        %v397 = vadd.f32 %v394, %v396
        %v398 = vld [vmem:[%s285 + $0x7] sm:$0x1]
        %v399 = vmul.f32 %v398, %v398
        %v400 = vadd.f32 %v397, %v399
        %vm401 = vcmp.gt.f32.partialorder %v400, 0.0
        %v402 = vsel %vm401, %v400, 1.0
        %v403 = vrcp.pop %v402
        %v404 = vmul.f32 1.0, %v403
        %v405 = vsel %vm401, %v404, 0.0
        %v406 = vmul.f32 %v275, 0.0
        %v407 = vmul.f32 %v278, 0.0
        %v408 = vadd.f32 %v406, %v407
        %v409 = vmul.f32 %v282, 0.0
        %v410 = vadd.f32 %v408, %v409
        %v411 = vmul.f32 %v286, 0.0
        %v412 = vadd.f32 %v410, %v411
        %v413 = vsub.f32 %v267, %v412
        %v414 = vmul.f32 %v413, %v293
        %v415 = vmin.f32 %v414, 0.0
        %v416 = vmul.f32 %v415, %v275
        %v417 = vadd.f32 %v416, 0.0
        %v418 = vmul.f32 %v415, %v278
        %v419 = vadd.f32 %v418, 0.0
        %v420 = vmul.f32 %v415, %v282
        %v421 = vadd.f32 %v420, 0.0
        %v422 = vmul.f32 %v415, %v286
        %v423 = vadd.f32 %v422, 0.0
        %v424 = vmul.f32 %v294, %v417
        %v425 = vmul.f32 %v296, %v419
        %v426 = vadd.f32 %v424, %v425
        %v427 = vmul.f32 %v299, %v421
        %v428 = vadd.f32 %v426, %v427
        %v429 = vmul.f32 %v302, %v423
        %v430 = vadd.f32 %v428, %v429
        %v431 = vsub.f32 %v268, %v430
        %v432 = vmul.f32 %v431, %v309
        %v433 = vmin.f32 %v432, 0.0
        %v434 = vmul.f32 %v433, %v294
        %v435 = vadd.f32 %v417, %v434
        %v436 = vmul.f32 %v433, %v296
        %v437 = vadd.f32 %v419, %v436
        %v438 = vmul.f32 %v433, %v299
        %v439 = vadd.f32 %v421, %v438
        %v440 = vmul.f32 %v433, %v302
        %v441 = vadd.f32 %v423, %v440
        %v442 = vmul.f32 %v310, %v435
        %v443 = vmul.f32 %v312, %v437
        %v444 = vadd.f32 %v442, %v443
        %v445 = vmul.f32 %v315, %v439
        %v446 = vadd.f32 %v444, %v445
        %v447 = vmul.f32 %v318, %v441
        %v448 = vadd.f32 %v446, %v447
        %v449 = vsub.f32 %v269, %v448
        %v450 = vmul.f32 %v449, %v325
        %v451 = vmin.f32 %v450, 0.0
        %v452 = vmul.f32 %v451, %v310
        %v453 = vadd.f32 %v435, %v452
        %v454 = vmul.f32 %v451, %v312
        %v455 = vadd.f32 %v437, %v454
        %v456 = vmul.f32 %v451, %v315
        %v457 = vadd.f32 %v439, %v456
        %v458 = vmul.f32 %v451, %v318
        %v459 = vadd.f32 %v441, %v458
        %v460 = vmul.f32 %v326, %v453
        %v461 = vmul.f32 %v328, %v455
        %v462 = vadd.f32 %v460, %v461
        %v463 = vmul.f32 %v331, %v457
        %v464 = vadd.f32 %v462, %v463
        %v465 = vmul.f32 %v334, %v459
        %v466 = vadd.f32 %v464, %v465
        %v467 = vsub.f32 %v270, %v466
        %v468 = vmul.f32 %v467, %v341
        %v469 = vmin.f32 %v468, 0.0
        %v470 = vmul.f32 %v469, %v326
        %v471 = vadd.f32 %v453, %v470
        %v472 = vmul.f32 %v469, %v328
        %v473 = vadd.f32 %v455, %v472
        %v474 = vmul.f32 %v469, %v331
        %v475 = vadd.f32 %v457, %v474
        %v476 = vmul.f32 %v469, %v334
        %v477 = vadd.f32 %v459, %v476
        %v478 = vmul.f32 %v342, %v471
        %v479 = vmul.f32 %v344, %v473
        %v480 = vadd.f32 %v478, %v479
        %v481 = vmul.f32 %v347, %v475
        %v482 = vadd.f32 %v480, %v481
        %v483 = vmul.f32 %v350, %v477
        %v484 = vadd.f32 %v482, %v483
        %v485 = vsub.f32 %v271, %v484
        %v486 = vmul.f32 %v485, %v357
        %v487 = vmin.f32 %v486, 0.0
        %v488 = vmul.f32 %v487, %v342
        %v489 = vadd.f32 %v471, %v488
        %v490 = vmul.f32 %v487, %v344
        %v491 = vadd.f32 %v473, %v490
        %v492 = vmul.f32 %v487, %v347
        %v493 = vadd.f32 %v475, %v492
        %v494 = vmul.f32 %v487, %v350
        %v495 = vadd.f32 %v477, %v494
        %v496 = vmul.f32 %v358, %v489
        %v497 = vmul.f32 %v360, %v491
        %v498 = vadd.f32 %v496, %v497
        %v499 = vmul.f32 %v363, %v493
        %v500 = vadd.f32 %v498, %v499
        %v501 = vmul.f32 %v366, %v495
        %v502 = vadd.f32 %v500, %v501
        %v503 = vsub.f32 %v272, %v502
        %v504 = vmul.f32 %v503, %v373
        %v505 = vmin.f32 %v504, 0.0
        %v506 = vmul.f32 %v505, %v358
        %v507 = vadd.f32 %v489, %v506
        %v508 = vmul.f32 %v505, %v360
        %v509 = vadd.f32 %v491, %v508
        %v510 = vmul.f32 %v505, %v363
        %v511 = vadd.f32 %v493, %v510
        %v512 = vmul.f32 %v505, %v366
        %v513 = vadd.f32 %v495, %v512
        %v514 = vmul.f32 %v374, %v507
        %v515 = vmul.f32 %v376, %v509
        %v516 = vadd.f32 %v514, %v515
        %v517 = vmul.f32 %v379, %v511
        %v518 = vadd.f32 %v516, %v517
        %v519 = vmul.f32 %v382, %v513
        %v520 = vadd.f32 %v518, %v519
        %v521 = vsub.f32 %v273, %v520
        %v522 = vmul.f32 %v521, %v389
        %v523 = vmin.f32 %v522, 0.0
        %v524 = vmul.f32 %v523, %v374
        %v525 = vadd.f32 %v507, %v524
        %v526 = vmul.f32 %v523, %v376
        %v527 = vadd.f32 %v509, %v526
        %v528 = vmul.f32 %v523, %v379
        %v529 = vadd.f32 %v511, %v528
        %v530 = vmul.f32 %v523, %v382
        %v531 = vadd.f32 %v513, %v530
        %v532 = vmul.f32 %v390, %v525
        %v533 = vmul.f32 %v392, %v527
        %v534 = vadd.f32 %v532, %v533
        %v535 = vmul.f32 %v395, %v529
        %v536 = vadd.f32 %v534, %v535
        %v537 = vmul.f32 %v398, %v531
        %v538 = vadd.f32 %v536, %v537
        %v539 = vsub.f32 %v274, %v538
        %v540 = vmul.f32 %v539, %v405
        %v541 = vmin.f32 %v540, 0.0
        %v542 = vmul.f32 %v541, %v390
        %v543 = vadd.f32 %v525, %v542
        %v544 = vmul.f32 %v541, %v392
        %v545 = vadd.f32 %v527, %v544
        %v546 = vmul.f32 %v541, %v395
        %v547 = vadd.f32 %v529, %v546
        %v548 = vmul.f32 %v541, %v398
        %v549 = vadd.f32 %v531, %v548
        %v550 = vmul.f32 %v275, %v543
        %v551 = vmul.f32 %v278, %v545
        %v552 = vadd.f32 %v550, %v551
        %v553 = vmul.f32 %v282, %v547
        %v554 = vadd.f32 %v552, %v553
        %v555 = vmul.f32 %v286, %v549
        %v556 = vadd.f32 %v554, %v555
        %v557 = vsub.f32 %v267, %v556
        %v558 = vmul.f32 %v557, %v293
        %v559 = vmin.f32 %v558, 0.0
        %v560 = vmul.f32 %v559, %v275
        %v561 = vadd.f32 %v543, %v560
        %v562 = vmul.f32 %v559, %v278
        %v563 = vadd.f32 %v545, %v562
        %v564 = vmul.f32 %v559, %v282
        %v565 = vadd.f32 %v547, %v564
        %v566 = vmul.f32 %v559, %v286
        %v567 = vadd.f32 %v549, %v566
        %v568 = vmul.f32 %v294, %v561
        %v569 = vmul.f32 %v296, %v563
        %v570 = vadd.f32 %v568, %v569
        %v571 = vmul.f32 %v299, %v565
        %v572 = vadd.f32 %v570, %v571
        %v573 = vmul.f32 %v302, %v567
        %v574 = vadd.f32 %v572, %v573
        %v575 = vsub.f32 %v268, %v574
        %v576 = vmul.f32 %v575, %v309
        %v577 = vmin.f32 %v576, 0.0
        %v578 = vmul.f32 %v577, %v294
        %v579 = vadd.f32 %v561, %v578
        %v580 = vmul.f32 %v577, %v296
        %v581 = vadd.f32 %v563, %v580
        %v582 = vmul.f32 %v577, %v299
        %v583 = vadd.f32 %v565, %v582
        %v584 = vmul.f32 %v577, %v302
        %v585 = vadd.f32 %v567, %v584
        %v586 = vmul.f32 %v310, %v579
        %v587 = vmul.f32 %v312, %v581
        %v588 = vadd.f32 %v586, %v587
        %v589 = vmul.f32 %v315, %v583
        %v590 = vadd.f32 %v588, %v589
        %v591 = vmul.f32 %v318, %v585
        %v592 = vadd.f32 %v590, %v591
        %v593 = vsub.f32 %v269, %v592
        %v594 = vmul.f32 %v593, %v325
        %v595 = vmin.f32 %v594, 0.0
        %v596 = vmul.f32 %v595, %v310
        %v597 = vadd.f32 %v579, %v596
        %v598 = vmul.f32 %v595, %v312
        %v599 = vadd.f32 %v581, %v598
        %v600 = vmul.f32 %v595, %v315
        %v601 = vadd.f32 %v583, %v600
        %v602 = vmul.f32 %v595, %v318
        %v603 = vadd.f32 %v585, %v602
        %v604 = vmul.f32 %v326, %v597
        %v605 = vmul.f32 %v328, %v599
        %v606 = vadd.f32 %v604, %v605
        %v607 = vmul.f32 %v331, %v601
        %v608 = vadd.f32 %v606, %v607
        %v609 = vmul.f32 %v334, %v603
        %v610 = vadd.f32 %v608, %v609
        %v611 = vsub.f32 %v270, %v610
        %v612 = vmul.f32 %v611, %v341
        %v613 = vmin.f32 %v612, 0.0
        %v614 = vmul.f32 %v613, %v326
        %v615 = vadd.f32 %v597, %v614
        %v616 = vmul.f32 %v613, %v328
        %v617 = vadd.f32 %v599, %v616
        %v618 = vmul.f32 %v613, %v331
        %v619 = vadd.f32 %v601, %v618
        %v620 = vmul.f32 %v613, %v334
        %v621 = vadd.f32 %v603, %v620
        %v622 = vmul.f32 %v342, %v615
        %v623 = vmul.f32 %v344, %v617
        %v624 = vadd.f32 %v622, %v623
        %v625 = vmul.f32 %v347, %v619
        %v626 = vadd.f32 %v624, %v625
        %v627 = vmul.f32 %v350, %v621
        %v628 = vadd.f32 %v626, %v627
        %v629 = vsub.f32 %v271, %v628
        %v630 = vmul.f32 %v629, %v357
        %v631 = vmin.f32 %v630, 0.0
        %v632 = vmul.f32 %v631, %v342
        %v633 = vadd.f32 %v615, %v632
        %v634 = vmul.f32 %v631, %v344
        %v635 = vadd.f32 %v617, %v634
        %v636 = vmul.f32 %v631, %v347
        %v637 = vadd.f32 %v619, %v636
        %v638 = vmul.f32 %v631, %v350
        %v639 = vadd.f32 %v621, %v638
        %v640 = vmul.f32 %v358, %v633
        %v641 = vmul.f32 %v360, %v635
        %v642 = vadd.f32 %v640, %v641
        %v643 = vmul.f32 %v363, %v637
        %v644 = vadd.f32 %v642, %v643
        %v645 = vmul.f32 %v366, %v639
        %v646 = vadd.f32 %v644, %v645
        %v647 = vsub.f32 %v272, %v646
        %v648 = vmul.f32 %v647, %v373
        %v649 = vmin.f32 %v648, 0.0
        %v650 = vmul.f32 %v649, %v358
        %v651 = vadd.f32 %v633, %v650
        %v652 = vmul.f32 %v649, %v360
        %v653 = vadd.f32 %v635, %v652
        %v654 = vmul.f32 %v649, %v363
        %v655 = vadd.f32 %v637, %v654
        %v656 = vmul.f32 %v649, %v366
        %v657 = vadd.f32 %v639, %v656
        %v658 = vmul.f32 %v374, %v651
        %v659 = vmul.f32 %v376, %v653
        %v660 = vadd.f32 %v658, %v659
        %v661 = vmul.f32 %v379, %v655
        %v662 = vadd.f32 %v660, %v661
        %v663 = vmul.f32 %v382, %v657
        %v664 = vadd.f32 %v662, %v663
        %v665 = vsub.f32 %v273, %v664
        %v666 = vmul.f32 %v665, %v389
        %v667 = vmin.f32 %v666, 0.0
        %v668 = vmul.f32 %v667, %v374
        %v669 = vadd.f32 %v651, %v668
        %v670 = vmul.f32 %v667, %v376
        %v671 = vadd.f32 %v653, %v670
        %v672 = vmul.f32 %v667, %v379
        %v673 = vadd.f32 %v655, %v672
        %v674 = vmul.f32 %v667, %v382
        %v675 = vadd.f32 %v657, %v674
        %v676 = vmul.f32 %v390, %v669
        %v677 = vmul.f32 %v392, %v671
        %v678 = vadd.f32 %v676, %v677
        %v679 = vmul.f32 %v395, %v673
        %v680 = vadd.f32 %v678, %v679
        %v681 = vmul.f32 %v398, %v675
        %v682 = vadd.f32 %v680, %v681
        %v683 = vsub.f32 %v274, %v682
        %v684 = vmul.f32 %v683, %v405
        %v685 = vmin.f32 %v684, 0.0
        %v686 = vmul.f32 %v685, %v390
        %v687 = vadd.f32 %v669, %v686
        %v688 = vmul.f32 %v685, %v392
        %v689 = vadd.f32 %v671, %v688
        %v690 = vmul.f32 %v685, %v395
        %v691 = vadd.f32 %v673, %v690
        %v692 = vmul.f32 %v685, %v398
        %v693 = vadd.f32 %v675, %v692
        %v694 = vld [vmem:[%s210] sm:$0xff]
        %v695 = vld [vmem:[%s210 + $0x8] sm:$0xff]
        %v696 = vld [vmem:[%s277] sm:$0xff]
        %v697 = vld [vmem:[%s277 + $0x8] sm:$0xff]
        %v698 = vld [vmem:[%s281] sm:$0xff]
        %v699 = vld [vmem:[%s281 + $0x8] sm:$0xff]
        %v700 = vld [vmem:[%s285] sm:$0xff]
        %v701 = vld [vmem:[%s285 + $0x8] sm:$0xff]
        %v702 = vand.u32 2147483647, %v694
        %v703 = vand.u32 2147483647, %v695
        %v704 = vlaneseq
        %v705 = vshrl.u32 %v704, 7
        %v706 = vsub.s32 0, %v705
        %v707 = vrot.slane %v687, %v706
        %v708 = vmul.f32 %v694, %v707
        %v709 = vmul.f32 %v695, %v707
        %v710 = vand.u32 2147483647, %v696
        %v711 = vand.u32 2147483647, %v697
        %v712 = vadd.f32 %v702, %v710
        %v713 = vadd.f32 %v703, %v711
        %v714 = vlaneseq
        %v715 = vshrl.u32 %v714, 7
        %v716 = vsub.s32 0, %v715
        %v717 = vrot.slane %v689, %v716
        %v718 = vmul.f32 %v696, %v717
        %v719 = vmul.f32 %v697, %v717
        %v720 = vadd.f32 %v708, %v718
        %v721 = vadd.f32 %v709, %v719
        %v722 = vand.u32 2147483647, %v698
        %v723 = vand.u32 2147483647, %v699
        %v724 = vadd.f32 %v712, %v722
        %v725 = vadd.f32 %v713, %v723
        %v726 = vlaneseq
        %v727 = vshrl.u32 %v726, 7
        %v728 = vsub.s32 0, %v727
        %v729 = vrot.slane %v691, %v728
        %v730 = vmul.f32 %v698, %v729
        %v731 = vmul.f32 %v699, %v729
        %v732 = vadd.f32 %v720, %v730
        %v733 = vadd.f32 %v721, %v731
        %v734 = vand.u32 2147483647, %v700
        %v735 = vand.u32 2147483647, %v701
        %v736 = vadd.f32 %v724, %v734
        %v737 = vadd.f32 %v725, %v735
        %v738 = vlaneseq
        %v739 = vshrl.u32 %v738, 7
        %v740 = vsub.s32 0, %v739
        %v741 = vrot.slane %v693, %v740
        %v742 = vmul.f32 %v700, %v741
        %v743 = vmul.f32 %v701, %v741
        %v744 = vadd.f32 %v732, %v742
        %v745 = vadd.f32 %v733, %v743
        %v746 = vsub.f32 %v261, %v744
        %v747 = vsub.f32 %v262, %v745
        %vm748 = vcmp.gt.f32.partialorder %v736, 0.0
        %vm749 = vcmp.gt.f32.partialorder %v737, 0.0
        %v750 = vand.u32 2147483647, %v746
        %v751 = vand.u32 2147483647, %v747
        %v752 = vsel %vm748, %v736, 1.0
        %v753 = vsel %vm749, %v737, 1.0
        %v754 = vrcp.pop %v752
        %v755 = vmul.f32 %v750, %v754
        %v756 = vrcp.pop %v753
        %v757 = vmul.f32 %v751, %v756
        %v758 = vsel %vm748, %v755, inf
        %v759 = vsel %vm749, %v757, inf
        %v760 = vmin.f32 %v758, %v759
        %v761 = vrot.slane %v760, 4
        %v762 = vmin.f32 %v760, %v761
        %v763 = vrot.slane %v762, 2
        %v764 = vmin.f32 %v762, %v763
        %v765 = vrot.slane %v764, 1
        %v766 = vmin.f32 %v764, %v765
        %v767 = vmul.f32 %v263, 2.0
        %v768 = vsub.f32 %v767, 1.0
        %v769 = vmul.f32 %v768, %v766
        %v770 = vadd.f32 %v769, %v687
        %v771 = vmul.f32 %v264, 2.0
        %v772 = vsub.f32 %v771, 1.0
        %v773 = vmul.f32 %v772, %v766
        %v774 = vadd.f32 %v773, %v689
        %v775 = vmul.f32 %v265, 2.0
        %v776 = vsub.f32 %v775, 1.0
        %v777 = vmul.f32 %v776, %v766
        %v778 = vadd.f32 %v777, %v691
        %v779 = vmul.f32 %v266, 2.0
        %v780 = vsub.f32 %v779, 1.0
        %v781 = vmul.f32 %v780, %v766
        %v782 = vadd.f32 %v781, %v693
        %v783 = vsub.f32 %v687, %v770
        %v784 = vsub.f32 %v689, %v774
        %v785 = vsub.f32 %v691, %v778
        %v786 = vsub.f32 %v693, %v782
        %v787 = vlaneseq
        %v788 = vshrl.u32 %v787, 7
        %v789 = vsub.s32 0, %v788
        %v790 = vrot.slane %v783, %v789
        %v791 = vmul.f32 %v694, %v790
        %v792 = vmul.f32 %v695, %v790
        %v793 = vlaneseq
        %v794 = vshrl.u32 %v793, 7
        %v795 = vsub.s32 0, %v794
        %v796 = vrot.slane %v770, %v795
        %v797 = vmul.f32 %v694, %v796
        %v798 = vmul.f32 %v695, %v796
        %v799 = vlaneseq
        %v800 = vshrl.u32 %v799, 7
        %v801 = vsub.s32 0, %v800
        %v802 = vrot.slane %v784, %v801
        %v803 = vmul.f32 %v696, %v802
        %v804 = vmul.f32 %v697, %v802
        %v805 = vadd.f32 %v791, %v803
        %v806 = vadd.f32 %v792, %v804
        %v807 = vlaneseq
        %v808 = vshrl.u32 %v807, 7
        %v809 = vsub.s32 0, %v808
        %v810 = vrot.slane %v774, %v809
        %v811 = vmul.f32 %v696, %v810
        %v812 = vmul.f32 %v697, %v810
        %v813 = vadd.f32 %v797, %v811
        %v814 = vadd.f32 %v798, %v812
        %v815 = vlaneseq
        %v816 = vshrl.u32 %v815, 7
        %v817 = vsub.s32 0, %v816
        %v818 = vrot.slane %v785, %v817
        %v819 = vmul.f32 %v698, %v818
        %v820 = vmul.f32 %v699, %v818
        %v821 = vadd.f32 %v805, %v819
        %v822 = vadd.f32 %v806, %v820
        %v823 = vlaneseq
        %v824 = vshrl.u32 %v823, 7
        %v825 = vsub.s32 0, %v824
        %v826 = vrot.slane %v778, %v825
        %v827 = vmul.f32 %v698, %v826
        %v828 = vmul.f32 %v699, %v826
        %v829 = vadd.f32 %v813, %v827
        %v830 = vadd.f32 %v814, %v828
        %v831 = vlaneseq
        %v832 = vshrl.u32 %v831, 7
        %v833 = vsub.s32 0, %v832
        %v834 = vrot.slane %v786, %v833
        %v835 = vmul.f32 %v700, %v834
        %v836 = vmul.f32 %v701, %v834
        %v837 = vadd.f32 %v821, %v835
        %v838 = vadd.f32 %v822, %v836
        %v839 = vlaneseq
        %v840 = vshrl.u32 %v839, 7
        %v841 = vsub.s32 0, %v840
        %v842 = vrot.slane %v782, %v841
        %v843 = vmul.f32 %v700, %v842
        %v844 = vmul.f32 %v701, %v842
        %v845 = vadd.f32 %v829, %v843
        %v846 = vadd.f32 %v830, %v844
        %v847 = vsub.f32 %v261, %v845
        %v848 = vsub.f32 %v262, %v846
        %vm849 = vcmp.ne.f32.partialorder %v837, 0.0
        %vm850 = vcmp.ne.f32.partialorder %v838, 0.0
        %v851 = vsel %vm849, %v837, 1.0
        %v852 = vsel %vm850, %v838, 1.0
        %v853 = vrcp.pop %v851
        %v854 = vmul.f32 %v847, %v853
        %v855 = vrcp.pop %v852
        %v856 = vmul.f32 %v848, %v855
        %v857 = vmul.f32 %v783, %v783
        %v858 = vmul.f32 %v784, %v784
        %v859 = vadd.f32 %v857, %v858
        %v860 = vmul.f32 %v785, %v785
        %v861 = vadd.f32 %v859, %v860
        %v862 = vmul.f32 %v786, %v786
        %v863 = vadd.f32 %v861, %v862
        %v864 = vmul.f32 %v854, %v854
        %v865 = vmul.f32 %v856, %v856
        %v866 = vlaneseq
        %v867 = vshrl.u32 %v866, 7
        %v868 = vsub.s32 0, %v867
        %v869 = vrot.slane %v863, %v868
        %v870 = vmul.f32 %v864, %v869
        %v871 = vmul.f32 %v865, %v869
        %v872 = vand.u32 2147483647, %v854
        %v873 = vand.u32 2147483647, %v856
        %v874 = vand.u32 2147483647, %v770
        %v875 = vmul.f32 %v874, 1e-05
        %v876 = vadd.f32 %v875, 1e-08
        %v877 = vand.u32 2147483647, %v783
        %v878 = vlaneseq
        %v879 = vshrl.u32 %v878, 7
        %v880 = vsub.s32 0, %v879
        %v881 = vrot.slane %v877, %v880
        %v882 = vmul.f32 %v872, %v881
        %v883 = vmul.f32 %v873, %v881
        %v884 = vlaneseq
        %v885 = vshrl.u32 %v884, 7
        %v886 = vsub.s32 0, %v885
        %v887 = vrot.slane %v876, %v886
        %vm888 = vcmp.le.f32.partialorder %v882, %v887
        %vm889 = vcmp.le.f32.partialorder %v883, %v887
        %vm890 = vcmp.eq.f32.partialorder %v783, 0.0
        %v891 = vand.u32 2147483647, %v774
        %v892 = vmul.f32 %v891, 1e-05
        %v893 = vadd.f32 %v892, 1e-08
        %v894 = vand.u32 2147483647, %v784
        %v895 = vlaneseq
        %v896 = vshrl.u32 %v895, 7
        %v897 = vsub.s32 0, %v896
        %v898 = vrot.slane %v894, %v897
        %v899 = vmul.f32 %v872, %v898
        %v900 = vmul.f32 %v873, %v898
        %v901 = vlaneseq
        %v902 = vshrl.u32 %v901, 7
        %v903 = vsub.s32 0, %v902
        %v904 = vrot.slane %v893, %v903
        %vm905 = vcmp.le.f32.partialorder %v899, %v904
        %vm906 = vcmp.le.f32.partialorder %v900, %v904
        %vm907 = vmand %vm888, %vm905
        %vm908 = vmand %vm889, %vm906
        %vm909 = vcmp.eq.f32.partialorder %v784, 0.0
        %vm910 = vmand %vm890, %vm909
        %v911 = vand.u32 2147483647, %v778
        %v912 = vmul.f32 %v911, 1e-05
        %v913 = vadd.f32 %v912, 1e-08
        %v914 = vand.u32 2147483647, %v785
        %v915 = vlaneseq
        %v916 = vshrl.u32 %v915, 7
        %v917 = vsub.s32 0, %v916
        %v918 = vrot.slane %v914, %v917
        %v919 = vmul.f32 %v872, %v918
        %v920 = vmul.f32 %v873, %v918
        %v921 = vlaneseq
        %v922 = vshrl.u32 %v921, 7
        %v923 = vsub.s32 0, %v922
        %v924 = vrot.slane %v913, %v923
        %vm925 = vcmp.le.f32.partialorder %v919, %v924
        %vm926 = vcmp.le.f32.partialorder %v920, %v924
        %vm927 = vmand %vm907, %vm925
        %vm928 = vmand %vm908, %vm926
        %vm929 = vcmp.eq.f32.partialorder %v785, 0.0
        %vm930 = vmand %vm910, %vm929
        %v931 = vand.u32 2147483647, %v782
        %v932 = vmul.f32 %v931, 1e-05
        %v933 = vadd.f32 %v932, 1e-08
        %v934 = vand.u32 2147483647, %v786
        %v935 = vlaneseq
        %v936 = vshrl.u32 %v935, 7
        %v937 = vsub.s32 0, %v936
        %v938 = vrot.slane %v934, %v937
        %v939 = vmul.f32 %v872, %v938
        %v940 = vmul.f32 %v873, %v938
        %v941 = vlaneseq
        %v942 = vshrl.u32 %v941, 7
        %v943 = vsub.s32 0, %v942
        %v944 = vrot.slane %v933, %v943
        %vm945 = vcmp.le.f32.partialorder %v939, %v944
        %vm946 = vcmp.le.f32.partialorder %v940, %v944
        %vm947 = vmand %vm927, %vm945
        %vm948 = vmand %vm928, %vm946
        %vm949 = vcmp.eq.f32.partialorder %v786, 0.0
        %vm950 = vmand %vm930, %vm949
        %vm951 = vcmp.lt.f32.partialorder %v854, 0.0
        %vm952 = vcmp.lt.f32.partialorder %v856, 0.0
        %v953 = vsel %vm950, 1, 0
        %v954 = vlaneseq
        %v955 = vshrl.u32 %v954, 7
        %v956 = vsub.s32 0, %v955
        %v957 = vrot.slane %v953, %v956
        %vm958 = vcmp.eq.s32.totalorder %v957, 1
        %vm959 = vmor %vm951, %vm958
        %vm960 = vmor %vm952, %vm958
        %vm961 = vmor %vm947, %vm959
        %vm962 = vmor %vm948, %vm960
        %vm963 = vmand %vm961, %vm849
        %vm964 = vmand %vm962, %vm850
        %v965 = vsel %vm963, %v870, inf
        %v966 = vsel %vm964, %v871, inf
        %v967 = vmin.f32 %v965, %v966
        %v968 = vrot.slane %v967, 4
        %v969 = vmin.f32 %v967, %v968
        %v970 = vrot.slane %v969, 2
        %v971 = vmin.f32 %v969, %v970
        %v972 = vrot.slane %v971, 1
        %v973 = vmin.f32 %v971, %v972
        %v974 = vlaneseq
        %v975 = vshrl.u32 %v974, 7
        %v976 = vadd.s32 %v975, 8
        %vm977 = vcmp.le.f32.partialorder %v965, %v973
        %vm978 = vcmp.le.f32.partialorder %v966, %v973
        %v979 = vsel %vm977, %v975, 16
        %v980 = vsel %vm978, %v976, 16
        %vm981 = vcmp.lt.s32.totalorder %v979, %v980
        %v982 = vsel %vm981, %v979, %v980
        %v983 = vrot.slane %v982, 4
        %vm984 = vcmp.lt.s32.totalorder %v982, %v983
        %v985 = vsel %vm984, %v982, %v983
        %v986 = vrot.slane %v985, 2
        %vm987 = vcmp.lt.s32.totalorder %v985, %v986
        %v988 = vsel %vm987, %v985, %v986
        %v989 = vrot.slane %v988, 1
        %vm990 = vcmp.lt.s32.totalorder %v988, %v989
        %v991 = vsel %vm990, %v988, %v989
        %vm992 = vcmp.eq.s32.totalorder %v975, %v991
        %vm993 = vcmp.eq.s32.totalorder %v976, %v991
        %v994 = vsel %vm992, %v854, 0.0
        %v995 = vsel %vm993, %v856, 0.0
        %v996 = vadd.f32 %v994, %v995
        %v997 = vrot.slane %v996, 4
        %v998 = vadd.f32 %v996, %v997
        %v999 = vrot.slane %v998, 2
        %v1000 = vadd.f32 %v998, %v999
        %v1001 = vrot.slane %v1000, 1
        %v1002 = vadd.f32 %v1000, %v1001
        %v1003 = vmul.f32 %v1002, %v783
        %v1004 = vadd.f32 %v770, %v1003
        %v1005 = vmul.f32 %v1002, %v784
        %v1006 = vadd.f32 %v774, %v1005
        %v1007 = vmul.f32 %v1002, %v785
        %v1008 = vadd.f32 %v778, %v1007
        %v1009 = vmul.f32 %v1002, %v786
        %v1010 = vadd.f32 %v782, %v1009
        %v1011 = vsub.f32 %v1004, %v687
        %v1012 = vsub.f32 %v1006, %v689
        %v1013 = vsub.f32 %v1008, %v691
        %v1014 = vsub.f32 %v1010, %v693
        %vm1015 = vcmp.eq.f32.partialorder %v1011, 0.0
        %vm1016 = vcmp.eq.f32.partialorder %v1012, 0.0
        %vm1017 = vcmp.eq.f32.partialorder %v1013, 0.0
        %vm1018 = vcmp.eq.f32.partialorder %v1014, 0.0
        %v1019 = vsel %vm1015, 1.0, %v1011
        %v1020 = vrcp.pop %v1019
        %v1021 = vmul.f32 %v766, %v1020
        %v1022 = vsel %vm1015, inf, %v1021
        %v1023 = vsub.f32 0.0, %v1021
        %v1024 = vsel %vm1015, inf, %v1023
        %v1025 = vsel %vm1016, 1.0, %v1012
        %v1026 = vrcp.pop %v1025
        %v1027 = vmul.f32 %v766, %v1026
        %v1028 = vsel %vm1016, inf, %v1027
        %v1029 = vsub.f32 0.0, %v1027
        %v1030 = vsel %vm1016, inf, %v1029
        %v1031 = vsel %vm1017, 1.0, %v1013
        %v1032 = vrcp.pop %v1031
        %v1033 = vmul.f32 %v766, %v1032
        %v1034 = vsel %vm1017, inf, %v1033
        %v1035 = vsub.f32 0.0, %v1033
        %v1036 = vsel %vm1017, inf, %v1035
        %v1037 = vsel %vm1018, 1.0, %v1014
        %v1038 = vrcp.pop %v1037
        %v1039 = vmul.f32 %v766, %v1038
        %v1040 = vsel %vm1018, inf, %v1039
        %v1041 = vsub.f32 0.0, %v1039
        %v1042 = vsel %vm1018, inf, %v1041
        %v1043 = vand.u32 2147483647, %v1022
        %v1044 = vand.u32 2147483647, %v1028
        %v1045 = vand.u32 2147483647, %v1034
        %v1046 = vand.u32 2147483647, %v1040
        %v1047 = vmin.f32 %v1043, %v1044
        %v1048 = vmin.f32 %v1047, %v1045
        %v1049 = vmin.f32 %v1048, %v1046
        %v1050 = vsub.f32 %v1043, %v1049
        %v1051 = vand.u32 2147483647, %v1050
        %v1052 = vand.u32 2147483647, %v1049
        %v1053 = vmul.f32 %v1052, 1e-05
        %v1054 = vadd.f32 %v1053, 1e-08
        %vm1055 = vcmp.le.f32.partialorder %v1051, %v1054
        %v1056 = vsub.f32 %v1044, %v1049
        %v1057 = vand.u32 2147483647, %v1056
        %vm1058 = vcmp.le.f32.partialorder %v1057, %v1054
        %v1059 = vsub.f32 %v1045, %v1049
        %v1060 = vand.u32 2147483647, %v1059
        %vm1061 = vcmp.le.f32.partialorder %v1060, %v1054
        %v1062 = vsub.f32 %v1046, %v1049
        %v1063 = vand.u32 2147483647, %v1062
        %vm1064 = vcmp.le.f32.partialorder %v1063, %v1054
        %vm1065 = vmand %vm1015, %vm1016
        %vm1066 = vmand %vm1065, %vm1017
        %vm1067 = vmand %vm1066, %vm1018
        %vm1068 = vcmp.gt.f32.partialorder %v1022, 0.0
        %vm1069 = vmor %vm1068, %vm1067
        %vm1070 = vmand %vm1055, %vm1069
        %v1071 = vsel %vm1070, 0, 8
        %vm1072 = vcmp.lt.s32.totalorder %v1071, 8
        %v1073 = vsel %vm1072, %v1071, 8
        %vm1074 = vcmp.gt.f32.partialorder %v1028, 0.0
        %vm1075 = vmor %vm1074, %vm1067
        %vm1076 = vmand %vm1058, %vm1075
        %v1077 = vsel %vm1076, 1, 8
        %vm1078 = vcmp.lt.s32.totalorder %v1073, %v1077
        %v1079 = vsel %vm1078, %v1073, %v1077
        %vm1080 = vcmp.gt.f32.partialorder %v1034, 0.0
        %vm1081 = vmor %vm1080, %vm1067
        %vm1082 = vmand %vm1061, %vm1081
        %v1083 = vsel %vm1082, 2, 8
        %vm1084 = vcmp.lt.s32.totalorder %v1079, %v1083
        %v1085 = vsel %vm1084, %v1079, %v1083
        %vm1086 = vcmp.gt.f32.partialorder %v1040, 0.0
        %vm1087 = vmor %vm1086, %vm1067
        %vm1088 = vmand %vm1064, %vm1087
        %v1089 = vsel %vm1088, 3, 8
        %vm1090 = vcmp.lt.s32.totalorder %v1085, %v1089
        %v1091 = vsel %vm1090, %v1085, %v1089
        %vm1092 = vcmp.gt.f32.partialorder %v1024, 0.0
        %vm1093 = vmor %vm1092, %vm1067
        %vm1094 = vmand %vm1055, %vm1093
        %v1095 = vsel %vm1094, 4, 8
        %vm1096 = vcmp.lt.s32.totalorder %v1091, %v1095
        %v1097 = vsel %vm1096, %v1091, %v1095
        %vm1098 = vcmp.gt.f32.partialorder %v1030, 0.0
        %vm1099 = vmor %vm1098, %vm1067
        %vm1100 = vmand %vm1058, %vm1099
        %v1101 = vsel %vm1100, 5, 8
        %vm1102 = vcmp.lt.s32.totalorder %v1097, %v1101
        %v1103 = vsel %vm1102, %v1097, %v1101
        %vm1104 = vcmp.gt.f32.partialorder %v1036, 0.0
        %vm1105 = vmor %vm1104, %vm1067
        %vm1106 = vmand %vm1061, %vm1105
        %v1107 = vsel %vm1106, 6, 8
        %vm1108 = vcmp.lt.s32.totalorder %v1103, %v1107
        %v1109 = vsel %vm1108, %v1103, %v1107
        %vm1110 = vcmp.gt.f32.partialorder %v1042, 0.0
        %vm1111 = vmor %vm1110, %vm1067
        %vm1112 = vmand %vm1064, %vm1111
        %v1113 = vsel %vm1112, 7, 8
        %vm1114 = vcmp.lt.s32.totalorder %v1109, %v1113
        %v1115 = vsel %vm1114, %v1109, %v1113
        %v1116 = vsel %vm1055, 0, 8
        %v1117 = vsel %vm1055, %v1116, 8
        %v1118 = vsel %vm1058, 1, 8
        %vm1119 = vcmp.lt.s32.totalorder %v1117, %v1118
        %v1120 = vsel %vm1119, %v1117, %v1118
        %v1121 = vsel %vm1061, 2, 8
        %vm1122 = vcmp.lt.s32.totalorder %v1120, %v1121
        %v1123 = vsel %vm1122, %v1120, %v1121
        %v1124 = vsel %vm1064, 3, 8
        %vm1125 = vcmp.lt.s32.totalorder %v1123, %v1124
        %v1126 = vsel %vm1125, %v1123, %v1124
        %vm1127 = vcmp.ge.s32.totalorder %v1115, 8
        %v1128 = vsel %vm1127, %v1126, %v1115
        %vm1129 = vcmp.eq.s32.totalorder %v1128, 0
        %v1130 = vsel %vm1129, %v1022, 0.0
        %vm1131 = vcmp.eq.s32.totalorder %v1128, 4
        %v1132 = vsel %vm1131, %v1024, %v1130
        %vm1133 = vcmp.eq.s32.totalorder %v1128, 1
        %v1134 = vsel %vm1133, %v1028, %v1132
        %vm1135 = vcmp.eq.s32.totalorder %v1128, 5
        %v1136 = vsel %vm1135, %v1030, %v1134
        %vm1137 = vcmp.eq.s32.totalorder %v1128, 2
        %v1138 = vsel %vm1137, %v1034, %v1136
        %vm1139 = vcmp.eq.s32.totalorder %v1128, 6
        %v1140 = vsel %vm1139, %v1036, %v1138
        %vm1141 = vcmp.eq.s32.totalorder %v1128, 3
        %v1142 = vsel %vm1141, %v1040, %v1140
        %vm1143 = vcmp.eq.s32.totalorder %v1128, 7
        %v1144 = vsel %vm1143, %v1042, %v1142
        %vm1145 = vcmp.gt.f32.partialorder %v1144, 1.0
        %v1146 = vsub.f32 %v1144, 1.0
        %v1147 = vand.u32 2147483647, %v1146
        %vm1148 = vcmp.le.f32.partialorder %v1147, 1.001e-05
        %vm1149 = vmand %vm1145, %vm1148
        %v1150 = vsel %vm1149, 1.0, %v1144
        %vm1151 = vcmp.lt.f32.partialorder %v1150, -1.0
        %v1152 = vsub.f32 %v1150, -1.0
        %v1153 = vand.u32 2147483647, %v1152
        %vm1154 = vcmp.le.f32.partialorder %v1153, 1.001e-05
        %vm1155 = vmand %vm1151, %vm1154
        %v1156 = vsel %vm1155, -1.0, %v1150
        %v1157 = vmul.f32 %v1156, %v1004
        %v1158 = vsub.f32 1.0, %v1156
        %v1159 = vmul.f32 %v1158, %v687
        %v1160 = vadd.f32 %v1157, %v1159
        %v1161 = vmul.f32 %v1156, %v1006
        %v1162 = vmul.f32 %v1158, %v689
        %v1163 = vadd.f32 %v1161, %v1162
        %v1164 = vmul.f32 %v1156, %v1008
        %v1165 = vmul.f32 %v1158, %v691
        %v1166 = vadd.f32 %v1164, %v1165
        %v1167 = vmul.f32 %v1156, %v1010
        %v1168 = vmul.f32 %v1158, %v693
        %v1169 = vadd.f32 %v1167, %v1168
        %v1170 = vsub.f32 %v1160, %v687
        %v1171 = vand.u32 2147483647, %v1170
        %v1172 = vand.u32 2147483647, %v687
        %v1173 = vmul.f32 %v1172, 1e-05
        %v1174 = vadd.f32 %v1173, 1e-08
        %vm1175 = vcmp.le.f32.partialorder %v1171, %v1174
        %v1176 = vsub.f32 %v770, %v687
        %v1177 = vsel %vm1175, 1.0, %v1170
        %v1178 = vrcp.pop %v1177
        %v1179 = vmul.f32 %v1176, %v1178
        %v1180 = vsel %vm1175, %v1160, %v1179
        %v1181 = vmul.f32 %v1180, %v1011
        %v1182 = vadd.f32 %v1181, %v687
        %1183 = vst [vmem:[%s260] sm:$0x1] %v1182
        %v1184 = vsub.f32 %v1163, %v689
        %v1185 = vand.u32 2147483647, %v1184
        %v1186 = vand.u32 2147483647, %v689
        %v1187 = vmul.f32 %v1186, 1e-05
        %v1188 = vadd.f32 %v1187, 1e-08
        %vm1189 = vcmp.le.f32.partialorder %v1185, %v1188
        %v1190 = vsub.f32 %v774, %v689
        %v1191 = vsel %vm1189, 1.0, %v1184
        %v1192 = vrcp.pop %v1191
        %v1193 = vmul.f32 %v1190, %v1192
        %v1194 = vsel %vm1189, %v1163, %v1193
        %v1195 = vmul.f32 %v1194, %v1012
        %v1196 = vadd.f32 %v1195, %v689
        %1197 = vst [vmem:[%s260 + $0x1] sm:$0x1] %v1196
        %v1198 = vsub.f32 %v1166, %v691
        %v1199 = vand.u32 2147483647, %v1198
        %v1200 = vand.u32 2147483647, %v691
        %v1201 = vmul.f32 %v1200, 1e-05
        %v1202 = vadd.f32 %v1201, 1e-08
        %vm1203 = vcmp.le.f32.partialorder %v1199, %v1202
        %v1204 = vsub.f32 %v778, %v691
        %v1205 = vsel %vm1203, 1.0, %v1198
        %v1206 = vrcp.pop %v1205
        %v1207 = vmul.f32 %v1204, %v1206
        %v1208 = vsel %vm1203, %v1166, %v1207
        %v1209 = vmul.f32 %v1208, %v1013
        %v1210 = vadd.f32 %v1209, %v691
        %1211 = vst [vmem:[%s260 + $0x2] sm:$0x1] %v1210
        %v1212 = vsub.f32 %v1169, %v693
        %v1213 = vand.u32 2147483647, %v1212
        %v1214 = vand.u32 2147483647, %v693
        %v1215 = vmul.f32 %v1214, 1e-05
        %v1216 = vadd.f32 %v1215, 1e-08
        %vm1217 = vcmp.le.f32.partialorder %v1213, %v1216
        %v1218 = vsub.f32 %v782, %v693
        %v1219 = vsel %vm1217, 1.0, %v1212
        %v1220 = vrcp.pop %v1219
        %v1221 = vmul.f32 %v1218, %v1220
        %v1222 = vsel %vm1217, %v1169, %v1221
        %v1223 = vmul.f32 %v1222, %v1014
        %v1224 = vadd.f32 %v1223, %v693
        %1225 = vst [vmem:[%s260 + $0x3] sm:$0x1] %v1224
        %s1226 = sand.u32 %s109, 1
        %s1227 = scalar_lea.sflag [#allocation4], %s1226
        %s1228 = sand.u32 %s109, 1
        %s1229 = smul.addr %s1228, 4
        %s1230 = scalar_lea.vmem [#allocation8], %s1229
        // Predicated region
        $region45: #{tpu_custom_call.1} parent=31 // pred_check
          %p1231 = pneg %p119
        $region46: #{tpu_custom_call.1} parent=31 // pred_check_branch
          %1233 = sbr.rel (%p1231) target = $region48
        $region47: #{tpu_custom_call.1} parent=31 // pred_region
          %s1235 = ssub.s32 64, 64
          %1236 = vsyncadd %s1227, %s1235
          %s1237 = smul.addr %s23, 64
          %s1238 = scalar_lea.hbm %s3, %s1237
          %s1240 = sshll.u32 %s1230, 4
          %s1241 = int_to_ptr.vmem [resolvable:$true] %s1240
          %1243 = dma.vmem_to_hbm [thread:$0]  %s1241, 64, %s1238, %s1227
        $region48: #{tpu_custom_call.1} parent=31 // pred_fallthru
          _
      $region32: #{tpu_custom_call.1} parent=5 // pred_fallthru
        _
      %p1244 = scmp.le.s32.totalorder 2, %s18
      // Predicated region
      $region49: #{tpu_custom_call.1} parent=5 // pred_check
        %p1245 = pneg %p1244
      $region50: #{tpu_custom_call.1} parent=5 // pred_check_branch
        %1247 = sbr.rel (%p1245) target = $region52
      $region51: #{tpu_custom_call.1} parent=5 // pred_region
        %s1248 = ssub.s32 %s18, 2
        // Predicated region
        $region53: #{tpu_custom_call.1} parent=51 // pred_check
          %p1249 = pneg %p125
        $region54: #{tpu_custom_call.1} parent=51 // pred_check_branch
          %1251 = sbr.rel (%p1249) target = $region56
        $region55: #{tpu_custom_call.1} parent=51 // pred_region
          %s1252 = sand.u32 %s110, 1
          %s1253 = scalar_lea.sflag [#allocation4], %s1252
          %s1254 = sand.u32 %s110, 1
          %s1255 = smul.addr %s1254, 4
          %s1256 = scalar_lea.vmem [#allocation8], %s1255
          %1257 = dma.done %s1253, 64
        $region56: #{tpu_custom_call.1} parent=51 // pred_fallthru
          _
      $region52: #{tpu_custom_call.1} parent=5 // pred_fallthru
        _
    $region6: #{tpu_custom_call.1} parent=1 // loop_footer
      %s22 = sadd.s32 1, %s18
    $region7: #{tpu_custom_call.1} parent=1 // loop_footer_branch
      %17 = sbr.rel target = $region3
    $region8: #{tpu_custom_call.1} parent=1 // loop_exit
      _
    %1258 = vsyncpa [#allocation3], 1
    %s1259 = scalar_lea.sflag [#allocation3], 1
    %1260 = vsyncpa %s1259, 1
    %1261 = vsyncpa [#allocation6], 1
    %s1262 = scalar_lea.sflag [#allocation6], 1
    %1263 = vsyncpa %s1262, 1
    %1264 = vsyncpa [#allocation4], 1
    %s1265 = scalar_lea.sflag [#allocation4], 1
    %1266 = vsyncpa %s1265, 1

</llo_original>
